<compile_context>
chip_gen: v7x
topology: tpu7x:2x2x1
jax: 0.10.0
libtpu: 0.0.40
codegen_flags: <defaults>
</compile_context>

<pallas_src>
import jax
import jax.numpy as jnp
import numpy as np
from jax.experimental import pallas as pl
from jax.experimental.pallas import tpu as pltpu


# --------------------------------------------------------------------------- #
# Fused conv3x3(pad=1) + BatchNorm(eval) + ReLU + MaxPool(2x2) layer
# --------------------------------------------------------------------------- #

def _pick_row_tile(h_out, w_out, target_m=1024):
    """Pooled rows per grid step: keep per-tile matmul M = 2*th*w_out around
    the 0.5K-2K sweet spot while dividing h_out evenly (bounds VMEM too)."""
    th = max(1, min(h_out, target_m // max(1, 2 * w_out)))
    while h_out % th:
        th -= 1
    return th


def conv_bn_relu_pool(x_nhwc, w_oihw, b, gamma, beta, run_mean, run_var,
                      *, eps=1e-5, compute_dtype=jnp.bfloat16):
    """One SimpleCNN block: 3x3 conv (pad=1) + BN (running stats) + ReLU + 2x2 max-pool."""
    n, h, w, c_in = x_nhwc.shape
    c_out = w_oihw.shape[0]
    h_out, w_out = h // 2, w // 2
    assert h_out >= 1 and w_out >= 1, "spatial dims too small for MaxPool2d(2)"

    # Zero-pad: 1 row top/bottom, 1 col left, 1 (or 2 if w odd) col right so the
    # padded width is even.  Odd trailing rows/cols are never read (floor pool).
    pad_r = 1 if w % 2 == 0 else 2
    xp = jnp.pad(x_nhwc.astype(compute_dtype), ((0, 0), (1, 1), (1, pad_r), (0, 0)))
    x_even = xp[:, :, 0::2, :]          # padded columns 0,2,4,...
    x_odd = xp[:, :, 1::2, :]           # padded columns 1,3,5,...
    hp, w2p = x_even.shape[1], x_even.shape[2]

    # Fold conv bias + BatchNorm(eval) into a per-channel scale/bias (f32 epilogue).
    scale = (gamma / jnp.sqrt(run_var + eps)).astype(jnp.float32)
    bias = (beta - run_mean * scale + b * scale).astype(jnp.float32)
    # (OutC, InC, kH, kW) -> (kH, kW, InC, OutC) -> (9*InC, OutC); K = (dy*3+dx)*InC + c.
    w_mat = jnp.transpose(w_oihw, (2, 3, 1, 0)).reshape(9 * c_in, c_out).astype(compute_dtype)

    th = _pick_row_tile(h_out, w_out)   # pooled rows per grid step
    grid = (n, h_out // th)
    rows = 2 * th                       # un-pooled conv rows produced per step
    m = rows * w_out                    # matmul M per conv "half" (even / odd cols)

    def kernel(xe_ref, xo_ref, w_ref, s_ref, b_ref, o_ref):
        j = pl.program_id(1)
        r0 = j * rows                   # first conv-output row handled by this tile

        def conv_half(tap_plan):
            # 9 accumulating MXU dots (K = c_in) over shifted NHWC slices in VMEM.
            acc = jnp.zeros((m, c_out), jnp.float32)
            for dy in range(3):
                for dx, (src, u0) in enumerate(tap_plan):
                    k = dy * 3 + dx
                    tap = src[0, pl.ds(r0 + dy, rows), u0:u0 + w_out, :]  # (rows, w_out, c_in)
                    acc = acc + jnp.dot(tap.reshape(m, c_in),
                                        w_ref[k * c_in:(k + 1) * c_in, :],
                                        preferred_element_type=jnp.float32)
            # folded BN + ReLU, all in f32
            return jnp.maximum(acc * s_ref[...] + b_ref[...], 0.0)

        # even output col 2u   reads padded cols (2u,   2u+1, 2u+2) -> xe[u], xo[u], xe[u+1]
        y_even = conv_half(((xe_ref, 0), (xo_ref, 0), (xe_ref, 1)))
        # odd  output col 2u+1 reads padded cols (2u+1, 2u+2, 2u+3) -> xo[u], xe[u+1], xo[u+1]
        y_odd = conv_half(((xo_ref, 0), (xe_ref, 1), (xo_ref, 1)))

        pooled = jnp.maximum(y_even, y_odd)                         # max over column pairs
        pooled = pooled.reshape(th, 2, w_out, c_out).max(axis=1)    # max over row pairs
        o_ref[...] = pooled.reshape(1, th, w_out, c_out).astype(o_ref.dtype)

    itemsize = jnp.dtype(compute_dtype).itemsize
    bytes_accessed = ((x_even.size + x_odd.size + w_mat.size) * itemsize
                      + n * h_out * w_out * c_out * itemsize)
    cost = pl.CostEstimate(flops=2 * n * (2 * h_out) * (2 * w_out) * 9 * c_in * c_out,
                           transcendentals=0,
                           bytes_accessed=bytes_accessed)

    return pl.pallas_call(
        kernel,
        out_shape=jax.ShapeDtypeStruct((n, h_out, w_out, c_out), compute_dtype),
        grid=grid,
        in_specs=[
            # Whole padded image per batch element; index_map ignores the row-tile
            # axis so the block stays VMEM-resident across row tiles of one image.
            pl.BlockSpec((1, hp, w2p, c_in), lambda ni, ji: (ni, 0, 0, 0)),
            pl.BlockSpec((1, hp, w2p, c_in), lambda ni, ji: (ni, 0, 0, 0)),
            # Folded weights / BN scale / BN bias stay resident across the grid.
            pl.BlockSpec((9 * c_in, c_out), lambda ni, ji: (0, 0)),
            pl.BlockSpec((1, c_out), lambda ni, ji: (0, 0)),
            pl.BlockSpec((1, c_out), lambda ni, ji: (0, 0)),
        ],
        out_specs=pl.BlockSpec((1, th, w_out, c_out), lambda ni, ji: (ni, ji, 0, 0)),
        compiler_params=pltpu.CompilerParams(
            # batch axis parallel -> both v7x TensorCores get work; row-tile axis
            # "arbitrary" so the resident input block is reused across tiles.
            dimension_semantics=("parallel", "arbitrary")),
        cost_estimate=cost,
    )(x_even, x_odd, w_mat, scale.reshape(1, c_out), bias.reshape(1, c_out))


# --------------------------------------------------------------------------- #
# Global average pool + Linear head (Dropout is identity in eval mode)
# --------------------------------------------------------------------------- #

def _gap_fc_kernel(x_ref, w_ref, b_ref, o_ref):
    # x: (N, S, C) pooled features; global average pool over S, then the linear head.
    x = x_ref[...].astype(jnp.float32)
    pooled = jnp.mean(x, axis=1)                                    # (N, C)
    logits = jnp.dot(pooled, w_ref[...], preferred_element_type=jnp.float32)
    o_ref[...] = logits + b_ref[...]


def global_pool_fc(x_nhwc, fc_w_oi, fc_b):
    """AdaptiveAvgPool2d((1,1)) + flatten + Dropout(eval: identity) + Linear."""
    n, h, w, c = x_nhwc.shape
    num_classes = fc_w_oi.shape[0]
    x3 = x_nhwc.reshape(n, h * w, c)
    vmem = pl.BlockSpec(memory_space=pltpu.MemorySpace.VMEM)
    # Tensors here are tiny (N x 64): a single whole-array VMEM block, no grid.
    return pl.pallas_call(
        _gap_fc_kernel,
        out_shape=jax.ShapeDtypeStruct((n, num_classes), jnp.float32),
        in_specs=[vmem, vmem, vmem],
        out_specs=vmem,
    )(x3, fc_w_oi.T.astype(jnp.float32), fc_b.reshape(1, num_classes).astype(jnp.float32))


# --------------------------------------------------------------------------- #
# Model assembly
# --------------------------------------------------------------------------- #

def init_params(key, num_classes=2):
    def conv_block(k, in_c, out_c):
        kw, kb, kg, kbe, km, kv = jax.random.split(k, 6)
        return dict(
            w=0.1 * jax.random.normal(kw, (out_c, in_c, 3, 3), jnp.float32),
            b=0.05 * jax.random.normal(kb, (out_c,), jnp.float32),
            gamma=1.0 + 0.1 * jax.random.normal(kg, (out_c,), jnp.float32),
            beta=0.1 * jax.random.normal(kbe, (out_c,), jnp.float32),
            mean=0.1 * jax.random.normal(km, (out_c,), jnp.float32),
            var=jax.random.uniform(kv, (out_c,), jnp.float32, 0.5, 1.5),
        )

    k1, k2, k3, kfw, kfb = jax.random.split(key, 5)
    return dict(
        conv1=conv_block(k1, 3, 16),
        conv2=conv_block(k2, 16, 32),
        conv3=conv_block(k3, 32, 64),
        fc_w=0.1 * jax.random.normal(kfw, (num_classes, 64), jnp.float32),
        fc_b=0.05 * jax.random.normal(kfb, (num_classes,), jnp.float32),
    )


def simple_cnn_forward(params, x_nchw, *, compute_dtype=jnp.bfloat16):
    # NCHW (PyTorch) -> NHWC (TPU-friendly)
    x = jnp.transpose(x_nchw, (0, 2, 3, 1))
    for name in ("conv1", "conv2", "conv3"):
        p = params[name]
        x = conv_bn_relu_pool(x, p["w"], p["b"], p["gamma"], p["beta"],
                              p["mean"], p["var"], compute_dtype=compute_dtype)
    # nn.Dropout(0.4) is identity in eval mode.
    return global_pool_fc(x, params["fc_w"], params["fc_b"])


# Pure-JAX reference (for a correctness cross-check of the kernel math).
def _reference_forward(params, x_nchw, eps=1e-5):
    x = jnp.transpose(x_nchw, (0, 2, 3, 1)).astype(jnp.float32)
    for name in ("conv1", "conv2", "conv3"):
        p = params[name]
        y = jax.lax.conv_general_dilated(
            x, jnp.transpose(p["w"], (2, 3, 1, 0)), (1, 1), "SAME",
            dimension_numbers=("NHWC", "HWIO", "NHWC"),
            precision=jax.lax.Precision.HIGHEST) + p["b"]
        scale = p["gamma"] / jnp.sqrt(p["var"] + eps)
        y = (y - p["mean"]) * scale + p["beta"]
        y = jnp.maximum(y, 0.0)
        nb, hh, ww, cc = y.shape
        y = y[:, :hh // 2 * 2, :ww // 2 * 2, :]
        y = y.reshape(nb, hh // 2, 2, ww // 2, 2, cc).max(axis=(2, 4))
        x = y
    pooled = x.mean(axis=(1, 2))
    return pooled @ params["fc_w"].T + params["fc_b"]


if __name__ == "__main__":
    key = jax.random.PRNGKey(0)
    k_param, k_input = jax.random.split(key)

    params = init_params(k_param, num_classes=2)
    x = jax.random.normal(k_input, (2, 3, 16, 16), jnp.float32)  # NCHW, like PyTorch

    # Correctness cross-check of the kernel path (run in f32) against pure JAX.
    out_f32 = jax.block_until_ready(simple_cnn_forward(params, x, compute_dtype=jnp.float32))
    ref = jax.block_until_ready(_reference_forward(params, x))
    np.testing.assert_allclose(np.asarray(out_f32), np.asarray(ref), rtol=5e-2, atol=5e-3)

    # Fast path: bf16 MXU inputs, f32 accumulation.
    out = jax.block_until_ready(simple_cnn_forward(params, x))
    assert out.shape == (2, 2), out.shape
    assert bool(jnp.all(jnp.isfinite(out)))
    print("KERNEL_OK")
</pallas_src>

<mosaic_0001>
module attributes {stable_mosaic.version = 11 : i64} {
  func.func @kernel(%arg0: i32, %arg1: i32, %arg2: memref<1x18x9x3xf32, #tpu.memory_space<vmem>>, %arg3: memref<1x18x9x3xf32, #tpu.memory_space<vmem>>, %arg4: memref<27x16xf32, #tpu.memory_space<vmem>>, %arg5: memref<1x16xf32, #tpu.memory_space<vmem>>, %arg6: memref<1x16xf32, #tpu.memory_space<vmem>>, %arg7: memref<1x8x8x16xf32, #tpu.memory_space<vmem>>) attributes {dimension_semantics = [#tpu.dimension_semantics<parallel>, #tpu.dimension_semantics<arbitrary>], iteration_bounds = array<i64: 2, 1>, scalar_prefetch = 0 : i64, scratch_operands = 0 : i64, tpu.core_type = #tpu.core_type<tc>, window_params = [{transform_indices = @transform_0, window_bounds = array<i64: 1, 18, 9, 3>}, {transform_indices = @transform_1, window_bounds = array<i64: 1, 18, 9, 3>}, {pipeline_mode = #tpu.pipeline_mode<synchronous>, transform_indices = @transform_2, window_bounds = array<i64: 27, 16>}, {pipeline_mode = #tpu.pipeline_mode<synchronous>, transform_indices = @transform_3, window_bounds = array<i64: 1, 16>}, {pipeline_mode = #tpu.pipeline_mode<synchronous>, transform_indices = @transform_4, window_bounds = array<i64: 1, 16>}, {transform_indices = @transform_5, window_bounds = array<i64: 1, 8, 8, 16>}]} {
    %c16_i32 = arith.constant 16 : i32
    %0 = arith.muli %arg1, %c16_i32 : i32
    %cst = arith.constant 0.000000e+00 : f32
    %1 = vector.broadcast %cst : f32 to vector<128x16xf32>
    %c0_i32 = arith.constant 0 : i32
    %2 = arith.addi %0, %c0_i32 : i32
    %c0 = arith.constant 0 : index
    %3 = arith.index_cast %2 : i32 to index
    %c0_0 = arith.constant 0 : index
    %c0_1 = arith.constant 0 : index
    %4 = vector.load %arg2[%c0, %3, %c0_0, %c0_1] : memref<1x18x9x3xf32, #tpu.memory_space<vmem>>, vector<1x16x8x3xf32>
    %5 = vector.shape_cast %4 : vector<1x16x8x3xf32> to vector<16x8x3xf32>
    %6 = vector.shape_cast %5 : vector<16x8x3xf32> to vector<128x3xf32>
    %c0_2 = arith.constant 0 : index
    %c0_3 = arith.constant 0 : index
    %7 = vector.load %arg4[%c0_2, %c0_3] : memref<27x16xf32, #tpu.memory_space<vmem>>, vector<3x16xf32>
    %cst_4 = arith.constant dense<0.000000e+00> : vector<128x16xf32>
    %8 = tpu.matmul %6, %7, %cst_4 {dimension_numbers = #tpu.dot_dimension_numbers<[1], [0], [0], [1], [0, 0, 1, 1], [], []>} : vector<128x3xf32>, vector<3x16xf32>, vector<128x16xf32> -> vector<128x16xf32>
    %9 = arith.addf %1, %8 : vector<128x16xf32>
    %c0_i32_5 = arith.constant 0 : i32
    %10 = arith.addi %0, %c0_i32_5 : i32
    %c0_6 = arith.constant 0 : index
    %11 = arith.index_cast %10 : i32 to index
    %c0_7 = arith.constant 0 : index
    %c0_8 = arith.constant 0 : index
    %12 = vector.load %arg3[%c0_6, %11, %c0_7, %c0_8] : memref<1x18x9x3xf32, #tpu.memory_space<vmem>>, vector<1x16x8x3xf32>
    %13 = vector.shape_cast %12 : vector<1x16x8x3xf32> to vector<16x8x3xf32>
    %14 = vector.shape_cast %13 : vector<16x8x3xf32> to vector<128x3xf32>
    %c3 = arith.constant 3 : index
    %c0_9 = arith.constant 0 : index
    %15 = vector.load %arg4[%c3, %c0_9] : memref<27x16xf32, #tpu.memory_space<vmem>>, vector<3x16xf32>
    %cst_10 = arith.constant dense<0.000000e+00> : vector<128x16xf32>
    %16 = tpu.matmul %14, %15, %cst_10 {dimension_numbers = #tpu.dot_dimension_numbers<[1], [0], [0], [1], [0, 0, 1, 1], [], []>} : vector<128x3xf32>, vector<3x16xf32>, vector<128x16xf32> -> vector<128x16xf32>
    %17 = arith.addf %9, %16 : vector<128x16xf32>
    %c0_i32_11 = arith.constant 0 : i32
    %18 = arith.addi %0, %c0_i32_11 : i32
    %c0_12 = arith.constant 0 : index
    %19 = arith.index_cast %18 : i32 to index
    %c1 = arith.constant 1 : index
    %c0_13 = arith.constant 0 : index
    %20 = vector.load %arg2[%c0_12, %19, %c1, %c0_13] : memref<1x18x9x3xf32, #tpu.memory_space<vmem>>, vector<1x16x8x3xf32>
    %21 = vector.shape_cast %20 : vector<1x16x8x3xf32> to vector<16x8x3xf32>
    %22 = vector.shape_cast %21 : vector<16x8x3xf32> to vector<128x3xf32>
    %c6 = arith.constant 6 : index
    %c0_14 = arith.constant 0 : index
    %23 = vector.load %arg4[%c6, %c0_14] : memref<27x16xf32, #tpu.memory_space<vmem>>, vector<3x16xf32>
    %cst_15 = arith.constant dense<0.000000e+00> : vector<128x16xf32>
    %24 = tpu.matmul %22, %23, %cst_15 {dimension_numbers = #tpu.dot_dimension_numbers<[1], [0], [0], [1], [0, 0, 1, 1], [], []>} : vector<128x3xf32>, vector<3x16xf32>, vector<128x16xf32> -> vector<128x16xf32>
    %25 = arith.addf %17, %24 : vector<128x16xf32>
    %c1_i32 = arith.constant 1 : i32
    %26 = arith.addi %0, %c1_i32 : i32
    %c0_16 = arith.constant 0 : index
    %27 = arith.index_cast %26 : i32 to index
    %c0_17 = arith.constant 0 : index
    %c0_18 = arith.constant 0 : index
    %28 = vector.load %arg2[%c0_16, %27, %c0_17, %c0_18] : memref<1x18x9x3xf32, #tpu.memory_space<vmem>>, vector<1x16x8x3xf32>
    %29 = vector.shape_cast %28 : vector<1x16x8x3xf32> to vector<16x8x3xf32>
    %30 = vector.shape_cast %29 : vector<16x8x3xf32> to vector<128x3xf32>
    %c9 = arith.constant 9 : index
    %c0_19 = arith.constant 0 : index
    %31 = vector.load %arg4[%c9, %c0_19] : memref<27x16xf32, #tpu.memory_space<vmem>>, vector<3x16xf32>
    %cst_20 = arith.constant dense<0.000000e+00> : vector<128x16xf32>
    %32 = tpu.matmul %30, %31, %cst_20 {dimension_numbers = #tpu.dot_dimension_numbers<[1], [0], [0], [1], [0, 0, 1, 1], [], []>} : vector<128x3xf32>, vector<3x16xf32>, vector<128x16xf32> -> vector<128x16xf32>
    %33 = arith.addf %25, %32 : vector<128x16xf32>
    %c1_i32_21 = arith.constant 1 : i32
    %34 = arith.addi %0, %c1_i32_21 : i32
    %c0_22 = arith.constant 0 : index
    %35 = arith.index_cast %34 : i32 to index
    %c0_23 = arith.constant 0 : index
    %c0_24 = arith.constant 0 : index
    %36 = vector.load %arg3[%c0_22, %35, %c0_23, %c0_24] : memref<1x18x9x3xf32, #tpu.memory_space<vmem>>, vector<1x16x8x3xf32>
    %37 = vector.shape_cast %36 : vector<1x16x8x3xf32> to vector<16x8x3xf32>
    %38 = vector.shape_cast %37 : vector<16x8x3xf32> to vector<128x3xf32>
    %c12 = arith.constant 12 : index
    %c0_25 = arith.constant 0 : index
    %39 = vector.load %arg4[%c12, %c0_25] : memref<27x16xf32, #tpu.memory_space<vmem>>, vector<3x16xf32>
    %cst_26 = arith.constant dense<0.000000e+00> : vector<128x16xf32>
    %40 = tpu.matmul %38, %39, %cst_26 {dimension_numbers = #tpu.dot_dimension_numbers<[1], [0], [0], [1], [0, 0, 1, 1], [], []>} : vector<128x3xf32>, vector<3x16xf32>, vector<128x16xf32> -> vector<128x16xf32>
    %41 = arith.addf %33, %40 : vector<128x16xf32>
    %c1_i32_27 = arith.constant 1 : i32
    %42 = arith.addi %0, %c1_i32_27 : i32
    %c0_28 = arith.constant 0 : index
    %43 = arith.index_cast %42 : i32 to index
    %c1_29 = arith.constant 1 : index
    %c0_30 = arith.constant 0 : index
    %44 = vector.load %arg2[%c0_28, %43, %c1_29, %c0_30] : memref<1x18x9x3xf32, #tpu.memory_space<vmem>>, vector<1x16x8x3xf32>
    %45 = vector.shape_cast %44 : vector<1x16x8x3xf32> to vector<16x8x3xf32>
    %46 = vector.shape_cast %45 : vector<16x8x3xf32> to vector<128x3xf32>
    %c15 = arith.constant 15 : index
    %c0_31 = arith.constant 0 : index
    %47 = vector.load %arg4[%c15, %c0_31] : memref<27x16xf32, #tpu.memory_space<vmem>>, vector<3x16xf32>
    %cst_32 = arith.constant dense<0.000000e+00> : vector<128x16xf32>
    %48 = tpu.matmul %46, %47, %cst_32 {dimension_numbers = #tpu.dot_dimension_numbers<[1], [0], [0], [1], [0, 0, 1, 1], [], []>} : vector<128x3xf32>, vector<3x16xf32>, vector<128x16xf32> -> vector<128x16xf32>
    %49 = arith.addf %41, %48 : vector<128x16xf32>
    %c2_i32 = arith.constant 2 : i32
    %50 = arith.addi %0, %c2_i32 : i32
    %c0_33 = arith.constant 0 : index
    %51 = arith.index_cast %50 : i32 to index
    %c0_34 = arith.constant 0 : index
    %c0_35 = arith.constant 0 : index
    %52 = vector.load %arg2[%c0_33, %51, %c0_34, %c0_35] : memref<1x18x9x3xf32, #tpu.memory_space<vmem>>, vector<1x16x8x3xf32>
    %53 = vector.shape_cast %52 : vector<1x16x8x3xf32> to vector<16x8x3xf32>
    %54 = vector.shape_cast %53 : vector<16x8x3xf32> to vector<128x3xf32>
    %c18 = arith.constant 18 : index
    %c0_36 = arith.constant 0 : index
    %55 = vector.load %arg4[%c18, %c0_36] : memref<27x16xf32, #tpu.memory_space<vmem>>, vector<3x16xf32>
    %cst_37 = arith.constant dense<0.000000e+00> : vector<128x16xf32>
    %56 = tpu.matmul %54, %55, %cst_37 {dimension_numbers = #tpu.dot_dimension_numbers<[1], [0], [0], [1], [0, 0, 1, 1], [], []>} : vector<128x3xf32>, vector<3x16xf32>, vector<128x16xf32> -> vector<128x16xf32>
    %57 = arith.addf %49, %56 : vector<128x16xf32>
    %c2_i32_38 = arith.constant 2 : i32
    %58 = arith.addi %0, %c2_i32_38 : i32
    %c0_39 = arith.constant 0 : index
    %59 = arith.index_cast %58 : i32 to index
    %c0_40 = arith.constant 0 : index
    %c0_41 = arith.constant 0 : index
    %60 = vector.load %arg3[%c0_39, %59, %c0_40, %c0_41] : memref<1x18x9x3xf32, #tpu.memory_space<vmem>>, vector<1x16x8x3xf32>
    %61 = vector.shape_cast %60 : vector<1x16x8x3xf32> to vector<16x8x3xf32>
    %62 = vector.shape_cast %61 : vector<16x8x3xf32> to vector<128x3xf32>
    %c21 = arith.constant 21 : index
    %c0_42 = arith.constant 0 : index
    %63 = vector.load %arg4[%c21, %c0_42] : memref<27x16xf32, #tpu.memory_space<vmem>>, vector<3x16xf32>
    %cst_43 = arith.constant dense<0.000000e+00> : vector<128x16xf32>
    %64 = tpu.matmul %62, %63, %cst_43 {dimension_numbers = #tpu.dot_dimension_numbers<[1], [0], [0], [1], [0, 0, 1, 1], [], []>} : vector<128x3xf32>, vector<3x16xf32>, vector<128x16xf32> -> vector<128x16xf32>
    %65 = arith.addf %57, %64 : vector<128x16xf32>
    %c2_i32_44 = arith.constant 2 : i32
    %66 = arith.addi %0, %c2_i32_44 : i32
    %c0_45 = arith.constant 0 : index
    %67 = arith.index_cast %66 : i32 to index
    %c1_46 = arith.constant 1 : index
    %c0_47 = arith.constant 0 : index
    %68 = vector.load %arg2[%c0_45, %67, %c1_46, %c0_47] : memref<1x18x9x3xf32, #tpu.memory_space<vmem>>, vector<1x16x8x3xf32>
    %69 = vector.shape_cast %68 : vector<1x16x8x3xf32> to vector<16x8x3xf32>
    %70 = vector.shape_cast %69 : vector<16x8x3xf32> to vector<128x3xf32>
    %c24 = arith.constant 24 : index
    %c0_48 = arith.constant 0 : index
    %71 = vector.load %arg4[%c24, %c0_48] : memref<27x16xf32, #tpu.memory_space<vmem>>, vector<3x16xf32>
    %cst_49 = arith.constant dense<0.000000e+00> : vector<128x16xf32>
    %72 = tpu.matmul %70, %71, %cst_49 {dimension_numbers = #tpu.dot_dimension_numbers<[1], [0], [0], [1], [0, 0, 1, 1], [], []>} : vector<128x3xf32>, vector<3x16xf32>, vector<128x16xf32> -> vector<128x16xf32>
    %73 = arith.addf %65, %72 : vector<128x16xf32>
    %c0_50 = arith.constant 0 : index
    %c0_51 = arith.constant 0 : index
    %74 = vector.load %arg5[%c0_50, %c0_51] : memref<1x16xf32, #tpu.memory_space<vmem>>, vector<1x16xf32>
    %75 = vector.broadcast %74 : vector<1x16xf32> to vector<128x16xf32>
    %76 = arith.mulf %73, %75 : vector<128x16xf32>
    %c0_52 = arith.constant 0 : index
    %c0_53 = arith.constant 0 : index
    %77 = vector.load %arg6[%c0_52, %c0_53] : memref<1x16xf32, #tpu.memory_space<vmem>>, vector<1x16xf32>
    %78 = vector.broadcast %77 : vector<1x16xf32> to vector<128x16xf32>
    %79 = arith.addf %76, %78 : vector<128x16xf32>
    %cst_54 = arith.constant 0.000000e+00 : f32
    %80 = vector.broadcast %cst_54 : f32 to vector<128x16xf32>
    %81 = arith.maximumf %79, %80 : vector<128x16xf32>
    %cst_55 = arith.constant 0.000000e+00 : f32
    %82 = vector.broadcast %cst_55 : f32 to vector<128x16xf32>
    %c0_i32_56 = arith.constant 0 : i32
    %83 = arith.addi %0, %c0_i32_56 : i32
    %c0_57 = arith.constant 0 : index
    %84 = arith.index_cast %83 : i32 to index
    %c0_58 = arith.constant 0 : index
    %c0_59 = arith.constant 0 : index
    %85 = vector.load %arg3[%c0_57, %84, %c0_58, %c0_59] : memref<1x18x9x3xf32, #tpu.memory_space<vmem>>, vector<1x16x8x3xf32>
    %86 = vector.shape_cast %85 : vector<1x16x8x3xf32> to vector<16x8x3xf32>
    %87 = vector.shape_cast %86 : vector<16x8x3xf32> to vector<128x3xf32>
    %c0_60 = arith.constant 0 : index
    %c0_61 = arith.constant 0 : index
    %88 = vector.load %arg4[%c0_60, %c0_61] : memref<27x16xf32, #tpu.memory_space<vmem>>, vector<3x16xf32>
    %cst_62 = arith.constant dense<0.000000e+00> : vector<128x16xf32>
    %89 = tpu.matmul %87, %88, %cst_62 {dimension_numbers = #tpu.dot_dimension_numbers<[1], [0], [0], [1], [0, 0, 1, 1], [], []>} : vector<128x3xf32>, vector<3x16xf32>, vector<128x16xf32> -> vector<128x16xf32>
    %90 = arith.addf %82, %89 : vector<128x16xf32>
    %c0_i32_63 = arith.constant 0 : i32
    %91 = arith.addi %0, %c0_i32_63 : i32
    %c0_64 = arith.constant 0 : index
    %92 = arith.index_cast %91 : i32 to index
    %c1_65 = arith.constant 1 : index
    %c0_66 = arith.constant 0 : index
    %93 = vector.load %arg2[%c0_64, %92, %c1_65, %c0_66] : memref<1x18x9x3xf32, #tpu.memory_space<vmem>>, vector<1x16x8x3xf32>
    %94 = vector.shape_cast %93 : vector<1x16x8x3xf32> to vector<16x8x3xf32>
    %95 = vector.shape_cast %94 : vector<16x8x3xf32> to vector<128x3xf32>
    %c3_67 = arith.constant 3 : index
    %c0_68 = arith.constant 0 : index
    %96 = vector.load %arg4[%c3_67, %c0_68] : memref<27x16xf32, #tpu.memory_space<vmem>>, vector<3x16xf32>
    %cst_69 = arith.constant dense<0.000000e+00> : vector<128x16xf32>
    %97 = tpu.matmul %95, %96, %cst_69 {dimension_numbers = #tpu.dot_dimension_numbers<[1], [0], [0], [1], [0, 0, 1, 1], [], []>} : vector<128x3xf32>, vector<3x16xf32>, vector<128x16xf32> -> vector<128x16xf32>
    %98 = arith.addf %90, %97 : vector<128x16xf32>
    %c0_i32_70 = arith.constant 0 : i32
    %99 = arith.addi %0, %c0_i32_70 : i32
    %c0_71 = arith.constant 0 : index
    %100 = arith.index_cast %99 : i32 to index
    %c1_72 = arith.constant 1 : index
    %c0_73 = arith.constant 0 : index
    %101 = vector.load %arg3[%c0_71, %100, %c1_72, %c0_73] : memref<1x18x9x3xf32, #tpu.memory_space<vmem>>, vector<1x16x8x3xf32>
    %102 = vector.shape_cast %101 : vector<1x16x8x3xf32> to vector<16x8x3xf32>
    %103 = vector.shape_cast %102 : vector<16x8x3xf32> to vector<128x3xf32>
    %c6_74 = arith.constant 6 : index
    %c0_75 = arith.constant 0 : index
    %104 = vector.load %arg4[%c6_74, %c0_75] : memref<27x16xf32, #tpu.memory_space<vmem>>, vector<3x16xf32>
    %cst_76 = arith.constant dense<0.000000e+00> : vector<128x16xf32>
    %105 = tpu.matmul %103, %104, %cst_76 {dimension_numbers = #tpu.dot_dimension_numbers<[1], [0], [0], [1], [0, 0, 1, 1], [], []>} : vector<128x3xf32>, vector<3x16xf32>, vector<128x16xf32> -> vector<128x16xf32>
    %106 = arith.addf %98, %105 : vector<128x16xf32>
    %c1_i32_77 = arith.constant 1 : i32
    %107 = arith.addi %0, %c1_i32_77 : i32
    %c0_78 = arith.constant 0 : index
    %108 = arith.index_cast %107 : i32 to index
    %c0_79 = arith.constant 0 : index
    %c0_80 = arith.constant 0 : index
    %109 = vector.load %arg3[%c0_78, %108, %c0_79, %c0_80] : memref<1x18x9x3xf32, #tpu.memory_space<vmem>>, vector<1x16x8x3xf32>
    %110 = vector.shape_cast %109 : vector<1x16x8x3xf32> to vector<16x8x3xf32>
    %111 = vector.shape_cast %110 : vector<16x8x3xf32> to vector<128x3xf32>
    %c9_81 = arith.constant 9 : index
    %c0_82 = arith.constant 0 : index
    %112 = vector.load %arg4[%c9_81, %c0_82] : memref<27x16xf32, #tpu.memory_space<vmem>>, vector<3x16xf32>
    %cst_83 = arith.constant dense<0.000000e+00> : vector<128x16xf32>
    %113 = tpu.matmul %111, %112, %cst_83 {dimension_numbers = #tpu.dot_dimension_numbers<[1], [0], [0], [1], [0, 0, 1, 1], [], []>} : vector<128x3xf32>, vector<3x16xf32>, vector<128x16xf32> -> vector<128x16xf32>
    %114 = arith.addf %106, %113 : vector<128x16xf32>
    %c1_i32_84 = arith.constant 1 : i32
    %115 = arith.addi %0, %c1_i32_84 : i32
    %c0_85 = arith.constant 0 : index
    %116 = arith.index_cast %115 : i32 to index
    %c1_86 = arith.constant 1 : index
    %c0_87 = arith.constant 0 : index
    %117 = vector.load %arg2[%c0_85, %116, %c1_86, %c0_87] : memref<1x18x9x3xf32, #tpu.memory_space<vmem>>, vector<1x16x8x3xf32>
    %118 = vector.shape_cast %117 : vector<1x16x8x3xf32> to vector<16x8x3xf32>
    %119 = vector.shape_cast %118 : vector<16x8x3xf32> to vector<128x3xf32>
    %c12_88 = arith.constant 12 : index
    %c0_89 = arith.constant 0 : index
    %120 = vector.load %arg4[%c12_88, %c0_89] : memref<27x16xf32, #tpu.memory_space<vmem>>, vector<3x16xf32>
    %cst_90 = arith.constant dense<0.000000e+00> : vector<128x16xf32>
    %121 = tpu.matmul %119, %120, %cst_90 {dimension_numbers = #tpu.dot_dimension_numbers<[1], [0], [0], [1], [0, 0, 1, 1], [], []>} : vector<128x3xf32>, vector<3x16xf32>, vector<128x16xf32> -> vector<128x16xf32>
    %122 = arith.addf %114, %121 : vector<128x16xf32>
    %c1_i32_91 = arith.constant 1 : i32
    %123 = arith.addi %0, %c1_i32_91 : i32
    %c0_92 = arith.constant 0 : index
    %124 = arith.index_cast %123 : i32 to index
    %c1_93 = arith.constant 1 : index
    %c0_94 = arith.constant 0 : index
    %125 = vector.load %arg3[%c0_92, %124, %c1_93, %c0_94] : memref<1x18x9x3xf32, #tpu.memory_space<vmem>>, vector<1x16x8x3xf32>
    %126 = vector.shape_cast %125 : vector<1x16x8x3xf32> to vector<16x8x3xf32>
    %127 = vector.shape_cast %126 : vector<16x8x3xf32> to vector<128x3xf32>
    %c15_95 = arith.constant 15 : index
    %c0_96 = arith.constant 0 : index
    %128 = vector.load %arg4[%c15_95, %c0_96] : memref<27x16xf32, #tpu.memory_space<vmem>>, vector<3x16xf32>
    %cst_97 = arith.constant dense<0.000000e+00> : vector<128x16xf32>
    %129 = tpu.matmul %127, %128, %cst_97 {dimension_numbers = #tpu.dot_dimension_numbers<[1], [0], [0], [1], [0, 0, 1, 1], [], []>} : vector<128x3xf32>, vector<3x16xf32>, vector<128x16xf32> -> vector<128x16xf32>
    %130 = arith.addf %122, %129 : vector<128x16xf32>
    %c2_i32_98 = arith.constant 2 : i32
    %131 = arith.addi %0, %c2_i32_98 : i32
    %c0_99 = arith.constant 0 : index
    %132 = arith.index_cast %131 : i32 to index
    %c0_100 = arith.constant 0 : index
    %c0_101 = arith.constant 0 : index
    %133 = vector.load %arg3[%c0_99, %132, %c0_100, %c0_101] : memref<1x18x9x3xf32, #tpu.memory_space<vmem>>, vector<1x16x8x3xf32>
    %134 = vector.shape_cast %133 : vector<1x16x8x3xf32> to vector<16x8x3xf32>
    %135 = vector.shape_cast %134 : vector<16x8x3xf32> to vector<128x3xf32>
    %c18_102 = arith.constant 18 : index
    %c0_103 = arith.constant 0 : index
    %136 = vector.load %arg4[%c18_102, %c0_103] : memref<27x16xf32, #tpu.memory_space<vmem>>, vector<3x16xf32>
    %cst_104 = arith.constant dense<0.000000e+00> : vector<128x16xf32>
    %137 = tpu.matmul %135, %136, %cst_104 {dimension_numbers = #tpu.dot_dimension_numbers<[1], [0], [0], [1], [0, 0, 1, 1], [], []>} : vector<128x3xf32>, vector<3x16xf32>, vector<128x16xf32> -> vector<128x16xf32>
    %138 = arith.addf %130, %137 : vector<128x16xf32>
    %c2_i32_105 = arith.constant 2 : i32
    %139 = arith.addi %0, %c2_i32_105 : i32
    %c0_106 = arith.constant 0 : index
    %140 = arith.index_cast %139 : i32 to index
    %c1_107 = arith.constant 1 : index
    %c0_108 = arith.constant 0 : index
    %141 = vector.load %arg2[%c0_106, %140, %c1_107, %c0_108] : memref<1x18x9x3xf32, #tpu.memory_space<vmem>>, vector<1x16x8x3xf32>
    %142 = vector.shape_cast %141 : vector<1x16x8x3xf32> to vector<16x8x3xf32>
    %143 = vector.shape_cast %142 : vector<16x8x3xf32> to vector<128x3xf32>
    %c21_109 = arith.constant 21 : index
    %c0_110 = arith.constant 0 : index
    %144 = vector.load %arg4[%c21_109, %c0_110] : memref<27x16xf32, #tpu.memory_space<vmem>>, vector<3x16xf32>
    %cst_111 = arith.constant dense<0.000000e+00> : vector<128x16xf32>
    %145 = tpu.matmul %143, %144, %cst_111 {dimension_numbers = #tpu.dot_dimension_numbers<[1], [0], [0], [1], [0, 0, 1, 1], [], []>} : vector<128x3xf32>, vector<3x16xf32>, vector<128x16xf32> -> vector<128x16xf32>
    %146 = arith.addf %138, %145 : vector<128x16xf32>
    %c2_i32_112 = arith.constant 2 : i32
    %147 = arith.addi %0, %c2_i32_112 : i32
    %c0_113 = arith.constant 0 : index
    %148 = arith.index_cast %147 : i32 to index
    %c1_114 = arith.constant 1 : index
    %c0_115 = arith.constant 0 : index
    %149 = vector.load %arg3[%c0_113, %148, %c1_114, %c0_115] : memref<1x18x9x3xf32, #tpu.memory_space<vmem>>, vector<1x16x8x3xf32>
    %150 = vector.shape_cast %149 : vector<1x16x8x3xf32> to vector<16x8x3xf32>
    %151 = vector.shape_cast %150 : vector<16x8x3xf32> to vector<128x3xf32>
    %c24_116 = arith.constant 24 : index
    %c0_117 = arith.constant 0 : index
    %152 = vector.load %arg4[%c24_116, %c0_117] : memref<27x16xf32, #tpu.memory_space<vmem>>, vector<3x16xf32>
    %cst_118 = arith.constant dense<0.000000e+00> : vector<128x16xf32>
    %153 = tpu.matmul %151, %152, %cst_118 {dimension_numbers = #tpu.dot_dimension_numbers<[1], [0], [0], [1], [0, 0, 1, 1], [], []>} : vector<128x3xf32>, vector<3x16xf32>, vector<128x16xf32> -> vector<128x16xf32>
    %154 = arith.addf %146, %153 : vector<128x16xf32>
    %c0_119 = arith.constant 0 : index
    %c0_120 = arith.constant 0 : index
    %155 = vector.load %arg5[%c0_119, %c0_120] : memref<1x16xf32, #tpu.memory_space<vmem>>, vector<1x16xf32>
    %156 = vector.broadcast %155 : vector<1x16xf32> to vector<128x16xf32>
    %157 = arith.mulf %154, %156 : vector<128x16xf32>
    %c0_121 = arith.constant 0 : index
    %c0_122 = arith.constant 0 : index
    %158 = vector.load %arg6[%c0_121, %c0_122] : memref<1x16xf32, #tpu.memory_space<vmem>>, vector<1x16xf32>
    %159 = vector.broadcast %158 : vector<1x16xf32> to vector<128x16xf32>
    %160 = arith.addf %157, %159 : vector<128x16xf32>
    %cst_123 = arith.constant 0.000000e+00 : f32
    %161 = vector.broadcast %cst_123 : f32 to vector<128x16xf32>
    %162 = arith.maximumf %160, %161 : vector<128x16xf32>
    %163 = arith.maximumf %81, %162 : vector<128x16xf32>
    %164 = vector.shape_cast %163 : vector<128x16xf32> to vector<8x2x8x16xf32>
    %cst_124 = arith.constant dense<0xFF800000> : vector<8x8x16xf32>
    %165 = vector.multi_reduction <maximumf>, %164, %cst_124 [1] : vector<8x2x8x16xf32> to vector<8x8x16xf32>
    %166 = vector.shape_cast %165 : vector<8x8x16xf32> to vector<1x8x8x16xf32>
    %c0_125 = arith.constant 0 : index
    %c0_126 = arith.constant 0 : index
    %c0_127 = arith.constant 0 : index
    %c0_128 = arith.constant 0 : index
    %167 = vector.load %arg7[%c0_125, %c0_126, %c0_127, %c0_128] : memref<1x8x8x16xf32, #tpu.memory_space<vmem>>, vector<1x8x8x16xf32>
    tpu.vector_store %arg7[%c0_125, %c0_126, %c0_127, %c0_128], %166 {strides = array<i32>} : memref<1x8x8x16xf32, #tpu.memory_space<vmem>>, vector<1x8x8x16xf32>,
    return
  }
  func.func @transform_0(%arg0: i32, %arg1: i32) -> (i32, i32, i32, i32) {
    %c0_i32 = arith.constant 0 : i32
    %c0_i32_0 = arith.constant 0 : i32
    %c0_i32_1 = arith.constant 0 : i32
    %c0_i32_2 = arith.constant 0 : i32
    return %arg0, %c0_i32, %c0_i32_0, %c0_i32_1 : i32, i32, i32, i32
  }
  func.func @transform_1(%arg0: i32, %arg1: i32) -> (i32, i32, i32, i32) {
    %c0_i32 = arith.constant 0 : i32
    %c0_i32_0 = arith.constant 0 : i32
    %c0_i32_1 = arith.constant 0 : i32
    %c0_i32_2 = arith.constant 0 : i32
    return %arg0, %c0_i32, %c0_i32_0, %c0_i32_1 : i32, i32, i32, i32
  }
  func.func @transform_2(%arg0: i32, %arg1: i32) -> (i32, i32) {
    %c0_i32 = arith.constant 0 : i32
    %c0_i32_0 = arith.constant 0 : i32
    %c0_i32_1 = arith.constant 0 : i32
    return %c0_i32, %c0_i32_0 : i32, i32
  }
  func.func @transform_3(%arg0: i32, %arg1: i32) -> (i32, i32) {
    %c0_i32 = arith.constant 0 : i32
    %c0_i32_0 = arith.constant 0 : i32
    %c0_i32_1 = arith.constant 0 : i32
    return %c0_i32, %c0_i32_0 : i32, i32
  }
  func.func @transform_4(%arg0: i32, %arg1: i32) -> (i32, i32) {
    %c0_i32 = arith.constant 0 : i32
    %c0_i32_0 = arith.constant 0 : i32
    %c0_i32_1 = arith.constant 0 : i32
    return %c0_i32, %c0_i32_0 : i32, i32
  }
  func.func @transform_5(%arg0: i32, %arg1: i32) -> (i32, i32, i32, i32) {
    %c0_i32 = arith.constant 0 : i32
    %c0_i32_0 = arith.constant 0 : i32
    %c0_i32_1 = arith.constant 0 : i32
    return %arg0, %arg1, %c0_i32, %c0_i32_0 : i32, i32, i32, i32
  }
}

</mosaic_0001>

<llo_original>
// kernel: tpu_custom_call.1
$region0: #{tpu_custom_call.1}
  #allocation0 [shape = 'u32[]', space=smem, size = 0x4, offset = 0x4, fixed_abs, tag = 'smem constant byte address 0x4 - core index']
  #allocation1 [shape = 'u32[144,128]{1,0:T(1,128)}', space=vmem, size = 0x12000, scoped, tag = 'internal scratch']
  %s0 = inlined_call_operand.vmem [shape: f32[2,18,9,3], index: 0, kind: input, shape index: {}]
  %s1 = inlined_call_operand.vmem [shape: f32[2,18,9,3], index: 1, kind: input, shape index: {}]
  %s2 = inlined_call_operand.vmem [shape: f32[27,16], index: 2, kind: input, shape index: {}]
  %s3 = inlined_call_operand.vmem [shape: f32[1,16], index: 3, kind: input, shape index: {}]
  %s4 = inlined_call_operand.vmem [shape: f32[1,16], index: 4, kind: input, shape index: {}]
  %s5 = inlined_call_operand.hbm [shape: f32[2,8,8,16], index: 5, kind: output, shape index: {}]
  %s6 = sld [smem:[#allocation0]]
  $region53: #{tpu_custom_call.1} parent=0
    _
  %s8 = ssub.s32 1, %s6
  %s9 = scalar_select 0, %s8, %s6
  $region1: #{tpu_custom_call.1} parent=0
    #allocation2 [shape = 'u8[65536]{0}', space=vmem, size = 0x10000, scoped, tag = 'output window, operand 0']
    #allocation3 [shape = 's32[2]{0}', space=sflag, size = 0x8, scoped, tag = 'scoped memory for tpu_custom_call.1']
    %10 = vsyncpa [#allocation3], 0
    %s11 = scalar_lea.sflag [#allocation3], 1
    %12 = vsyncpa %s11, 0
    loop: start=0, step=1, limit=4
    $region2: #{tpu_custom_call.1} parent=1 // loop_pre_header
      _
    $region3: #{tpu_custom_call.1} parent=1 // loop_header
      %s14 = sphi 0, %s18
      %p15 = scmp.ge.s32.totalorder %s14, 4
      %s21 = sphi 0, %s33
      %s22 = sphi 0, %s29
      %s23 = sphi 0, %s21
      %s24 = sphi 0, %s22
      %s25 = sphi 0, %s23
      %s26 = sphi 0, %s24
      %s36 = sphi 0, %s38
      %s39 = sphi 0, %s36
      %s40 = sphi 0, %s39
      %s56 = sphi 0, %s40
      %s62 = sphi 0, %s64
      %s65 = sphi 0, %s62
      %s66 = sphi 0, %s65
      %s82 = sphi 0, %s66
      %s86 = sphi 0, %s86
      %s88 = sphi 0, %s86
      %s89 = sphi 0, %s88
      %s103 = sphi 0, %s89
      %s107 = sphi 0, %s107
      %s109 = sphi 0, %s107
      %s110 = sphi 0, %s109
      %s124 = sphi 0, %s110
      %s128 = sphi 0, %s128
      %s130 = sphi 0, %s128
      %s131 = sphi 0, %s130
      %s145 = sphi 0, %s131
      %s153 = sphi 0, %s155
      %s156 = sphi 0, %s153
      %s157 = sphi 0, %s156
      %s173 = sphi 0, %s157
    $region4: #{tpu_custom_call.1} parent=1 // loop_header_branch
      %17 = sbr.rel (%p15) target = $region8
    $region5: #{tpu_custom_call.1} parent=1 // loop_body
      %s19 = ssub.s32 %s14, 1
      %s20 = ssub.s32 %s14, 2
      %s27 = sadd.s32 1, %s22
      %p28 = scmp.ge.s32.totalorder %s27, 1
      %s29 = scalar_select %p28, 0, %s27
      %s30 = sadd.s32 1, %s21
      %s31 = scalar_select %p28, %s30, %s21
      %p32 = scmp.ge.s32.totalorder %s31, 2
      %s33 = scalar_select %p32, 0, %s31
      %s34 = ssub.s32 %s21, %s33
      %p35 = scmp.eq.s32.totalorder %s34, 0
      %s37 = sadd.s32 %s36, 1
      %s38 = scalar_select %p35, %s36, %s37
      %p41 = pneg %p35
      %p42 = scmp.eq.s32.totalorder %s14, 1
      %p43 = por %p41, %p42
      %p44 = scmp.ne.s32.totalorder %s36, %s39
      %p45 = scmp.eq.s32.totalorder %s14, 0
      %p46 = por %p44, %p45
      %p47 = scmp.ne.s32.totalorder %s36, %s39
      %p48 = scmp.eq.s32.totalorder %s19, 1
      %p49 = por %p47, %p48
      %p50 = scmp.ne.s32.totalorder %s39, %s40
      %p51 = scmp.eq.s32.totalorder %s19, 0
      %p52 = por %p50, %p51
      %p53 = scmp.ne.s32.totalorder %s39, %s40
      %p54 = scmp.eq.s32.totalorder %s20, 1
      %p55 = por %p53, %p54
      %p57 = scmp.ne.s32.totalorder %s40, %s56
      %p58 = scmp.eq.s32.totalorder %s20, 0
      %p59 = por %p57, %p58
      %s60 = ssub.s32 %s21, %s33
      %p61 = scmp.eq.s32.totalorder %s60, 0
      %s63 = sadd.s32 %s62, 1
      %s64 = scalar_select %p61, %s62, %s63
      %p67 = pneg %p61
      %p68 = scmp.eq.s32.totalorder %s14, 1
      %p69 = por %p67, %p68
      %p70 = scmp.ne.s32.totalorder %s62, %s65
      %p71 = scmp.eq.s32.totalorder %s14, 0
      %p72 = por %p70, %p71
      %p73 = scmp.ne.s32.totalorder %s62, %s65
      %p74 = scmp.eq.s32.totalorder %s19, 1
      %p75 = por %p73, %p74
      %p76 = scmp.ne.s32.totalorder %s65, %s66
      %p77 = scmp.eq.s32.totalorder %s19, 0
      %p78 = por %p76, %p77
      %p79 = scmp.ne.s32.totalorder %s65, %s66
      %p80 = scmp.eq.s32.totalorder %s20, 1
      %p81 = por %p79, %p80
      %p83 = scmp.ne.s32.totalorder %s66, %s82
      %p84 = scmp.eq.s32.totalorder %s20, 0
      %p85 = por %p83, %p84
      %s87 = sadd.s32 %s86, 1
      %p90 = scmp.eq.s32.totalorder %s14, 1
      %p91 = scmp.ne.s32.totalorder %s86, %s88
      %p92 = scmp.eq.s32.totalorder %s14, 0
      %p93 = por %p91, %p92
      %p94 = scmp.ne.s32.totalorder %s86, %s88
      %p95 = scmp.eq.s32.totalorder %s19, 1
      %p96 = por %p94, %p95
      %p97 = scmp.ne.s32.totalorder %s88, %s89
      %p98 = scmp.eq.s32.totalorder %s19, 0
      %p99 = por %p97, %p98
      %p100 = scmp.ne.s32.totalorder %s88, %s89
      %p101 = scmp.eq.s32.totalorder %s20, 1
      %p102 = por %p100, %p101
      %p104 = scmp.ne.s32.totalorder %s89, %s103
      %p105 = scmp.eq.s32.totalorder %s20, 0
      %p106 = por %p104, %p105
      %s108 = sadd.s32 %s107, 1
      %p111 = scmp.eq.s32.totalorder %s14, 1
      %p112 = scmp.ne.s32.totalorder %s107, %s109
      %p113 = scmp.eq.s32.totalorder %s14, 0
      %p114 = por %p112, %p113
      %p115 = scmp.ne.s32.totalorder %s107, %s109
      %p116 = scmp.eq.s32.totalorder %s19, 1
      %p117 = por %p115, %p116
      %p118 = scmp.ne.s32.totalorder %s109, %s110
      %p119 = scmp.eq.s32.totalorder %s19, 0
      %p120 = por %p118, %p119
      %p121 = scmp.ne.s32.totalorder %s109, %s110
      %p122 = scmp.eq.s32.totalorder %s20, 1
      %p123 = por %p121, %p122
      %p125 = scmp.ne.s32.totalorder %s110, %s124
      %p126 = scmp.eq.s32.totalorder %s20, 0
      %p127 = por %p125, %p126
      %s129 = sadd.s32 %s128, 1
      %p132 = scmp.eq.s32.totalorder %s14, 1
      %p133 = scmp.ne.s32.totalorder %s128, %s130
      %p134 = scmp.eq.s32.totalorder %s14, 0
      %p135 = por %p133, %p134
      %p136 = scmp.ne.s32.totalorder %s128, %s130
      %p137 = scmp.eq.s32.totalorder %s19, 1
      %p138 = por %p136, %p137
      %p139 = scmp.ne.s32.totalorder %s130, %s131
      %p140 = scmp.eq.s32.totalorder %s19, 0
      %p141 = por %p139, %p140
      %p142 = scmp.ne.s32.totalorder %s130, %s131
      %p143 = scmp.eq.s32.totalorder %s20, 1
      %p144 = por %p142, %p143
      %p146 = scmp.ne.s32.totalorder %s131, %s145
      %p147 = scmp.eq.s32.totalorder %s20, 0
      %p148 = por %p146, %p147
      %s149 = ssub.s32 %s21, %s33
      %s150 = ssub.s32 %s22, %s29
      %s151 = sor.u32 %s149, %s150
      %p152 = scmp.eq.s32.totalorder %s151, 0
      %s154 = sadd.s32 %s153, 1
      %s155 = scalar_select %p152, %s153, %s154
      %p158 = pneg %p152
      %p159 = scmp.eq.s32.totalorder %s14, 1
      %p160 = por %p158, %p159
      %p161 = scmp.ne.s32.totalorder %s153, %s156
      %p162 = scmp.eq.s32.totalorder %s14, 0
      %p163 = por %p161, %p162
      %p164 = scmp.ne.s32.totalorder %s153, %s156
      %p165 = scmp.eq.s32.totalorder %s19, 1
      %p166 = por %p164, %p165
      %p167 = scmp.ne.s32.totalorder %s156, %s157
      %p168 = scmp.eq.s32.totalorder %s19, 0
      %p169 = por %p167, %p168
      %p170 = scmp.ne.s32.totalorder %s156, %s157
      %p171 = scmp.eq.s32.totalorder %s20, 1
      %p172 = por %p170, %p171
      %p174 = scmp.ne.s32.totalorder %s157, %s173
      %p175 = scmp.eq.s32.totalorder %s20, 0
      %p176 = por %p174, %p175
      %p177 = scmp.le.s32.totalorder 1, %s14
      %p178 = scmp.lt.s32.totalorder %s14, 3
      %p179 = pnand %p177, %p178
      %p180 = pneg %p179
      // Predicated region
      $region9: #{tpu_custom_call.1} parent=5 // pred_check
        _
      $region10: #{tpu_custom_call.1} parent=5 // pred_check_branch
        %182 = sbr.rel (%p179) target = $region12
      $region11: #{tpu_custom_call.1} parent=5 // pred_region
        %s183 = ssub.s32 %s14, 1
        // Predicated region
        $region13: #{tpu_custom_call.1} parent=11 // pred_check
          %p184 = pneg %p99
        $region14: #{tpu_custom_call.1} parent=11 // pred_check_branch
          %186 = sbr.rel (%p184) target = $region16
        $region15: #{tpu_custom_call.1} parent=11 // pred_region
          _
        $region16: #{tpu_custom_call.1} parent=11 // pred_fallthru
          _
        // Predicated region
        $region17: #{tpu_custom_call.1} parent=11 // pred_check
          %p187 = pneg %p120
        $region18: #{tpu_custom_call.1} parent=11 // pred_check_branch
          %189 = sbr.rel (%p187) target = $region20
        $region19: #{tpu_custom_call.1} parent=11 // pred_region
          _
        $region20: #{tpu_custom_call.1} parent=11 // pred_fallthru
          _
        // Predicated region
        $region21: #{tpu_custom_call.1} parent=11 // pred_check
          %p190 = pneg %p141
        $region22: #{tpu_custom_call.1} parent=11 // pred_check_branch
          %192 = sbr.rel (%p190) target = $region24
        $region23: #{tpu_custom_call.1} parent=11 // pred_region
          _
        $region24: #{tpu_custom_call.1} parent=11 // pred_fallthru
          _
      $region12: #{tpu_custom_call.1} parent=5 // pred_fallthru
        _
      %p193 = scmp.lt.s32.totalorder %s14, 2
      // Predicated region
      $region25: #{tpu_custom_call.1} parent=5 // pred_check
        %p194 = pneg %p193
      $region26: #{tpu_custom_call.1} parent=5 // pred_check_branch
        %196 = sbr.rel (%p194) target = $region28
      $region27: #{tpu_custom_call.1} parent=5 // pred_region
        // Predicated region
        $region29: #{tpu_custom_call.1} parent=27 // pred_check
          %p197 = pneg %p46
        $region30: #{tpu_custom_call.1} parent=27 // pred_check_branch
          %199 = sbr.rel (%p197) target = $region32
        $region31: #{tpu_custom_call.1} parent=27 // pred_region
          %p200 = scmp.lt.s32.totalorder %s21, 1
          %s201 = scalar_select %p200, %s21, 1
          %s202 = smul.addr %s201, 36
          %s203 = smul.addr %s202, 8
          %s204 = scalar_lea.vmem %s0, %s203
        $region32: #{tpu_custom_call.1} parent=27 // pred_fallthru
          _
        // Predicated region
        $region33: #{tpu_custom_call.1} parent=27 // pred_check
          %p205 = pneg %p72
        $region34: #{tpu_custom_call.1} parent=27 // pred_check_branch
          %207 = sbr.rel (%p205) target = $region36
        $region35: #{tpu_custom_call.1} parent=27 // pred_region
          %p208 = scmp.lt.s32.totalorder %s21, 1
          %s209 = scalar_select %p208, %s21, 1
          %s210 = smul.addr %s209, 36
          %s211 = smul.addr %s210, 8
          %s212 = scalar_lea.vmem %s1, %s211
        $region36: #{tpu_custom_call.1} parent=27 // pred_fallthru
          _
      $region28: #{tpu_custom_call.1} parent=5 // pred_fallthru
        _
      %p213 = scmp.le.s32.totalorder 1, %s14
      %p214 = scmp.lt.s32.totalorder %s14, 3
      %p215 = pnand %p213, %p214
      %p216 = pneg %p215
      // Predicated region
      $region37: #{tpu_custom_call.1} parent=5 // pred_check
        _
      $region38: #{tpu_custom_call.1} parent=5 // pred_check_branch
        %218 = sbr.rel (%p215) target = $region40
      $region39: #{tpu_custom_call.1} parent=5 // pred_region
        %s219 = ssub.s32 %s14, 1
        %p220 = scmp.lt.s32.totalorder %s23, 1
        %s221 = scalar_select %p220, %s23, 1
        %s222 = smul.addr %s221, 36
        %s223 = smul.addr %s222, 8
        %s224 = scalar_lea.vmem %s0, %s223
        %p225 = pneg %p52
        %p226 = pneg %p49
        %p227 = scmp.lt.s32.totalorder %s23, 1
        %s228 = scalar_select %p227, %s23, 1
        %s229 = smul.addr %s228, 36
        %s230 = smul.addr %s229, 8
        %s231 = scalar_lea.vmem %s1, %s230
        %p232 = pneg %p78
        %p233 = pneg %p75
        %p234 = pneg %p99
        %p235 = pneg %p96
        %p236 = pneg %p120
        %p237 = pneg %p117
        %p238 = pneg %p141
        %p239 = pneg %p138
        %p240 = pneg %p169
        %p241 = pneg %p166
        %s242 = sand.u32 %s156, 1
        %s243 = scalar_lea.sflag [#allocation3], %s242
        %s244 = sand.u32 %s156, 1
        %s245 = smul.addr %s244, 64
        %s246 = scalar_lea.vmem [#allocation2], %s245
        %p247 = scmp.lt.s32.totalorder %s23, 1
        %s248 = scalar_select %p247, %s23, 1
        %s249 = smul.addr %s248, 36
        %s250 = smul.addr %s249, 8
        %s251 = scalar_lea.vmem %s0, %s250
        %p252 = scmp.lt.s32.totalorder %s23, 1
        %s253 = scalar_select %p252, %s23, 1
        %s254 = smul.addr %s253, 36
        %s255 = smul.addr %s254, 8
        %s256 = scalar_lea.vmem %s1, %s255
        %s257 = smul.u32 8, %s24
        %s258 = smul.u32 %s24, 16
        %s259 = smul.u32 %s258, 16
        %s260 = scalar_lea.vmem %s251, %s259
        %v261 = vld [vmem:[%s260] sm:$0xff]
        %v262 = vld [vmem:[%s260 + $0x10] sm:$0xff]
        %v263 = vld [vmem:[%s260 + $0x20] sm:$0xff]
        %v264 = vld [vmem:[%s260 + $0x30] sm:$0xff]
        %v265 = vld [vmem:[%s260 + $0x40] sm:$0xff]
        %v266 = vld [vmem:[%s260 + $0x50] sm:$0xff]
        %v267 = vld [vmem:[%s260 + $0x60] sm:$0xff]
        %v268 = vld [vmem:[%s260 + $0x70] sm:$0xff]
        %v269 = vld [vmem:[%s260 + $0x80] sm:$0xff]
        %v270 = vld [vmem:[%s260 + $0x90] sm:$0xff]
        %v271 = vld [vmem:[%s260 + $0xa0] sm:$0xff]
        %v272 = vld [vmem:[%s260 + $0xb0] sm:$0xff]
        %v273 = vld [vmem:[%s260 + $0xc0] sm:$0xff]
        %v274 = vld [vmem:[%s260 + $0xd0] sm:$0xff]
        %v275 = vld [vmem:[%s260 + $0xe0] sm:$0xff]
        %v276 = vld [vmem:[%s260 + $0xf0] sm:$0xff]
        %v277 = vld [vmem:[%s2] sm:$0x7]
        %s278 = scalar_lea.vmem %s256, %s259
        %v279 = vld [vmem:[%s278] sm:$0xff]
        %v280 = vld [vmem:[%s278 + $0x10] sm:$0xff]
        %v281 = vld [vmem:[%s278 + $0x20] sm:$0xff]
        %v282 = vld [vmem:[%s278 + $0x30] sm:$0xff]
        %v283 = vld [vmem:[%s278 + $0x40] sm:$0xff]
        %v284 = vld [vmem:[%s278 + $0x50] sm:$0xff]
        %v285 = vld [vmem:[%s278 + $0x60] sm:$0xff]
        %v286 = vld [vmem:[%s278 + $0x70] sm:$0xff]
        %v287 = vld [vmem:[%s278 + $0x80] sm:$0xff]
        %v288 = vld [vmem:[%s278 + $0x90] sm:$0xff]
        %v289 = vld [vmem:[%s278 + $0xa0] sm:$0xff]
        %v290 = vld [vmem:[%s278 + $0xb0] sm:$0xff]
        %v291 = vld [vmem:[%s278 + $0xc0] sm:$0xff]
        %v292 = vld [vmem:[%s278 + $0xd0] sm:$0xff]
        %v293 = vld [vmem:[%s278 + $0xe0] sm:$0xff]
        %v294 = vld [vmem:[%s278 + $0xf0] sm:$0xff]
        %v295 = vld [vmem:[%s2 + $0x3] sm:$0x7]
        %vm296 = vcmask 23552
        %v298 = vsel %vm296, %v279, 0
        %v301 = vsel %vm296, %v280, 0
        %v304 = vsel %vm296, %v281, 0
        %v307 = vsel %vm296, %v282, 0
        %v310 = vsel %vm296, %v283, 0
        %v313 = vsel %vm296, %v284, 0
        %v316 = vsel %vm296, %v285, 0
        %v319 = vsel %vm296, %v286, 0
        %v322 = vsel %vm296, %v287, 0
        %v325 = vsel %vm296, %v288, 0
        %v328 = vsel %vm296, %v289, 0
        %v331 = vsel %vm296, %v290, 0
        %v334 = vsel %vm296, %v291, 0
        %v337 = vsel %vm296, %v292, 0
        %v340 = vsel %vm296, %v293, 0
        %v343 = vsel %vm296, %v294, 0
        %vm345 = vcmask 1042432
        %v347 = vsel %vm345, %v295, 0
        %349 = vmatprep.subr.mxu0 0.0
        %350 = vmatpush1.msra.mxu0 %v347
        %351 = vmatprep.subr.mxu0 0.0
        %352 = vmatpush1.msra.mxu0 0.0
        %353 = vmatprep.subr.mxu0 0.0
        %354 = vmatpush1.msra.mxu0 0.0
        %355 = vmatprep.subr.mxu0 0.0
        %356 = vmatpush1.msra.mxu0 0.0
        %357 = vmatprep.subr.mxu0 0.0
        %358 = vmatpush1.msra.mxu0 0.0
        %359 = vmatprep.subr.mxu0 0.0
        %360 = vmatpush1.msra.mxu0 0.0
        %361 = vmatprep.subr.mxu0 0.0
        %362 = vmatpush1.msra.mxu0 0.0
        %363 = vmatprep.subr.mxu0 0.0
        %364 = vmatpush1.msra.mxu0 0.0
        %365 = vmatprep.subr.mxu0 0.0
        %366 = vmatpush1.msra.mxu0 0.0
        %367 = vmatprep.subr.mxu0 0.0
        %368 = vmatpush1.msra.mxu0 0.0
        %369 = vmatprep.subr.mxu0 0.0
        %370 = vmatpush1.msra.mxu0 0.0
        %371 = vmatprep.subr.mxu0 0.0
        %372 = vmatpush1.msra.mxu0 0.0
        %373 = vmatprep.subr.mxu0 0.0
        %374 = vmatpush1.msra.mxu0 0.0
        %375 = vmatprep.subr.mxu0 0.0
        %376 = vmatpush1.msra.mxu0 0.0
        %377 = vmatprep.subr.mxu0 0.0
        %378 = vmatpush1.msra.mxu0 0.0
        %379 = vmatprep.subr.mxu0 0.0
        %380 = vmatpush1.msra.mxu0 0.0
        %381 = vmatprep.subr.mxu0 0.0
        %382 = vmatpush1.msra.mxu0 0.0
        %383 = vmatprep.subr.mxu0 0.0
        %384 = vmatpush1.msra.mxu0 0.0
        %385 = vmatprep.subr.mxu0 0.0
        %386 = vmatpush1.msra.mxu0 0.0
        %387 = vmatprep.subr.mxu0 0.0
        %388 = vmatpush1.msra.mxu0 0.0
        %389 = vmatprep.subr.mxu0 0.0
        %390 = vmatpush1.msra.mxu0 0.0
        %391 = vmatprep.subr.mxu0 0.0
        %392 = vmatpush1.msra.mxu0 0.0
        %393 = vmatprep.subr.mxu0 0.0
        %394 = vmatpush1.msra.mxu0 0.0
        %395 = vmatprep.subr.mxu0 0.0
        %396 = vmatpush1.msra.mxu0 0.0
        %397 = vmatprep.subr.mxu0 0.0
        %398 = vmatpush1.msra.mxu0 0.0
        %399 = vmatprep.subr.mxu0 0.0
        %400 = vmatpush1.msra.mxu0 0.0
        %401 = vmatprep.subr.mxu0 0.0
        %402 = vmatpush1.msra.mxu0 0.0
        %403 = vmatprep.subr.mxu0 0.0
        %404 = vmatpush1.msra.mxu0 0.0
        %405 = vmatprep.subr.mxu0 0.0
        %406 = vmatpush1.msra.mxu0 0.0
        %407 = vmatprep.subr.mxu0 0.0
        %408 = vmatpush1.msra.mxu0 0.0
        %409 = vmatprep.subr.mxu0 0.0
        %410 = vmatpush1.msra.mxu0 0.0
        %411 = vmatprep.subr.mxu0 0.0
        %412 = vmatpush1.msra.mxu0 0.0
        %413 = vmatprep.mubr.f32.mxu0 0.0
        %414 = vmatmul.mubr.f32.gmra.mrb[0].mxu0 %v298
        %v415 = vpop.f32.mrb[0].mxu0
        %v416 = vadd.f32 0.0, %v415
        %v417 = vpop.f32.mrb[0].mxu0
        %418 = vmatprep.mubr.f32.mxu0 0.0
        %419 = vmatmul.mubr.f32.gmra.mrb[0].mxu0 %v301
        %v420 = vpop.f32.mrb[0].mxu0
        %v421 = vadd.f32 0.0, %v420
        %v422 = vpop.f32.mrb[0].mxu0
        %423 = vmatprep.mubr.f32.mxu0 0.0
        %424 = vmatmul.mubr.f32.gmra.mrb[0].mxu0 %v304
        %v425 = vpop.f32.mrb[0].mxu0
        %v426 = vadd.f32 0.0, %v425
        %v427 = vpop.f32.mrb[0].mxu0
        %428 = vmatprep.mubr.f32.mxu0 0.0
        %429 = vmatmul.mubr.f32.gmra.mrb[0].mxu0 %v307
        %v430 = vpop.f32.mrb[0].mxu0
        %v431 = vadd.f32 0.0, %v430
        %v432 = vpop.f32.mrb[0].mxu0
        %433 = vmatprep.mubr.f32.mxu0 0.0
        %434 = vmatmul.mubr.f32.gmra.mrb[0].mxu0 %v310
        %v435 = vpop.f32.mrb[0].mxu0
        %v436 = vadd.f32 0.0, %v435
        %v437 = vpop.f32.mrb[0].mxu0
        %438 = vmatprep.mubr.f32.mxu0 0.0
        %439 = vmatmul.mubr.f32.gmra.mrb[0].mxu0 %v313
        %v440 = vpop.f32.mrb[0].mxu0
        %v441 = vadd.f32 0.0, %v440
        %v442 = vpop.f32.mrb[0].mxu0
        %443 = vmatprep.mubr.f32.mxu0 0.0
        %444 = vmatmul.mubr.f32.gmra.mrb[0].mxu0 %v316
        %v445 = vpop.f32.mrb[0].mxu0
        %v446 = vadd.f32 0.0, %v445
        %v447 = vpop.f32.mrb[0].mxu0
        %448 = vmatprep.mubr.f32.mxu0 0.0
        %449 = vmatmul.mubr.f32.gmra.mrb[0].mxu0 %v319
        %v450 = vpop.f32.mrb[0].mxu0
        %v451 = vadd.f32 0.0, %v450
        %v452 = vpop.f32.mrb[0].mxu0
        %453 = vmatprep.mubr.f32.mxu0 0.0
        %454 = vmatmul.mubr.f32.gmra.mrb[0].mxu0 %v322
        %v455 = vpop.f32.mrb[0].mxu0
        %v456 = vadd.f32 0.0, %v455
        %v457 = vpop.f32.mrb[0].mxu0
        %458 = vmatprep.mubr.f32.mxu0 0.0
        %459 = vmatmul.mubr.f32.gmra.mrb[0].mxu0 %v325
        %v460 = vpop.f32.mrb[0].mxu0
        %v461 = vadd.f32 0.0, %v460
        %v462 = vpop.f32.mrb[0].mxu0
        %463 = vmatprep.mubr.f32.mxu0 0.0
        %464 = vmatmul.mubr.f32.gmra.mrb[0].mxu0 %v328
        %v465 = vpop.f32.mrb[0].mxu0
        %v466 = vadd.f32 0.0, %v465
        %v467 = vpop.f32.mrb[0].mxu0
        %468 = vmatprep.mubr.f32.mxu0 0.0
        %469 = vmatmul.mubr.f32.gmra.mrb[0].mxu0 %v331
        %v470 = vpop.f32.mrb[0].mxu0
        %v471 = vadd.f32 0.0, %v470
        %v472 = vpop.f32.mrb[0].mxu0
        %473 = vmatprep.mubr.f32.mxu0 0.0
        %474 = vmatmul.mubr.f32.gmra.mrb[0].mxu0 %v334
        %v475 = vpop.f32.mrb[0].mxu0
        %v476 = vadd.f32 0.0, %v475
        %v477 = vpop.f32.mrb[0].mxu0
        %478 = vmatprep.mubr.f32.mxu0 0.0
        %479 = vmatmul.mubr.f32.gmra.mrb[0].mxu0 %v337
        %v480 = vpop.f32.mrb[0].mxu0
        %v481 = vadd.f32 0.0, %v480
        %v482 = vpop.f32.mrb[0].mxu0
        %483 = vmatprep.mubr.f32.mxu0 0.0
        %484 = vmatmul.mubr.f32.gmra.mrb[0].mxu0 %v340
        %v485 = vpop.f32.mrb[0].mxu0
        %v486 = vadd.f32 0.0, %v485
        %v487 = vpop.f32.mrb[0].mxu0
        %488 = vmatprep.mubr.f32.mxu0 0.0
        %489 = vmatmul.mubr.f32.gmra.mrb[0].mxu0 %v343
        %v490 = vpop.f32.mrb[0].mxu0
        %v491 = vadd.f32 0.0, %v490
        %v492 = vpop.f32.mrb[0].mxu0
        %493 = vdwg.mxu0
        %v495 = vsel %vm296, %v261, 0
        %v498 = vsel %vm296, %v262, 0
        %v501 = vsel %vm296, %v263, 0
        %v504 = vsel %vm296, %v264, 0
        %v507 = vsel %vm296, %v265, 0
        %v510 = vsel %vm296, %v266, 0
        %v513 = vsel %vm296, %v267, 0
        %v516 = vsel %vm296, %v268, 0
        %v519 = vsel %vm296, %v269, 0
        %v522 = vsel %vm296, %v270, 0
        %v525 = vsel %vm296, %v271, 0
        %v528 = vsel %vm296, %v272, 0
        %v531 = vsel %vm296, %v273, 0
        %v534 = vsel %vm296, %v274, 0
        %v537 = vsel %vm296, %v275, 0
        %v540 = vsel %vm296, %v276, 0
        %v543 = vsel %vm345, %v277, 0
        %545 = vmatprep.subr.mxu0 0.0
        %546 = vmatpush1.msra.mxu0 %v543
        %547 = vmatprep.subr.mxu0 0.0
        %548 = vmatpush1.msra.mxu0 0.0
        %549 = vmatprep.subr.mxu0 0.0
        %550 = vmatpush1.msra.mxu0 0.0
        %551 = vmatprep.subr.mxu0 0.0
        %552 = vmatpush1.msra.mxu0 0.0
        %553 = vmatprep.subr.mxu0 0.0
        %554 = vmatpush1.msra.mxu0 0.0
        %555 = vmatprep.subr.mxu0 0.0
        %556 = vmatpush1.msra.mxu0 0.0
        %557 = vmatprep.subr.mxu0 0.0
        %558 = vmatpush1.msra.mxu0 0.0
        %559 = vmatprep.subr.mxu0 0.0
        %560 = vmatpush1.msra.mxu0 0.0
        %561 = vmatprep.subr.mxu0 0.0
        %562 = vmatpush1.msra.mxu0 0.0
        %563 = vmatprep.subr.mxu0 0.0
        %564 = vmatpush1.msra.mxu0 0.0
        %565 = vmatprep.subr.mxu0 0.0
        %566 = vmatpush1.msra.mxu0 0.0
        %567 = vmatprep.subr.mxu0 0.0
        %568 = vmatpush1.msra.mxu0 0.0
        %569 = vmatprep.subr.mxu0 0.0
        %570 = vmatpush1.msra.mxu0 0.0
        %571 = vmatprep.subr.mxu0 0.0
        %572 = vmatpush1.msra.mxu0 0.0
        %573 = vmatprep.subr.mxu0 0.0
        %574 = vmatpush1.msra.mxu0 0.0
        %575 = vmatprep.subr.mxu0 0.0
        %576 = vmatpush1.msra.mxu0 0.0
        %577 = vmatprep.subr.mxu0 0.0
        %578 = vmatpush1.msra.mxu0 0.0
        %579 = vmatprep.subr.mxu0 0.0
        %580 = vmatpush1.msra.mxu0 0.0
        %581 = vmatprep.subr.mxu0 0.0
        %582 = vmatpush1.msra.mxu0 0.0
        %583 = vmatprep.subr.mxu0 0.0
        %584 = vmatpush1.msra.mxu0 0.0
        %585 = vmatprep.subr.mxu0 0.0
        %586 = vmatpush1.msra.mxu0 0.0
        %587 = vmatprep.subr.mxu0 0.0
        %588 = vmatpush1.msra.mxu0 0.0
        %589 = vmatprep.subr.mxu0 0.0
        %590 = vmatpush1.msra.mxu0 0.0
        %591 = vmatprep.subr.mxu0 0.0
        %592 = vmatpush1.msra.mxu0 0.0
        %593 = vmatprep.subr.mxu0 0.0
        %594 = vmatpush1.msra.mxu0 0.0
        %595 = vmatprep.subr.mxu0 0.0
        %596 = vmatpush1.msra.mxu0 0.0
        %597 = vmatprep.subr.mxu0 0.0
        %598 = vmatpush1.msra.mxu0 0.0
        %599 = vmatprep.subr.mxu0 0.0
        %600 = vmatpush1.msra.mxu0 0.0
        %601 = vmatprep.subr.mxu0 0.0
        %602 = vmatpush1.msra.mxu0 0.0
        %603 = vmatprep.subr.mxu0 0.0
        %604 = vmatpush1.msra.mxu0 0.0
        %605 = vmatprep.subr.mxu0 0.0
        %606 = vmatpush1.msra.mxu0 0.0
        %607 = vmatprep.subr.mxu0 0.0
        %608 = vmatpush1.msra.mxu0 0.0
        %609 = vmatprep.mubr.f32.mxu0 0.0
        %610 = vmatmul.mubr.f32.gmra.mrb[0].mxu0 %v495
        %v611 = vpop.f32.mrb[0].mxu0
        %v612 = vadd.f32 %v416, %v611
        %v613 = vpop.f32.mrb[0].mxu0
        %614 = vmatprep.mubr.f32.mxu0 0.0
        %615 = vmatmul.mubr.f32.gmra.mrb[0].mxu0 %v498
        %v616 = vpop.f32.mrb[0].mxu0
        %v617 = vadd.f32 %v421, %v616
        %v618 = vpop.f32.mrb[0].mxu0
        %619 = vmatprep.mubr.f32.mxu0 0.0
        %620 = vmatmul.mubr.f32.gmra.mrb[0].mxu0 %v501
        %v621 = vpop.f32.mrb[0].mxu0
        %v622 = vadd.f32 %v426, %v621
        %v623 = vpop.f32.mrb[0].mxu0
        %624 = vmatprep.mubr.f32.mxu0 0.0
        %625 = vmatmul.mubr.f32.gmra.mrb[0].mxu0 %v504
        %v626 = vpop.f32.mrb[0].mxu0
        %v627 = vadd.f32 %v431, %v626
        %v628 = vpop.f32.mrb[0].mxu0
        %629 = vmatprep.mubr.f32.mxu0 0.0
        %630 = vmatmul.mubr.f32.gmra.mrb[0].mxu0 %v507
        %v631 = vpop.f32.mrb[0].mxu0
        %v632 = vadd.f32 %v436, %v631
        %v633 = vpop.f32.mrb[0].mxu0
        %634 = vmatprep.mubr.f32.mxu0 0.0
        %635 = vmatmul.mubr.f32.gmra.mrb[0].mxu0 %v510
        %v636 = vpop.f32.mrb[0].mxu0
        %v637 = vadd.f32 %v441, %v636
        %v638 = vpop.f32.mrb[0].mxu0
        %639 = vmatprep.mubr.f32.mxu0 0.0
        %640 = vmatmul.mubr.f32.gmra.mrb[0].mxu0 %v513
        %v641 = vpop.f32.mrb[0].mxu0
        %v642 = vadd.f32 %v446, %v641
        %v643 = vpop.f32.mrb[0].mxu0
        %644 = vmatprep.mubr.f32.mxu0 0.0
        %645 = vmatmul.mubr.f32.gmra.mrb[0].mxu0 %v516
        %v646 = vpop.f32.mrb[0].mxu0
        %v647 = vadd.f32 %v451, %v646
        %v648 = vpop.f32.mrb[0].mxu0
        %649 = vmatprep.mubr.f32.mxu0 0.0
        %650 = vmatmul.mubr.f32.gmra.mrb[0].mxu0 %v519
        %v651 = vpop.f32.mrb[0].mxu0
        %v652 = vadd.f32 %v456, %v651
        %v653 = vpop.f32.mrb[0].mxu0
        %654 = vmatprep.mubr.f32.mxu0 0.0
        %655 = vmatmul.mubr.f32.gmra.mrb[0].mxu0 %v522
        %v656 = vpop.f32.mrb[0].mxu0
        %v657 = vadd.f32 %v461, %v656
        %v658 = vpop.f32.mrb[0].mxu0
        %659 = vmatprep.mubr.f32.mxu0 0.0
        %660 = vmatmul.mubr.f32.gmra.mrb[0].mxu0 %v525
        %v661 = vpop.f32.mrb[0].mxu0
        %v662 = vadd.f32 %v466, %v661
        %v663 = vpop.f32.mrb[0].mxu0
        %664 = vmatprep.mubr.f32.mxu0 0.0
        %665 = vmatmul.mubr.f32.gmra.mrb[0].mxu0 %v528
        %v666 = vpop.f32.mrb[0].mxu0
        %v667 = vadd.f32 %v471, %v666
        %v668 = vpop.f32.mrb[0].mxu0
        %669 = vmatprep.mubr.f32.mxu0 0.0
        %670 = vmatmul.mubr.f32.gmra.mrb[0].mxu0 %v531
        %v671 = vpop.f32.mrb[0].mxu0
        %v672 = vadd.f32 %v476, %v671
        %v673 = vpop.f32.mrb[0].mxu0
        %674 = vmatprep.mubr.f32.mxu0 0.0
        %675 = vmatmul.mubr.f32.gmra.mrb[0].mxu0 %v534
        %v676 = vpop.f32.mrb[0].mxu0
        %v677 = vadd.f32 %v481, %v676
        %v678 = vpop.f32.mrb[0].mxu0
        %679 = vmatprep.mubr.f32.mxu0 0.0
        %680 = vmatmul.mubr.f32.gmra.mrb[0].mxu0 %v537
        %v681 = vpop.f32.mrb[0].mxu0
        %v682 = vadd.f32 %v486, %v681
        %v683 = vpop.f32.mrb[0].mxu0
        %684 = vmatprep.mubr.f32.mxu0 0.0
        %685 = vmatmul.mubr.f32.gmra.mrb[0].mxu0 %v540
        %v686 = vpop.f32.mrb[0].mxu0
        %v687 = vadd.f32 %v491, %v686
        %v688 = vpop.f32.mrb[0].mxu0
        %689 = vdwg.mxu0
        %v690 = vld [vmem:[%s260 + $0x1] sm:$0xff]
        %v691 = vld [vmem:[%s260 + $0x11] sm:$0xff]
        %v692 = vld [vmem:[%s260 + $0x21] sm:$0xff]
        %v693 = vld [vmem:[%s260 + $0x31] sm:$0xff]
        %v694 = vld [vmem:[%s260 + $0x41] sm:$0xff]
        %v695 = vld [vmem:[%s260 + $0x51] sm:$0xff]
        %v696 = vld [vmem:[%s260 + $0x61] sm:$0xff]
        %v697 = vld [vmem:[%s260 + $0x71] sm:$0xff]
        %v698 = vld [vmem:[%s260 + $0x81] sm:$0xff]
        %v699 = vld [vmem:[%s260 + $0x91] sm:$0xff]
        %v700 = vld [vmem:[%s260 + $0xa1] sm:$0xff]
        %v701 = vld [vmem:[%s260 + $0xb1] sm:$0xff]
        %v702 = vld [vmem:[%s260 + $0xc1] sm:$0xff]
        %v703 = vld [vmem:[%s260 + $0xd1] sm:$0xff]
        %v704 = vld [vmem:[%s260 + $0xe1] sm:$0xff]
        %v705 = vld [vmem:[%s260 + $0xf1] sm:$0xff]
        %v706 = vld [vmem:[%s2 + $0x6] sm:$0x7]
        %v708 = vsel %vm296, %v690, 0
        %v711 = vsel %vm296, %v691, 0
        %v714 = vsel %vm296, %v692, 0
        %v717 = vsel %vm296, %v693, 0
        %v720 = vsel %vm296, %v694, 0
        %v723 = vsel %vm296, %v695, 0
        %v726 = vsel %vm296, %v696, 0
        %v729 = vsel %vm296, %v697, 0
        %v732 = vsel %vm296, %v698, 0
        %v735 = vsel %vm296, %v699, 0
        %v738 = vsel %vm296, %v700, 0
        %v741 = vsel %vm296, %v701, 0
        %v744 = vsel %vm296, %v702, 0
        %v747 = vsel %vm296, %v703, 0
        %v750 = vsel %vm296, %v704, 0
        %v753 = vsel %vm296, %v705, 0
        %v756 = vsel %vm345, %v706, 0
        %758 = vmatprep.subr.mxu0 0.0
        %759 = vmatpush1.msra.mxu0 %v756
        %760 = vmatprep.subr.mxu0 0.0
        %761 = vmatpush1.msra.mxu0 0.0
        %762 = vmatprep.subr.mxu0 0.0
        %763 = vmatpush1.msra.mxu0 0.0
        %764 = vmatprep.subr.mxu0 0.0
        %765 = vmatpush1.msra.mxu0 0.0
        %766 = vmatprep.subr.mxu0 0.0
        %767 = vmatpush1.msra.mxu0 0.0
        %768 = vmatprep.subr.mxu0 0.0
        %769 = vmatpush1.msra.mxu0 0.0
        %770 = vmatprep.subr.mxu0 0.0
        %771 = vmatpush1.msra.mxu0 0.0
        %772 = vmatprep.subr.mxu0 0.0
        %773 = vmatpush1.msra.mxu0 0.0
        %774 = vmatprep.subr.mxu0 0.0
        %775 = vmatpush1.msra.mxu0 0.0
        %776 = vmatprep.subr.mxu0 0.0
        %777 = vmatpush1.msra.mxu0 0.0
        %778 = vmatprep.subr.mxu0 0.0
        %779 = vmatpush1.msra.mxu0 0.0
        %780 = vmatprep.subr.mxu0 0.0
        %781 = vmatpush1.msra.mxu0 0.0
        %782 = vmatprep.subr.mxu0 0.0
        %783 = vmatpush1.msra.mxu0 0.0
        %784 = vmatprep.subr.mxu0 0.0
        %785 = vmatpush1.msra.mxu0 0.0
        %786 = vmatprep.subr.mxu0 0.0
        %787 = vmatpush1.msra.mxu0 0.0
        %788 = vmatprep.subr.mxu0 0.0
        %789 = vmatpush1.msra.mxu0 0.0
        %790 = vmatprep.subr.mxu0 0.0
        %791 = vmatpush1.msra.mxu0 0.0
        %792 = vmatprep.subr.mxu0 0.0
        %793 = vmatpush1.msra.mxu0 0.0
        %794 = vmatprep.subr.mxu0 0.0
        %795 = vmatpush1.msra.mxu0 0.0
        %796 = vmatprep.subr.mxu0 0.0
        %797 = vmatpush1.msra.mxu0 0.0
        %798 = vmatprep.subr.mxu0 0.0
        %799 = vmatpush1.msra.mxu0 0.0
        %800 = vmatprep.subr.mxu0 0.0
        %801 = vmatpush1.msra.mxu0 0.0
        %802 = vmatprep.subr.mxu0 0.0
        %803 = vmatpush1.msra.mxu0 0.0
        %804 = vmatprep.subr.mxu0 0.0
        %805 = vmatpush1.msra.mxu0 0.0
        %806 = vmatprep.subr.mxu0 0.0
        %807 = vmatpush1.msra.mxu0 0.0
        %808 = vmatprep.subr.mxu0 0.0
        %809 = vmatpush1.msra.mxu0 0.0
        %810 = vmatprep.subr.mxu0 0.0
        %811 = vmatpush1.msra.mxu0 0.0
        %812 = vmatprep.subr.mxu0 0.0
        %813 = vmatpush1.msra.mxu0 0.0
        %814 = vmatprep.subr.mxu0 0.0
        %815 = vmatpush1.msra.mxu0 0.0
        %816 = vmatprep.subr.mxu0 0.0
        %817 = vmatpush1.msra.mxu0 0.0
        %818 = vmatprep.subr.mxu0 0.0
        %819 = vmatpush1.msra.mxu0 0.0
        %820 = vmatprep.subr.mxu0 0.0
        %821 = vmatpush1.msra.mxu0 0.0
        %822 = vmatprep.mubr.f32.mxu0 0.0
        %823 = vmatmul.mubr.f32.gmra.mrb[0].mxu0 %v708
        %v824 = vpop.f32.mrb[0].mxu0
        %v825 = vadd.f32 0.0, %v824
        %v826 = vpop.f32.mrb[0].mxu0
        %827 = vmatprep.mubr.f32.mxu0 0.0
        %828 = vmatmul.mubr.f32.gmra.mrb[0].mxu0 %v711
        %v829 = vpop.f32.mrb[0].mxu0
        %v830 = vadd.f32 0.0, %v829
        %v831 = vpop.f32.mrb[0].mxu0
        %832 = vmatprep.mubr.f32.mxu0 0.0
        %833 = vmatmul.mubr.f32.gmra.mrb[0].mxu0 %v714
        %v834 = vpop.f32.mrb[0].mxu0
        %v835 = vadd.f32 0.0, %v834
        %v836 = vpop.f32.mrb[0].mxu0
        %837 = vmatprep.mubr.f32.mxu0 0.0
        %838 = vmatmul.mubr.f32.gmra.mrb[0].mxu0 %v717
        %v839 = vpop.f32.mrb[0].mxu0
        %v840 = vadd.f32 0.0, %v839
        %v841 = vpop.f32.mrb[0].mxu0
        %842 = vmatprep.mubr.f32.mxu0 0.0
        %843 = vmatmul.mubr.f32.gmra.mrb[0].mxu0 %v720
        %v844 = vpop.f32.mrb[0].mxu0
        %v845 = vadd.f32 0.0, %v844
        %v846 = vpop.f32.mrb[0].mxu0
        %847 = vmatprep.mubr.f32.mxu0 0.0
        %848 = vmatmul.mubr.f32.gmra.mrb[0].mxu0 %v723
        %v849 = vpop.f32.mrb[0].mxu0
        %v850 = vadd.f32 0.0, %v849
        %v851 = vpop.f32.mrb[0].mxu0
        %852 = vmatprep.mubr.f32.mxu0 0.0
        %853 = vmatmul.mubr.f32.gmra.mrb[0].mxu0 %v726
        %v854 = vpop.f32.mrb[0].mxu0
        %v855 = vadd.f32 0.0, %v854
        %v856 = vpop.f32.mrb[0].mxu0
        %857 = vmatprep.mubr.f32.mxu0 0.0
        %858 = vmatmul.mubr.f32.gmra.mrb[0].mxu0 %v729
        %v859 = vpop.f32.mrb[0].mxu0
        %v860 = vadd.f32 0.0, %v859
        %v861 = vpop.f32.mrb[0].mxu0
        %862 = vmatprep.mubr.f32.mxu0 0.0
        %863 = vmatmul.mubr.f32.gmra.mrb[0].mxu0 %v732
        %v864 = vpop.f32.mrb[0].mxu0
        %v865 = vadd.f32 0.0, %v864
        %v866 = vpop.f32.mrb[0].mxu0
        %867 = vmatprep.mubr.f32.mxu0 0.0
        %868 = vmatmul.mubr.f32.gmra.mrb[0].mxu0 %v735
        %v869 = vpop.f32.mrb[0].mxu0
        %v870 = vadd.f32 0.0, %v869
        %v871 = vpop.f32.mrb[0].mxu0
        %872 = vmatprep.mubr.f32.mxu0 0.0
        %873 = vmatmul.mubr.f32.gmra.mrb[0].mxu0 %v738
        %v874 = vpop.f32.mrb[0].mxu0
        %v875 = vadd.f32 0.0, %v874
        %v876 = vpop.f32.mrb[0].mxu0
        %877 = vmatprep.mubr.f32.mxu0 0.0
        %878 = vmatmul.mubr.f32.gmra.mrb[0].mxu0 %v741
        %v879 = vpop.f32.mrb[0].mxu0
        %v880 = vadd.f32 0.0, %v879
        %v881 = vpop.f32.mrb[0].mxu0
        %882 = vmatprep.mubr.f32.mxu0 0.0
        %883 = vmatmul.mubr.f32.gmra.mrb[0].mxu0 %v744
        %v884 = vpop.f32.mrb[0].mxu0
        %v885 = vadd.f32 0.0, %v884
        %v886 = vpop.f32.mrb[0].mxu0
        %887 = vmatprep.mubr.f32.mxu0 0.0
        %888 = vmatmul.mubr.f32.gmra.mrb[0].mxu0 %v747
        %v889 = vpop.f32.mrb[0].mxu0
        %v890 = vadd.f32 0.0, %v889
        %v891 = vpop.f32.mrb[0].mxu0
        %892 = vmatprep.mubr.f32.mxu0 0.0
        %893 = vmatmul.mubr.f32.gmra.mrb[0].mxu0 %v750
        %v894 = vpop.f32.mrb[0].mxu0
        %v895 = vadd.f32 0.0, %v894
        %v896 = vpop.f32.mrb[0].mxu0
        %897 = vmatprep.mubr.f32.mxu0 0.0
        %898 = vmatmul.mubr.f32.gmra.mrb[0].mxu0 %v753
        %v899 = vpop.f32.mrb[0].mxu0
        %v900 = vadd.f32 0.0, %v899
        %v901 = vpop.f32.mrb[0].mxu0
        %902 = vdwg.mxu0
        %v903 = vadd.f32 %v612, %v825
        %v904 = vadd.f32 %v617, %v830
        %v905 = vadd.f32 %v622, %v835
        %v906 = vadd.f32 %v627, %v840
        %v907 = vadd.f32 %v632, %v845
        %v908 = vadd.f32 %v637, %v850
        %v909 = vadd.f32 %v642, %v855
        %v910 = vadd.f32 %v647, %v860
        %v911 = vadd.f32 %v652, %v865
        %v912 = vadd.f32 %v657, %v870
        %v913 = vadd.f32 %v662, %v875
        %v914 = vadd.f32 %v667, %v880
        %v915 = vadd.f32 %v672, %v885
        %v916 = vadd.f32 %v677, %v890
        %v917 = vadd.f32 %v682, %v895
        %v918 = vadd.f32 %v687, %v900
        %s919 = sadd.s32 %s258, 1
        %s920 = smul.u32 %s919, 16
        %s921 = scalar_lea.vmem %s251, %s920
        %v922 = vld [vmem:[%s921] sm:$0xff]
        %v923 = vld [vmem:[%s921 + $0x10] sm:$0xff]
        %v924 = vld [vmem:[%s921 + $0x20] sm:$0xff]
        %v925 = vld [vmem:[%s921 + $0x30] sm:$0xff]
        %v926 = vld [vmem:[%s921 + $0x40] sm:$0xff]
        %v927 = vld [vmem:[%s921 + $0x50] sm:$0xff]
        %v928 = vld [vmem:[%s921 + $0x60] sm:$0xff]
        %v929 = vld [vmem:[%s921 + $0x70] sm:$0xff]
        %v930 = vld [vmem:[%s921 + $0x80] sm:$0xff]
        %v931 = vld [vmem:[%s921 + $0x90] sm:$0xff]
        %v932 = vld [vmem:[%s921 + $0xa0] sm:$0xff]
        %v933 = vld [vmem:[%s921 + $0xb0] sm:$0xff]
        %v934 = vld [vmem:[%s921 + $0xc0] sm:$0xff]
        %v935 = vld [vmem:[%s921 + $0xd0] sm:$0xff]
        %v936 = vld [vmem:[%s921 + $0xe0] sm:$0xff]
        %v937 = vld [vmem:[%s921 + $0xf0] sm:$0xff]
        %v938 = vld [vmem:[%s2 + $0x9] sm:$0x7]
        %v940 = vsel %vm296, %v922, 0
        %v943 = vsel %vm296, %v923, 0
        %v946 = vsel %vm296, %v924, 0
        %v949 = vsel %vm296, %v925, 0
        %v952 = vsel %vm296, %v926, 0
        %v955 = vsel %vm296, %v927, 0
        %v958 = vsel %vm296, %v928, 0
        %v961 = vsel %vm296, %v929, 0
        %v964 = vsel %vm296, %v930, 0
        %v967 = vsel %vm296, %v931, 0
        %v970 = vsel %vm296, %v932, 0
        %v973 = vsel %vm296, %v933, 0
        %v976 = vsel %vm296, %v934, 0
        %v979 = vsel %vm296, %v935, 0
        %v982 = vsel %vm296, %v936, 0
        %v985 = vsel %vm296, %v937, 0
        %v988 = vsel %vm345, %v938, 0
        %990 = vmatprep.subr.mxu0 0.0
        %991 = vmatpush1.msra.mxu0 %v988
        %992 = vmatprep.subr.mxu0 0.0
        %993 = vmatpush1.msra.mxu0 0.0
        %994 = vmatprep.subr.mxu0 0.0
        %995 = vmatpush1.msra.mxu0 0.0
        %996 = vmatprep.subr.mxu0 0.0
        %997 = vmatpush1.msra.mxu0 0.0
        %998 = vmatprep.subr.mxu0 0.0
        %999 = vmatpush1.msra.mxu0 0.0
        %1000 = vmatprep.subr.mxu0 0.0
        %1001 = vmatpush1.msra.mxu0 0.0
        %1002 = vmatprep.subr.mxu0 0.0
        %1003 = vmatpush1.msra.mxu0 0.0
        %1004 = vmatprep.subr.mxu0 0.0
        %1005 = vmatpush1.msra.mxu0 0.0
        %1006 = vmatprep.subr.mxu0 0.0
        %1007 = vmatpush1.msra.mxu0 0.0
        %1008 = vmatprep.subr.mxu0 0.0
        %1009 = vmatpush1.msra.mxu0 0.0
        %1010 = vmatprep.subr.mxu0 0.0
        %1011 = vmatpush1.msra.mxu0 0.0
        %1012 = vmatprep.subr.mxu0 0.0
        %1013 = vmatpush1.msra.mxu0 0.0
        %1014 = vmatprep.subr.mxu0 0.0
        %1015 = vmatpush1.msra.mxu0 0.0
        %1016 = vmatprep.subr.mxu0 0.0
        %1017 = vmatpush1.msra.mxu0 0.0
        %1018 = vmatprep.subr.mxu0 0.0
        %1019 = vmatpush1.msra.mxu0 0.0
        %1020 = vmatprep.subr.mxu0 0.0
        %1021 = vmatpush1.msra.mxu0 0.0
        %1022 = vmatprep.subr.mxu0 0.0
        %1023 = vmatpush1.msra.mxu0 0.0
        %1024 = vmatprep.subr.mxu0 0.0
        %1025 = vmatpush1.msra.mxu0 0.0
        %1026 = vmatprep.subr.mxu0 0.0
        %1027 = vmatpush1.msra.mxu0 0.0
        %1028 = vmatprep.subr.mxu0 0.0
        %1029 = vmatpush1.msra.mxu0 0.0
        %1030 = vmatprep.subr.mxu0 0.0
        %1031 = vmatpush1.msra.mxu0 0.0
        %1032 = vmatprep.subr.mxu0 0.0
        %1033 = vmatpush1.msra.mxu0 0.0
        %1034 = vmatprep.subr.mxu0 0.0
        %1035 = vmatpush1.msra.mxu0 0.0
        %1036 = vmatprep.subr.mxu0 0.0
        %1037 = vmatpush1.msra.mxu0 0.0
        %1038 = vmatprep.subr.mxu0 0.0
        %1039 = vmatpush1.msra.mxu0 0.0
        %1040 = vmatprep.subr.mxu0 0.0
        %1041 = vmatpush1.msra.mxu0 0.0
        %1042 = vmatprep.subr.mxu0 0.0
        %1043 = vmatpush1.msra.mxu0 0.0
        %1044 = vmatprep.subr.mxu0 0.0
        %1045 = vmatpush1.msra.mxu0 0.0
        %1046 = vmatprep.subr.mxu0 0.0
        %1047 = vmatpush1.msra.mxu0 0.0
        %1048 = vmatprep.subr.mxu0 0.0
        %1049 = vmatpush1.msra.mxu0 0.0
        %1050 = vmatprep.subr.mxu0 0.0
        %1051 = vmatpush1.msra.mxu0 0.0
        %1052 = vmatprep.subr.mxu0 0.0
        %1053 = vmatpush1.msra.mxu0 0.0
        %1054 = vmatprep.mubr.f32.mxu0 0.0
        %1055 = vmatmul.mubr.f32.gmra.mrb[0].mxu0 %v940
        %v1056 = vpop.f32.mrb[0].mxu0
        %v1057 = vadd.f32 0.0, %v1056
        %v1058 = vpop.f32.mrb[0].mxu0
        %1059 = vmatprep.mubr.f32.mxu0 0.0
        %1060 = vmatmul.mubr.f32.gmra.mrb[0].mxu0 %v943
        %v1061 = vpop.f32.mrb[0].mxu0
        %v1062 = vadd.f32 0.0, %v1061
        %v1063 = vpop.f32.mrb[0].mxu0
        %1064 = vmatprep.mubr.f32.mxu0 0.0
        %1065 = vmatmul.mubr.f32.gmra.mrb[0].mxu0 %v946
        %v1066 = vpop.f32.mrb[0].mxu0
        %v1067 = vadd.f32 0.0, %v1066
        %v1068 = vpop.f32.mrb[0].mxu0
        %1069 = vmatprep.mubr.f32.mxu0 0.0
        %1070 = vmatmul.mubr.f32.gmra.mrb[0].mxu0 %v949
        %v1071 = vpop.f32.mrb[0].mxu0
        %v1072 = vadd.f32 0.0, %v1071
        %v1073 = vpop.f32.mrb[0].mxu0
        %1074 = vmatprep.mubr.f32.mxu0 0.0
        %1075 = vmatmul.mubr.f32.gmra.mrb[0].mxu0 %v952
        %v1076 = vpop.f32.mrb[0].mxu0
        %v1077 = vadd.f32 0.0, %v1076
        %v1078 = vpop.f32.mrb[0].mxu0
        %1079 = vmatprep.mubr.f32.mxu0 0.0
        %1080 = vmatmul.mubr.f32.gmra.mrb[0].mxu0 %v955
        %v1081 = vpop.f32.mrb[0].mxu0
        %v1082 = vadd.f32 0.0, %v1081
        %v1083 = vpop.f32.mrb[0].mxu0
        %1084 = vmatprep.mubr.f32.mxu0 0.0
        %1085 = vmatmul.mubr.f32.gmra.mrb[0].mxu0 %v958
        %v1086 = vpop.f32.mrb[0].mxu0
        %v1087 = vadd.f32 0.0, %v1086
        %v1088 = vpop.f32.mrb[0].mxu0
        %1089 = vmatprep.mubr.f32.mxu0 0.0
        %1090 = vmatmul.mubr.f32.gmra.mrb[0].mxu0 %v961
        %v1091 = vpop.f32.mrb[0].mxu0
        %v1092 = vadd.f32 0.0, %v1091
        %v1093 = vpop.f32.mrb[0].mxu0
        %1094 = vmatprep.mubr.f32.mxu0 0.0
        %1095 = vmatmul.mubr.f32.gmra.mrb[0].mxu0 %v964
        %v1096 = vpop.f32.mrb[0].mxu0
        %v1097 = vadd.f32 0.0, %v1096
        %v1098 = vpop.f32.mrb[0].mxu0
        %1099 = vmatprep.mubr.f32.mxu0 0.0
        %1100 = vmatmul.mubr.f32.gmra.mrb[0].mxu0 %v967
        %v1101 = vpop.f32.mrb[0].mxu0
        %v1102 = vadd.f32 0.0, %v1101
        %v1103 = vpop.f32.mrb[0].mxu0
        %1104 = vmatprep.mubr.f32.mxu0 0.0
        %1105 = vmatmul.mubr.f32.gmra.mrb[0].mxu0 %v970
        %v1106 = vpop.f32.mrb[0].mxu0
        %v1107 = vadd.f32 0.0, %v1106
        %v1108 = vpop.f32.mrb[0].mxu0
        %1109 = vmatprep.mubr.f32.mxu0 0.0
        %1110 = vmatmul.mubr.f32.gmra.mrb[0].mxu0 %v973
        %v1111 = vpop.f32.mrb[0].mxu0
        %v1112 = vadd.f32 0.0, %v1111
        %v1113 = vpop.f32.mrb[0].mxu0
        %1114 = vmatprep.mubr.f32.mxu0 0.0
        %1115 = vmatmul.mubr.f32.gmra.mrb[0].mxu0 %v976
        %v1116 = vpop.f32.mrb[0].mxu0
        %v1117 = vadd.f32 0.0, %v1116
        %v1118 = vpop.f32.mrb[0].mxu0
        %1119 = vmatprep.mubr.f32.mxu0 0.0
        %1120 = vmatmul.mubr.f32.gmra.mrb[0].mxu0 %v979
        %v1121 = vpop.f32.mrb[0].mxu0
        %v1122 = vadd.f32 0.0, %v1121
        %v1123 = vpop.f32.mrb[0].mxu0
        %1124 = vmatprep.mubr.f32.mxu0 0.0
        %1125 = vmatmul.mubr.f32.gmra.mrb[0].mxu0 %v982
        %v1126 = vpop.f32.mrb[0].mxu0
        %v1127 = vadd.f32 0.0, %v1126
        %v1128 = vpop.f32.mrb[0].mxu0
        %1129 = vmatprep.mubr.f32.mxu0 0.0
        %1130 = vmatmul.mubr.f32.gmra.mrb[0].mxu0 %v985
        %v1131 = vpop.f32.mrb[0].mxu0
        %v1132 = vadd.f32 0.0, %v1131
        %v1133 = vpop.f32.mrb[0].mxu0
        %1134 = vdwg.mxu0
        %v1135 = vadd.f32 %v903, %v1057
        %v1136 = vadd.f32 %v904, %v1062
        %v1137 = vadd.f32 %v905, %v1067
        %v1138 = vadd.f32 %v906, %v1072
        %v1139 = vadd.f32 %v907, %v1077
        %v1140 = vadd.f32 %v908, %v1082
        %v1141 = vadd.f32 %v909, %v1087
        %v1142 = vadd.f32 %v910, %v1092
        %v1143 = vadd.f32 %v911, %v1097
        %v1144 = vadd.f32 %v912, %v1102
        %v1145 = vadd.f32 %v913, %v1107
        %v1146 = vadd.f32 %v914, %v1112
        %v1147 = vadd.f32 %v915, %v1117
        %v1148 = vadd.f32 %v916, %v1122
        %v1149 = vadd.f32 %v917, %v1127
        %v1150 = vadd.f32 %v918, %v1132
        %s1151 = scalar_lea.vmem %s256, %s920
        %v1152 = vld [vmem:[%s1151] sm:$0xff]
        %v1153 = vld [vmem:[%s1151 + $0x10] sm:$0xff]
        %v1154 = vld [vmem:[%s1151 + $0x20] sm:$0xff]
        %v1155 = vld [vmem:[%s1151 + $0x30] sm:$0xff]
        %v1156 = vld [vmem:[%s1151 + $0x40] sm:$0xff]
        %v1157 = vld [vmem:[%s1151 + $0x50] sm:$0xff]
        %v1158 = vld [vmem:[%s1151 + $0x60] sm:$0xff]
        %v1159 = vld [vmem:[%s1151 + $0x70] sm:$0xff]
        %v1160 = vld [vmem:[%s1151 + $0x80] sm:$0xff]
        %v1161 = vld [vmem:[%s1151 + $0x90] sm:$0xff]
        %v1162 = vld [vmem:[%s1151 + $0xa0] sm:$0xff]
        %v1163 = vld [vmem:[%s1151 + $0xb0] sm:$0xff]
        %v1164 = vld [vmem:[%s1151 + $0xc0] sm:$0xff]
        %v1165 = vld [vmem:[%s1151 + $0xd0] sm:$0xff]
        %v1166 = vld [vmem:[%s1151 + $0xe0] sm:$0xff]
        %v1167 = vld [vmem:[%s1151 + $0xf0] sm:$0xff]
        %v1168 = vld [vmem:[%s2 + $0xc] sm:$0x7]
        %v1170 = vsel %vm296, %v1152, 0
        %v1173 = vsel %vm296, %v1153, 0
        %v1176 = vsel %vm296, %v1154, 0
        %v1179 = vsel %vm296, %v1155, 0
        %v1182 = vsel %vm296, %v1156, 0
        %v1185 = vsel %vm296, %v1157, 0
        %v1188 = vsel %vm296, %v1158, 0
        %v1191 = vsel %vm296, %v1159, 0
        %v1194 = vsel %vm296, %v1160, 0
        %v1197 = vsel %vm296, %v1161, 0
        %v1200 = vsel %vm296, %v1162, 0
        %v1203 = vsel %vm296, %v1163, 0
        %v1206 = vsel %vm296, %v1164, 0
        %v1209 = vsel %vm296, %v1165, 0
        %v1212 = vsel %vm296, %v1166, 0
        %v1215 = vsel %vm296, %v1167, 0
        %v1218 = vsel %vm345, %v1168, 0
        %1220 = vmatprep.subr.mxu0 0.0
        %1221 = vmatpush1.msra.mxu0 %v1218
        %1222 = vmatprep.subr.mxu0 0.0
        %1223 = vmatpush1.msra.mxu0 0.0
        %1224 = vmatprep.subr.mxu0 0.0
        %1225 = vmatpush1.msra.mxu0 0.0
        %1226 = vmatprep.subr.mxu0 0.0
        %1227 = vmatpush1.msra.mxu0 0.0
        %1228 = vmatprep.subr.mxu0 0.0
        %1229 = vmatpush1.msra.mxu0 0.0
        %1230 = vmatprep.subr.mxu0 0.0
        %1231 = vmatpush1.msra.mxu0 0.0
        %1232 = vmatprep.subr.mxu0 0.0
        %1233 = vmatpush1.msra.mxu0 0.0
        %1234 = vmatprep.subr.mxu0 0.0
        %1235 = vmatpush1.msra.mxu0 0.0
        %1236 = vmatprep.subr.mxu0 0.0
        %1237 = vmatpush1.msra.mxu0 0.0
        %1238 = vmatprep.subr.mxu0 0.0
        %1239 = vmatpush1.msra.mxu0 0.0
        %1240 = vmatprep.subr.mxu0 0.0
        %1241 = vmatpush1.msra.mxu0 0.0
        %1242 = vmatprep.subr.mxu0 0.0
        %1243 = vmatpush1.msra.mxu0 0.0
        %1244 = vmatprep.subr.mxu0 0.0
        %1245 = vmatpush1.msra.mxu0 0.0
        %1246 = vmatprep.subr.mxu0 0.0
        %1247 = vmatpush1.msra.mxu0 0.0
        %1248 = vmatprep.subr.mxu0 0.0
        %1249 = vmatpush1.msra.mxu0 0.0
        %1250 = vmatprep.subr.mxu0 0.0
        %1251 = vmatpush1.msra.mxu0 0.0
        %1252 = vmatprep.subr.mxu0 0.0
        %1253 = vmatpush1.msra.mxu0 0.0
        %1254 = vmatprep.subr.mxu0 0.0
        %1255 = vmatpush1.msra.mxu0 0.0
        %1256 = vmatprep.subr.mxu0 0.0
        %1257 = vmatpush1.msra.mxu0 0.0
        %1258 = vmatprep.subr.mxu0 0.0
        %1259 = vmatpush1.msra.mxu0 0.0
        %1260 = vmatprep.subr.mxu0 0.0
        %1261 = vmatpush1.msra.mxu0 0.0
        %1262 = vmatprep.subr.mxu0 0.0
        %1263 = vmatpush1.msra.mxu0 0.0
        %1264 = vmatprep.subr.mxu0 0.0
        %1265 = vmatpush1.msra.mxu0 0.0
        %1266 = vmatprep.subr.mxu0 0.0
        %1267 = vmatpush1.msra.mxu0 0.0
        %1268 = vmatprep.subr.mxu0 0.0
        %1269 = vmatpush1.msra.mxu0 0.0
        %1270 = vmatprep.subr.mxu0 0.0
        %1271 = vmatpush1.msra.mxu0 0.0
        %1272 = vmatprep.subr.mxu0 0.0
        %1273 = vmatpush1.msra.mxu0 0.0
        %1274 = vmatprep.subr.mxu0 0.0
        %1275 = vmatpush1.msra.mxu0 0.0
        %1276 = vmatprep.subr.mxu0 0.0
        %1277 = vmatpush1.msra.mxu0 0.0
        %1278 = vmatprep.subr.mxu0 0.0
        %1279 = vmatpush1.msra.mxu0 0.0
        %1280 = vmatprep.subr.mxu0 0.0
        %1281 = vmatpush1.msra.mxu0 0.0
        %1282 = vmatprep.subr.mxu0 0.0
        %1283 = vmatpush1.msra.mxu0 0.0
        %1284 = vmatprep.mubr.f32.mxu0 0.0
        %1285 = vmatmul.mubr.f32.gmra.mrb[0].mxu0 %v1170
        %v1286 = vpop.f32.mrb[0].mxu0
        %v1287 = vadd.f32 0.0, %v1286
        %v1288 = vpop.f32.mrb[0].mxu0
        %1289 = vmatprep.mubr.f32.mxu0 0.0
        %1290 = vmatmul.mubr.f32.gmra.mrb[0].mxu0 %v1173
        %v1291 = vpop.f32.mrb[0].mxu0
        %v1292 = vadd.f32 0.0, %v1291
        %v1293 = vpop.f32.mrb[0].mxu0
        %1294 = vmatprep.mubr.f32.mxu0 0.0
        %1295 = vmatmul.mubr.f32.gmra.mrb[0].mxu0 %v1176
        %v1296 = vpop.f32.mrb[0].mxu0
        %v1297 = vadd.f32 0.0, %v1296
        %v1298 = vpop.f32.mrb[0].mxu0
        %1299 = vmatprep.mubr.f32.mxu0 0.0
        %1300 = vmatmul.mubr.f32.gmra.mrb[0].mxu0 %v1179
        %v1301 = vpop.f32.mrb[0].mxu0
        %v1302 = vadd.f32 0.0, %v1301
        %v1303 = vpop.f32.mrb[0].mxu0
        %1304 = vmatprep.mubr.f32.mxu0 0.0
        %1305 = vmatmul.mubr.f32.gmra.mrb[0].mxu0 %v1182
        %v1306 = vpop.f32.mrb[0].mxu0
        %v1307 = vadd.f32 0.0, %v1306
        %v1308 = vpop.f32.mrb[0].mxu0
        %1309 = vmatprep.mubr.f32.mxu0 0.0
        %1310 = vmatmul.mubr.f32.gmra.mrb[0].mxu0 %v1185
        %v1311 = vpop.f32.mrb[0].mxu0
        %v1312 = vadd.f32 0.0, %v1311
        %v1313 = vpop.f32.mrb[0].mxu0
        %1314 = vmatprep.mubr.f32.mxu0 0.0
        %1315 = vmatmul.mubr.f32.gmra.mrb[0].mxu0 %v1188
        %v1316 = vpop.f32.mrb[0].mxu0
        %v1317 = vadd.f32 0.0, %v1316
        %v1318 = vpop.f32.mrb[0].mxu0
        %1319 = vmatprep.mubr.f32.mxu0 0.0
        %1320 = vmatmul.mubr.f32.gmra.mrb[0].mxu0 %v1191
        %v1321 = vpop.f32.mrb[0].mxu0
        %v1322 = vadd.f32 0.0, %v1321
        %v1323 = vpop.f32.mrb[0].mxu0
        %1324 = vmatprep.mubr.f32.mxu0 0.0
        %1325 = vmatmul.mubr.f32.gmra.mrb[0].mxu0 %v1194
        %v1326 = vpop.f32.mrb[0].mxu0
        %v1327 = vadd.f32 0.0, %v1326
        %v1328 = vpop.f32.mrb[0].mxu0
        %1329 = vmatprep.mubr.f32.mxu0 0.0
        %1330 = vmatmul.mubr.f32.gmra.mrb[0].mxu0 %v1197
        %v1331 = vpop.f32.mrb[0].mxu0
        %v1332 = vadd.f32 0.0, %v1331
        %v1333 = vpop.f32.mrb[0].mxu0
        %1334 = vmatprep.mubr.f32.mxu0 0.0
        %1335 = vmatmul.mubr.f32.gmra.mrb[0].mxu0 %v1200
        %v1336 = vpop.f32.mrb[0].mxu0
        %v1337 = vadd.f32 0.0, %v1336
        %v1338 = vpop.f32.mrb[0].mxu0
        %1339 = vmatprep.mubr.f32.mxu0 0.0
        %1340 = vmatmul.mubr.f32.gmra.mrb[0].mxu0 %v1203
        %v1341 = vpop.f32.mrb[0].mxu0
        %v1342 = vadd.f32 0.0, %v1341
        %v1343 = vpop.f32.mrb[0].mxu0
        %1344 = vmatprep.mubr.f32.mxu0 0.0
        %1345 = vmatmul.mubr.f32.gmra.mrb[0].mxu0 %v1206
        %v1346 = vpop.f32.mrb[0].mxu0
        %v1347 = vadd.f32 0.0, %v1346
        %v1348 = vpop.f32.mrb[0].mxu0
        %1349 = vmatprep.mubr.f32.mxu0 0.0
        %1350 = vmatmul.mubr.f32.gmra.mrb[0].mxu0 %v1209
        %v1351 = vpop.f32.mrb[0].mxu0
        %v1352 = vadd.f32 0.0, %v1351
        %v1353 = vpop.f32.mrb[0].mxu0
        %1354 = vmatprep.mubr.f32.mxu0 0.0
        %1355 = vmatmul.mubr.f32.gmra.mrb[0].mxu0 %v1212
        %v1356 = vpop.f32.mrb[0].mxu0
        %v1357 = vadd.f32 0.0, %v1356
        %v1358 = vpop.f32.mrb[0].mxu0
        %1359 = vmatprep.mubr.f32.mxu0 0.0
        %1360 = vmatmul.mubr.f32.gmra.mrb[0].mxu0 %v1215
        %v1361 = vpop.f32.mrb[0].mxu0
        %v1362 = vadd.f32 0.0, %v1361
        %v1363 = vpop.f32.mrb[0].mxu0
        %1364 = vdwg.mxu0
        %v1365 = vadd.f32 %v1135, %v1287
        %v1366 = vadd.f32 %v1136, %v1292
        %v1367 = vadd.f32 %v1137, %v1297
        %v1368 = vadd.f32 %v1138, %v1302
        %v1369 = vadd.f32 %v1139, %v1307
        %v1370 = vadd.f32 %v1140, %v1312
        %v1371 = vadd.f32 %v1141, %v1317
        %v1372 = vadd.f32 %v1142, %v1322
        %v1373 = vadd.f32 %v1143, %v1327
        %v1374 = vadd.f32 %v1144, %v1332
        %v1375 = vadd.f32 %v1145, %v1337
        %v1376 = vadd.f32 %v1146, %v1342
        %v1377 = vadd.f32 %v1147, %v1347
        %v1378 = vadd.f32 %v1148, %v1352
        %v1379 = vadd.f32 %v1149, %v1357
        %v1380 = vadd.f32 %v1150, %v1362
        %v1381 = vld [vmem:[%s921 + $0x1] sm:$0xff]
        %v1382 = vld [vmem:[%s921 + $0x11] sm:$0xff]
        %v1383 = vld [vmem:[%s921 + $0x21] sm:$0xff]
        %v1384 = vld [vmem:[%s921 + $0x31] sm:$0xff]
        %v1385 = vld [vmem:[%s921 + $0x41] sm:$0xff]
        %v1386 = vld [vmem:[%s921 + $0x51] sm:$0xff]
        %v1387 = vld [vmem:[%s921 + $0x61] sm:$0xff]
        %v1388 = vld [vmem:[%s921 + $0x71] sm:$0xff]
        %v1389 = vld [vmem:[%s921 + $0x81] sm:$0xff]
        %v1390 = vld [vmem:[%s921 + $0x91] sm:$0xff]
        %v1391 = vld [vmem:[%s921 + $0xa1] sm:$0xff]
        %v1392 = vld [vmem:[%s921 + $0xb1] sm:$0xff]
        %v1393 = vld [vmem:[%s921 + $0xc1] sm:$0xff]
        %v1394 = vld [vmem:[%s921 + $0xd1] sm:$0xff]
        %v1395 = vld [vmem:[%s921 + $0xe1] sm:$0xff]
        %v1396 = vld [vmem:[%s921 + $0xf1] sm:$0xff]
        %v1397 = vld [vmem:[%s2 + $0xf] sm:$0x7]
        %v1399 = vsel %vm296, %v1381, 0
        %v1402 = vsel %vm296, %v1382, 0
        %v1405 = vsel %vm296, %v1383, 0
        %v1408 = vsel %vm296, %v1384, 0
        %v1411 = vsel %vm296, %v1385, 0
        %v1414 = vsel %vm296, %v1386, 0
        %v1417 = vsel %vm296, %v1387, 0
        %v1420 = vsel %vm296, %v1388, 0
        %v1423 = vsel %vm296, %v1389, 0
        %v1426 = vsel %vm296, %v1390, 0
        %v1429 = vsel %vm296, %v1391, 0
        %v1432 = vsel %vm296, %v1392, 0
        %v1435 = vsel %vm296, %v1393, 0
        %v1438 = vsel %vm296, %v1394, 0
        %v1441 = vsel %vm296, %v1395, 0
        %v1444 = vsel %vm296, %v1396, 0
        %v1447 = vsel %vm345, %v1397, 0
        %1449 = vmatprep.subr.mxu0 0.0
        %1450 = vmatpush1.msra.mxu0 %v1447
        %1451 = vmatprep.subr.mxu0 0.0
        %1452 = vmatpush1.msra.mxu0 0.0
        %1453 = vmatprep.subr.mxu0 0.0
        %1454 = vmatpush1.msra.mxu0 0.0
        %1455 = vmatprep.subr.mxu0 0.0
        %1456 = vmatpush1.msra.mxu0 0.0
        %1457 = vmatprep.subr.mxu0 0.0
        %1458 = vmatpush1.msra.mxu0 0.0
        %1459 = vmatprep.subr.mxu0 0.0
        %1460 = vmatpush1.msra.mxu0 0.0
        %1461 = vmatprep.subr.mxu0 0.0
        %1462 = vmatpush1.msra.mxu0 0.0
        %1463 = vmatprep.subr.mxu0 0.0
        %1464 = vmatpush1.msra.mxu0 0.0
        %1465 = vmatprep.subr.mxu0 0.0
        %1466 = vmatpush1.msra.mxu0 0.0
        %1467 = vmatprep.subr.mxu0 0.0
        %1468 = vmatpush1.msra.mxu0 0.0
        %1469 = vmatprep.subr.mxu0 0.0
        %1470 = vmatpush1.msra.mxu0 0.0
        %1471 = vmatprep.subr.mxu0 0.0
        %1472 = vmatpush1.msra.mxu0 0.0
        %1473 = vmatprep.subr.mxu0 0.0
        %1474 = vmatpush1.msra.mxu0 0.0
        %1475 = vmatprep.subr.mxu0 0.0
        %1476 = vmatpush1.msra.mxu0 0.0
        %1477 = vmatprep.subr.mxu0 0.0
        %1478 = vmatpush1.msra.mxu0 0.0
        %1479 = vmatprep.subr.mxu0 0.0
        %1480 = vmatpush1.msra.mxu0 0.0
        %1481 = vmatprep.subr.mxu0 0.0
        %1482 = vmatpush1.msra.mxu0 0.0
        %1483 = vmatprep.subr.mxu0 0.0
        %1484 = vmatpush1.msra.mxu0 0.0
        %1485 = vmatprep.subr.mxu0 0.0
        %1486 = vmatpush1.msra.mxu0 0.0
        %1487 = vmatprep.subr.mxu0 0.0
        %1488 = vmatpush1.msra.mxu0 0.0
        %1489 = vmatprep.subr.mxu0 0.0
        %1490 = vmatpush1.msra.mxu0 0.0
        %1491 = vmatprep.subr.mxu0 0.0
        %1492 = vmatpush1.msra.mxu0 0.0
        %1493 = vmatprep.subr.mxu0 0.0
        %1494 = vmatpush1.msra.mxu0 0.0
        %1495 = vmatprep.subr.mxu0 0.0
        %1496 = vmatpush1.msra.mxu0 0.0
        %1497 = vmatprep.subr.mxu0 0.0
        %1498 = vmatpush1.msra.mxu0 0.0
        %1499 = vmatprep.subr.mxu0 0.0
        %1500 = vmatpush1.msra.mxu0 0.0
        %1501 = vmatprep.subr.mxu0 0.0
        %1502 = vmatpush1.msra.mxu0 0.0
        %1503 = vmatprep.subr.mxu0 0.0
        %1504 = vmatpush1.msra.mxu0 0.0
        %1505 = vmatprep.subr.mxu0 0.0
        %1506 = vmatpush1.msra.mxu0 0.0
        %1507 = vmatprep.subr.mxu0 0.0
        %1508 = vmatpush1.msra.mxu0 0.0
        %1509 = vmatprep.subr.mxu0 0.0
        %1510 = vmatpush1.msra.mxu0 0.0
        %1511 = vmatprep.subr.mxu0 0.0
        %1512 = vmatpush1.msra.mxu0 0.0
        %1513 = vmatprep.mubr.f32.mxu0 0.0
        %1514 = vmatmul.mubr.f32.gmra.mrb[0].mxu0 %v1399
        %v1515 = vpop.f32.mrb[0].mxu0
        %v1516 = vadd.f32 0.0, %v1515
        %v1517 = vpop.f32.mrb[0].mxu0
        %1518 = vmatprep.mubr.f32.mxu0 0.0
        %1519 = vmatmul.mubr.f32.gmra.mrb[0].mxu0 %v1402
        %v1520 = vpop.f32.mrb[0].mxu0
        %v1521 = vadd.f32 0.0, %v1520
        %v1522 = vpop.f32.mrb[0].mxu0
        %1523 = vmatprep.mubr.f32.mxu0 0.0
        %1524 = vmatmul.mubr.f32.gmra.mrb[0].mxu0 %v1405
        %v1525 = vpop.f32.mrb[0].mxu0
        %v1526 = vadd.f32 0.0, %v1525
        %v1527 = vpop.f32.mrb[0].mxu0
        %1528 = vmatprep.mubr.f32.mxu0 0.0
        %1529 = vmatmul.mubr.f32.gmra.mrb[0].mxu0 %v1408
        %v1530 = vpop.f32.mrb[0].mxu0
        %v1531 = vadd.f32 0.0, %v1530
        %v1532 = vpop.f32.mrb[0].mxu0
        %1533 = vmatprep.mubr.f32.mxu0 0.0
        %1534 = vmatmul.mubr.f32.gmra.mrb[0].mxu0 %v1411
        %v1535 = vpop.f32.mrb[0].mxu0
        %v1536 = vadd.f32 0.0, %v1535
        %v1537 = vpop.f32.mrb[0].mxu0
        %1538 = vmatprep.mubr.f32.mxu0 0.0
        %1539 = vmatmul.mubr.f32.gmra.mrb[0].mxu0 %v1414
        %v1540 = vpop.f32.mrb[0].mxu0
        %v1541 = vadd.f32 0.0, %v1540
        %v1542 = vpop.f32.mrb[0].mxu0
        %1543 = vmatprep.mubr.f32.mxu0 0.0
        %1544 = vmatmul.mubr.f32.gmra.mrb[0].mxu0 %v1417
        %v1545 = vpop.f32.mrb[0].mxu0
        %v1546 = vadd.f32 0.0, %v1545
        %v1547 = vpop.f32.mrb[0].mxu0
        %1548 = vmatprep.mubr.f32.mxu0 0.0
        %1549 = vmatmul.mubr.f32.gmra.mrb[0].mxu0 %v1420
        %v1550 = vpop.f32.mrb[0].mxu0
        %v1551 = vadd.f32 0.0, %v1550
        %v1552 = vpop.f32.mrb[0].mxu0
        %1553 = vmatprep.mubr.f32.mxu0 0.0
        %1554 = vmatmul.mubr.f32.gmra.mrb[0].mxu0 %v1423
        %v1555 = vpop.f32.mrb[0].mxu0
        %v1556 = vadd.f32 0.0, %v1555
        %v1557 = vpop.f32.mrb[0].mxu0
        %1558 = vmatprep.mubr.f32.mxu0 0.0
        %1559 = vmatmul.mubr.f32.gmra.mrb[0].mxu0 %v1426
        %v1560 = vpop.f32.mrb[0].mxu0
        %v1561 = vadd.f32 0.0, %v1560
        %v1562 = vpop.f32.mrb[0].mxu0
        %1563 = vmatprep.mubr.f32.mxu0 0.0
        %1564 = vmatmul.mubr.f32.gmra.mrb[0].mxu0 %v1429
        %v1565 = vpop.f32.mrb[0].mxu0
        %v1566 = vadd.f32 0.0, %v1565
        %v1567 = vpop.f32.mrb[0].mxu0
        %1568 = vmatprep.mubr.f32.mxu0 0.0
        %1569 = vmatmul.mubr.f32.gmra.mrb[0].mxu0 %v1432
        %v1570 = vpop.f32.mrb[0].mxu0
        %v1571 = vadd.f32 0.0, %v1570
        %v1572 = vpop.f32.mrb[0].mxu0
        %1573 = vmatprep.mubr.f32.mxu0 0.0
        %1574 = vmatmul.mubr.f32.gmra.mrb[0].mxu0 %v1435
        %v1575 = vpop.f32.mrb[0].mxu0
        %v1576 = vadd.f32 0.0, %v1575
        %v1577 = vpop.f32.mrb[0].mxu0
        %1578 = vmatprep.mubr.f32.mxu0 0.0
        %1579 = vmatmul.mubr.f32.gmra.mrb[0].mxu0 %v1438
        %v1580 = vpop.f32.mrb[0].mxu0
        %v1581 = vadd.f32 0.0, %v1580
        %v1582 = vpop.f32.mrb[0].mxu0
        %1583 = vmatprep.mubr.f32.mxu0 0.0
        %1584 = vmatmul.mubr.f32.gmra.mrb[0].mxu0 %v1441
        %v1585 = vpop.f32.mrb[0].mxu0
        %v1586 = vadd.f32 0.0, %v1585
        %v1587 = vpop.f32.mrb[0].mxu0
        %1588 = vmatprep.mubr.f32.mxu0 0.0
        %1589 = vmatmul.mubr.f32.gmra.mrb[0].mxu0 %v1444
        %v1590 = vpop.f32.mrb[0].mxu0
        %v1591 = vadd.f32 0.0, %v1590
        %v1592 = vpop.f32.mrb[0].mxu0
        %1593 = vdwg.mxu0
        %v1594 = vadd.f32 %v1365, %v1516
        %v1595 = vadd.f32 %v1366, %v1521
        %v1596 = vadd.f32 %v1367, %v1526
        %v1597 = vadd.f32 %v1368, %v1531
        %v1598 = vadd.f32 %v1369, %v1536
        %v1599 = vadd.f32 %v1370, %v1541
        %v1600 = vadd.f32 %v1371, %v1546
        %v1601 = vadd.f32 %v1372, %v1551
        %v1602 = vadd.f32 %v1373, %v1556
        %v1603 = vadd.f32 %v1374, %v1561
        %v1604 = vadd.f32 %v1375, %v1566
        %v1605 = vadd.f32 %v1376, %v1571
        %v1606 = vadd.f32 %v1377, %v1576
        %v1607 = vadd.f32 %v1378, %v1581
        %v1608 = vadd.f32 %v1379, %v1586
        %v1609 = vadd.f32 %v1380, %v1591
        %s1610 = sadd.s32 %s258, 2
        %s1611 = smul.u32 %s1610, 16
        %s1612 = scalar_lea.vmem %s251, %s1611
        %v1613 = vld [vmem:[%s1612] sm:$0xff]
        %v1614 = vld [vmem:[%s1612 + $0x10] sm:$0xff]
        %v1615 = vld [vmem:[%s1612 + $0x20] sm:$0xff]
        %v1616 = vld [vmem:[%s1612 + $0x30] sm:$0xff]
        %v1617 = vld [vmem:[%s1612 + $0x40] sm:$0xff]
        %v1618 = vld [vmem:[%s1612 + $0x50] sm:$0xff]
        %v1619 = vld [vmem:[%s1612 + $0x60] sm:$0xff]
        %v1620 = vld [vmem:[%s1612 + $0x70] sm:$0xff]
        %v1621 = vld [vmem:[%s1612 + $0x80] sm:$0xff]
        %v1622 = vld [vmem:[%s1612 + $0x90] sm:$0xff]
        %v1623 = vld [vmem:[%s1612 + $0xa0] sm:$0xff]
        %v1624 = vld [vmem:[%s1612 + $0xb0] sm:$0xff]
        %v1625 = vld [vmem:[%s1612 + $0xc0] sm:$0xff]
        %v1626 = vld [vmem:[%s1612 + $0xd0] sm:$0xff]
        %v1627 = vld [vmem:[%s1612 + $0xe0] sm:$0xff]
        %v1628 = vld [vmem:[%s1612 + $0xf0] sm:$0xff]
        %v1629 = vld [vmem:[%s2 + $0x12] sm:$0x7]
        %v1631 = vsel %vm296, %v1613, 0
        %v1634 = vsel %vm296, %v1614, 0
        %v1637 = vsel %vm296, %v1615, 0
        %v1640 = vsel %vm296, %v1616, 0
        %v1643 = vsel %vm296, %v1617, 0
        %v1646 = vsel %vm296, %v1618, 0
        %v1649 = vsel %vm296, %v1619, 0
        %v1652 = vsel %vm296, %v1620, 0
        %v1655 = vsel %vm296, %v1621, 0
        %v1658 = vsel %vm296, %v1622, 0
        %v1661 = vsel %vm296, %v1623, 0
        %v1664 = vsel %vm296, %v1624, 0
        %v1667 = vsel %vm296, %v1625, 0
        %v1670 = vsel %vm296, %v1626, 0
        %v1673 = vsel %vm296, %v1627, 0
        %v1676 = vsel %vm296, %v1628, 0
        %v1679 = vsel %vm345, %v1629, 0
        %1681 = vmatprep.subr.mxu0 0.0
        %1682 = vmatpush1.msra.mxu0 %v1679
        %1683 = vmatprep.subr.mxu0 0.0
        %1684 = vmatpush1.msra.mxu0 0.0
        %1685 = vmatprep.subr.mxu0 0.0
        %1686 = vmatpush1.msra.mxu0 0.0
        %1687 = vmatprep.subr.mxu0 0.0
        %1688 = vmatpush1.msra.mxu0 0.0
        %1689 = vmatprep.subr.mxu0 0.0
        %1690 = vmatpush1.msra.mxu0 0.0
        %1691 = vmatprep.subr.mxu0 0.0
        %1692 = vmatpush1.msra.mxu0 0.0
        %1693 = vmatprep.subr.mxu0 0.0
        %1694 = vmatpush1.msra.mxu0 0.0
        %1695 = vmatprep.subr.mxu0 0.0
        %1696 = vmatpush1.msra.mxu0 0.0
        %1697 = vmatprep.subr.mxu0 0.0
        %1698 = vmatpush1.msra.mxu0 0.0
        %1699 = vmatprep.subr.mxu0 0.0
        %1700 = vmatpush1.msra.mxu0 0.0
        %1701 = vmatprep.subr.mxu0 0.0
        %1702 = vmatpush1.msra.mxu0 0.0
        %1703 = vmatprep.subr.mxu0 0.0
        %1704 = vmatpush1.msra.mxu0 0.0
        %1705 = vmatprep.subr.mxu0 0.0
        %1706 = vmatpush1.msra.mxu0 0.0
        %1707 = vmatprep.subr.mxu0 0.0
        %1708 = vmatpush1.msra.mxu0 0.0
        %1709 = vmatprep.subr.mxu0 0.0
        %1710 = vmatpush1.msra.mxu0 0.0
        %1711 = vmatprep.subr.mxu0 0.0
        %1712 = vmatpush1.msra.mxu0 0.0
        %1713 = vmatprep.subr.mxu0 0.0
        %1714 = vmatpush1.msra.mxu0 0.0
        %1715 = vmatprep.subr.mxu0 0.0
        %1716 = vmatpush1.msra.mxu0 0.0
        %1717 = vmatprep.subr.mxu0 0.0
        %1718 = vmatpush1.msra.mxu0 0.0
        %1719 = vmatprep.subr.mxu0 0.0
        %1720 = vmatpush1.msra.mxu0 0.0
        %1721 = vmatprep.subr.mxu0 0.0
        %1722 = vmatpush1.msra.mxu0 0.0
        %1723 = vmatprep.subr.mxu0 0.0
        %1724 = vmatpush1.msra.mxu0 0.0
        %1725 = vmatprep.subr.mxu0 0.0
        %1726 = vmatpush1.msra.mxu0 0.0
        %1727 = vmatprep.subr.mxu0 0.0
        %1728 = vmatpush1.msra.mxu0 0.0
        %1729 = vmatprep.subr.mxu0 0.0
        %1730 = vmatpush1.msra.mxu0 0.0
        %1731 = vmatprep.subr.mxu0 0.0
        %1732 = vmatpush1.msra.mxu0 0.0
        %1733 = vmatprep.subr.mxu0 0.0
        %1734 = vmatpush1.msra.mxu0 0.0
        %1735 = vmatprep.subr.mxu0 0.0
        %1736 = vmatpush1.msra.mxu0 0.0
        %1737 = vmatprep.subr.mxu0 0.0
        %1738 = vmatpush1.msra.mxu0 0.0
        %1739 = vmatprep.subr.mxu0 0.0
        %1740 = vmatpush1.msra.mxu0 0.0
        %1741 = vmatprep.subr.mxu0 0.0
        %1742 = vmatpush1.msra.mxu0 0.0
        %1743 = vmatprep.subr.mxu0 0.0
        %1744 = vmatpush1.msra.mxu0 0.0
        %1745 = vmatprep.mubr.f32.mxu0 0.0
        %1746 = vmatmul.mubr.f32.gmra.mrb[0].mxu0 %v1631
        %v1747 = vpop.f32.mrb[0].mxu0
        %v1748 = vadd.f32 0.0, %v1747
        %v1749 = vpop.f32.mrb[0].mxu0
        %1750 = vmatprep.mubr.f32.mxu0 0.0
        %1751 = vmatmul.mubr.f32.gmra.mrb[0].mxu0 %v1634
        %v1752 = vpop.f32.mrb[0].mxu0
        %v1753 = vadd.f32 0.0, %v1752
        %v1754 = vpop.f32.mrb[0].mxu0
        %1755 = vmatprep.mubr.f32.mxu0 0.0
        %1756 = vmatmul.mubr.f32.gmra.mrb[0].mxu0 %v1637
        %v1757 = vpop.f32.mrb[0].mxu0
        %v1758 = vadd.f32 0.0, %v1757
        %v1759 = vpop.f32.mrb[0].mxu0
        %1760 = vmatprep.mubr.f32.mxu0 0.0
        %1761 = vmatmul.mubr.f32.gmra.mrb[0].mxu0 %v1640
        %v1762 = vpop.f32.mrb[0].mxu0
        %v1763 = vadd.f32 0.0, %v1762
        %v1764 = vpop.f32.mrb[0].mxu0
        %1765 = vmatprep.mubr.f32.mxu0 0.0
        %1766 = vmatmul.mubr.f32.gmra.mrb[0].mxu0 %v1643
        %v1767 = vpop.f32.mrb[0].mxu0
        %v1768 = vadd.f32 0.0, %v1767
        %v1769 = vpop.f32.mrb[0].mxu0
        %1770 = vmatprep.mubr.f32.mxu0 0.0
        %1771 = vmatmul.mubr.f32.gmra.mrb[0].mxu0 %v1646
        %v1772 = vpop.f32.mrb[0].mxu0
        %v1773 = vadd.f32 0.0, %v1772
        %v1774 = vpop.f32.mrb[0].mxu0
        %1775 = vmatprep.mubr.f32.mxu0 0.0
        %1776 = vmatmul.mubr.f32.gmra.mrb[0].mxu0 %v1649
        %v1777 = vpop.f32.mrb[0].mxu0
        %v1778 = vadd.f32 0.0, %v1777
        %v1779 = vpop.f32.mrb[0].mxu0
        %1780 = vmatprep.mubr.f32.mxu0 0.0
        %1781 = vmatmul.mubr.f32.gmra.mrb[0].mxu0 %v1652
        %v1782 = vpop.f32.mrb[0].mxu0
        %v1783 = vadd.f32 0.0, %v1782
        %v1784 = vpop.f32.mrb[0].mxu0
        %1785 = vmatprep.mubr.f32.mxu0 0.0
        %1786 = vmatmul.mubr.f32.gmra.mrb[0].mxu0 %v1655
        %v1787 = vpop.f32.mrb[0].mxu0
        %v1788 = vadd.f32 0.0, %v1787
        %v1789 = vpop.f32.mrb[0].mxu0
        %1790 = vmatprep.mubr.f32.mxu0 0.0
        %1791 = vmatmul.mubr.f32.gmra.mrb[0].mxu0 %v1658
        %v1792 = vpop.f32.mrb[0].mxu0
        %v1793 = vadd.f32 0.0, %v1792
        %v1794 = vpop.f32.mrb[0].mxu0
        %1795 = vmatprep.mubr.f32.mxu0 0.0
        %1796 = vmatmul.mubr.f32.gmra.mrb[0].mxu0 %v1661
        %v1797 = vpop.f32.mrb[0].mxu0
        %v1798 = vadd.f32 0.0, %v1797
        %v1799 = vpop.f32.mrb[0].mxu0
        %1800 = vmatprep.mubr.f32.mxu0 0.0
        %1801 = vmatmul.mubr.f32.gmra.mrb[0].mxu0 %v1664
        %v1802 = vpop.f32.mrb[0].mxu0
        %v1803 = vadd.f32 0.0, %v1802
        %v1804 = vpop.f32.mrb[0].mxu0
        %1805 = vmatprep.mubr.f32.mxu0 0.0
        %1806 = vmatmul.mubr.f32.gmra.mrb[0].mxu0 %v1667
        %v1807 = vpop.f32.mrb[0].mxu0
        %v1808 = vadd.f32 0.0, %v1807
        %v1809 = vpop.f32.mrb[0].mxu0
        %1810 = vmatprep.mubr.f32.mxu0 0.0
        %1811 = vmatmul.mubr.f32.gmra.mrb[0].mxu0 %v1670
        %v1812 = vpop.f32.mrb[0].mxu0
        %v1813 = vadd.f32 0.0, %v1812
        %v1814 = vpop.f32.mrb[0].mxu0
        %1815 = vmatprep.mubr.f32.mxu0 0.0
        %1816 = vmatmul.mubr.f32.gmra.mrb[0].mxu0 %v1673
        %v1817 = vpop.f32.mrb[0].mxu0
        %v1818 = vadd.f32 0.0, %v1817
        %v1819 = vpop.f32.mrb[0].mxu0
        %1820 = vmatprep.mubr.f32.mxu0 0.0
        %1821 = vmatmul.mubr.f32.gmra.mrb[0].mxu0 %v1676
        %v1822 = vpop.f32.mrb[0].mxu0
        %v1823 = vadd.f32 0.0, %v1822
        %v1824 = vpop.f32.mrb[0].mxu0
        %1825 = vdwg.mxu0
        %v1826 = vadd.f32 %v1594, %v1748
        %v1827 = vadd.f32 %v1595, %v1753
        %v1828 = vadd.f32 %v1596, %v1758
        %v1829 = vadd.f32 %v1597, %v1763
        %v1830 = vadd.f32 %v1598, %v1768
        %v1831 = vadd.f32 %v1599, %v1773
        %v1832 = vadd.f32 %v1600, %v1778
        %v1833 = vadd.f32 %v1601, %v1783
        %v1834 = vadd.f32 %v1602, %v1788
        %v1835 = vadd.f32 %v1603, %v1793
        %v1836 = vadd.f32 %v1604, %v1798
        %v1837 = vadd.f32 %v1605, %v1803
        %v1838 = vadd.f32 %v1606, %v1808
        %v1839 = vadd.f32 %v1607, %v1813
        %v1840 = vadd.f32 %v1608, %v1818
        %v1841 = vadd.f32 %v1609, %v1823
        %s1842 = scalar_lea.vmem %s256, %s1611
        %v1843 = vld [vmem:[%s1842] sm:$0xff]
        %v1844 = vld [vmem:[%s1842 + $0x10] sm:$0xff]
        %v1845 = vld [vmem:[%s1842 + $0x20] sm:$0xff]
        %v1846 = vld [vmem:[%s1842 + $0x30] sm:$0xff]
        %v1847 = vld [vmem:[%s1842 + $0x40] sm:$0xff]
        %v1848 = vld [vmem:[%s1842 + $0x50] sm:$0xff]
        %v1849 = vld [vmem:[%s1842 + $0x60] sm:$0xff]
        %v1850 = vld [vmem:[%s1842 + $0x70] sm:$0xff]
        %v1851 = vld [vmem:[%s1842 + $0x80] sm:$0xff]
        %v1852 = vld [vmem:[%s1842 + $0x90] sm:$0xff]
        %v1853 = vld [vmem:[%s1842 + $0xa0] sm:$0xff]
        %v1854 = vld [vmem:[%s1842 + $0xb0] sm:$0xff]
        %v1855 = vld [vmem:[%s1842 + $0xc0] sm:$0xff]
        %v1856 = vld [vmem:[%s1842 + $0xd0] sm:$0xff]
        %v1857 = vld [vmem:[%s1842 + $0xe0] sm:$0xff]
        %v1858 = vld [vmem:[%s1842 + $0xf0] sm:$0xff]
        %v1859 = vld [vmem:[%s2 + $0x15] sm:$0x7]
        %v1861 = vsel %vm296, %v1843, 0
        %v1864 = vsel %vm296, %v1844, 0
        %v1867 = vsel %vm296, %v1845, 0
        %v1870 = vsel %vm296, %v1846, 0
        %v1873 = vsel %vm296, %v1847, 0
        %v1876 = vsel %vm296, %v1848, 0
        %v1879 = vsel %vm296, %v1849, 0
        %v1882 = vsel %vm296, %v1850, 0
        %v1885 = vsel %vm296, %v1851, 0
        %v1888 = vsel %vm296, %v1852, 0
        %v1891 = vsel %vm296, %v1853, 0
        %v1894 = vsel %vm296, %v1854, 0
        %v1897 = vsel %vm296, %v1855, 0
        %v1900 = vsel %vm296, %v1856, 0
        %v1903 = vsel %vm296, %v1857, 0
        %v1906 = vsel %vm296, %v1858, 0
        %v1909 = vsel %vm345, %v1859, 0
        %1911 = vmatprep.subr.mxu0 0.0
        %1912 = vmatpush1.msra.mxu0 %v1909
        %1913 = vmatprep.subr.mxu0 0.0
        %1914 = vmatpush1.msra.mxu0 0.0
        %1915 = vmatprep.subr.mxu0 0.0
        %1916 = vmatpush1.msra.mxu0 0.0
        %1917 = vmatprep.subr.mxu0 0.0
        %1918 = vmatpush1.msra.mxu0 0.0
        %1919 = vmatprep.subr.mxu0 0.0
        %1920 = vmatpush1.msra.mxu0 0.0
        %1921 = vmatprep.subr.mxu0 0.0
        %1922 = vmatpush1.msra.mxu0 0.0
        %1923 = vmatprep.subr.mxu0 0.0
        %1924 = vmatpush1.msra.mxu0 0.0
        %1925 = vmatprep.subr.mxu0 0.0
        %1926 = vmatpush1.msra.mxu0 0.0
        %1927 = vmatprep.subr.mxu0 0.0
        %1928 = vmatpush1.msra.mxu0 0.0
        %1929 = vmatprep.subr.mxu0 0.0
        %1930 = vmatpush1.msra.mxu0 0.0
        %1931 = vmatprep.subr.mxu0 0.0
        %1932 = vmatpush1.msra.mxu0 0.0
        %1933 = vmatprep.subr.mxu0 0.0
        %1934 = vmatpush1.msra.mxu0 0.0
        %1935 = vmatprep.subr.mxu0 0.0
        %1936 = vmatpush1.msra.mxu0 0.0
        %1937 = vmatprep.subr.mxu0 0.0
        %1938 = vmatpush1.msra.mxu0 0.0
        %1939 = vmatprep.subr.mxu0 0.0
        %1940 = vmatpush1.msra.mxu0 0.0
        %1941 = vmatprep.subr.mxu0 0.0
        %1942 = vmatpush1.msra.mxu0 0.0
        %1943 = vmatprep.subr.mxu0 0.0
        %1944 = vmatpush1.msra.mxu0 0.0
        %1945 = vmatprep.subr.mxu0 0.0
        %1946 = vmatpush1.msra.mxu0 0.0
        %1947 = vmatprep.subr.mxu0 0.0
        %1948 = vmatpush1.msra.mxu0 0.0
        %1949 = vmatprep.subr.mxu0 0.0
        %1950 = vmatpush1.msra.mxu0 0.0
        %1951 = vmatprep.subr.mxu0 0.0
        %1952 = vmatpush1.msra.mxu0 0.0
        %1953 = vmatprep.subr.mxu0 0.0
        %1954 = vmatpush1.msra.mxu0 0.0
        %1955 = vmatprep.subr.mxu0 0.0
        %1956 = vmatpush1.msra.mxu0 0.0
        %1957 = vmatprep.subr.mxu0 0.0
        %1958 = vmatpush1.msra.mxu0 0.0
        %1959 = vmatprep.subr.mxu0 0.0
        %1960 = vmatpush1.msra.mxu0 0.0
        %1961 = vmatprep.subr.mxu0 0.0
        %1962 = vmatpush1.msra.mxu0 0.0
        %1963 = vmatprep.subr.mxu0 0.0
        %1964 = vmatpush1.msra.mxu0 0.0
        %1965 = vmatprep.subr.mxu0 0.0
        %1966 = vmatpush1.msra.mxu0 0.0
        %1967 = vmatprep.subr.mxu0 0.0
        %1968 = vmatpush1.msra.mxu0 0.0
        %1969 = vmatprep.subr.mxu0 0.0
        %1970 = vmatpush1.msra.mxu0 0.0
        %1971 = vmatprep.subr.mxu0 0.0
        %1972 = vmatpush1.msra.mxu0 0.0
        %1973 = vmatprep.subr.mxu0 0.0
        %1974 = vmatpush1.msra.mxu0 0.0
        %1975 = vmatprep.mubr.f32.mxu0 0.0
        %1976 = vmatmul.mubr.f32.gmra.mrb[0].mxu0 %v1861
        %v1977 = vpop.f32.mrb[0].mxu0
        %v1978 = vadd.f32 0.0, %v1977
        %v1979 = vpop.f32.mrb[0].mxu0
        %1980 = vmatprep.mubr.f32.mxu0 0.0
        %1981 = vmatmul.mubr.f32.gmra.mrb[0].mxu0 %v1864
        %v1982 = vpop.f32.mrb[0].mxu0
        %v1983 = vadd.f32 0.0, %v1982
        %v1984 = vpop.f32.mrb[0].mxu0
        %1985 = vmatprep.mubr.f32.mxu0 0.0
        %1986 = vmatmul.mubr.f32.gmra.mrb[0].mxu0 %v1867
        %v1987 = vpop.f32.mrb[0].mxu0
        %v1988 = vadd.f32 0.0, %v1987
        %v1989 = vpop.f32.mrb[0].mxu0
        %1990 = vmatprep.mubr.f32.mxu0 0.0
        %1991 = vmatmul.mubr.f32.gmra.mrb[0].mxu0 %v1870
        %v1992 = vpop.f32.mrb[0].mxu0
        %v1993 = vadd.f32 0.0, %v1992
        %v1994 = vpop.f32.mrb[0].mxu0
        %1995 = vmatprep.mubr.f32.mxu0 0.0
        %1996 = vmatmul.mubr.f32.gmra.mrb[0].mxu0 %v1873
        %v1997 = vpop.f32.mrb[0].mxu0
        %v1998 = vadd.f32 0.0, %v1997
        %v1999 = vpop.f32.mrb[0].mxu0
        %2000 = vmatprep.mubr.f32.mxu0 0.0
        %2001 = vmatmul.mubr.f32.gmra.mrb[0].mxu0 %v1876
        %v2002 = vpop.f32.mrb[0].mxu0
        %v2003 = vadd.f32 0.0, %v2002
        %v2004 = vpop.f32.mrb[0].mxu0
        %2005 = vmatprep.mubr.f32.mxu0 0.0
        %2006 = vmatmul.mubr.f32.gmra.mrb[0].mxu0 %v1879
        %v2007 = vpop.f32.mrb[0].mxu0
        %v2008 = vadd.f32 0.0, %v2007
        %v2009 = vpop.f32.mrb[0].mxu0
        %2010 = vmatprep.mubr.f32.mxu0 0.0
        %2011 = vmatmul.mubr.f32.gmra.mrb[0].mxu0 %v1882
        %v2012 = vpop.f32.mrb[0].mxu0
        %v2013 = vadd.f32 0.0, %v2012
        %v2014 = vpop.f32.mrb[0].mxu0
        %2015 = vmatprep.mubr.f32.mxu0 0.0
        %2016 = vmatmul.mubr.f32.gmra.mrb[0].mxu0 %v1885
        %v2017 = vpop.f32.mrb[0].mxu0
        %v2018 = vadd.f32 0.0, %v2017
        %v2019 = vpop.f32.mrb[0].mxu0
        %2020 = vmatprep.mubr.f32.mxu0 0.0
        %2021 = vmatmul.mubr.f32.gmra.mrb[0].mxu0 %v1888
        %v2022 = vpop.f32.mrb[0].mxu0
        %v2023 = vadd.f32 0.0, %v2022
        %v2024 = vpop.f32.mrb[0].mxu0
        %2025 = vmatprep.mubr.f32.mxu0 0.0
        %2026 = vmatmul.mubr.f32.gmra.mrb[0].mxu0 %v1891
        %v2027 = vpop.f32.mrb[0].mxu0
        %v2028 = vadd.f32 0.0, %v2027
        %v2029 = vpop.f32.mrb[0].mxu0
        %2030 = vmatprep.mubr.f32.mxu0 0.0
        %2031 = vmatmul.mubr.f32.gmra.mrb[0].mxu0 %v1894
        %v2032 = vpop.f32.mrb[0].mxu0
        %v2033 = vadd.f32 0.0, %v2032
        %v2034 = vpop.f32.mrb[0].mxu0
        %2035 = vmatprep.mubr.f32.mxu0 0.0
        %2036 = vmatmul.mubr.f32.gmra.mrb[0].mxu0 %v1897
        %v2037 = vpop.f32.mrb[0].mxu0
        %v2038 = vadd.f32 0.0, %v2037
        %v2039 = vpop.f32.mrb[0].mxu0
        %2040 = vmatprep.mubr.f32.mxu0 0.0
        %2041 = vmatmul.mubr.f32.gmra.mrb[0].mxu0 %v1900
        %v2042 = vpop.f32.mrb[0].mxu0
        %v2043 = vadd.f32 0.0, %v2042
        %v2044 = vpop.f32.mrb[0].mxu0
        %2045 = vmatprep.mubr.f32.mxu0 0.0
        %2046 = vmatmul.mubr.f32.gmra.mrb[0].mxu0 %v1903
        %v2047 = vpop.f32.mrb[0].mxu0
        %v2048 = vadd.f32 0.0, %v2047
        %v2049 = vpop.f32.mrb[0].mxu0
        %2050 = vmatprep.mubr.f32.mxu0 0.0
        %2051 = vmatmul.mubr.f32.gmra.mrb[0].mxu0 %v1906
        %v2052 = vpop.f32.mrb[0].mxu0
        %v2053 = vadd.f32 0.0, %v2052
        %v2054 = vpop.f32.mrb[0].mxu0
        %2055 = vdwg.mxu0
        %v2056 = vadd.f32 %v1826, %v1978
        %v2057 = vadd.f32 %v1827, %v1983
        %v2058 = vadd.f32 %v1828, %v1988
        %v2059 = vadd.f32 %v1829, %v1993
        %v2060 = vadd.f32 %v1830, %v1998
        %v2061 = vadd.f32 %v1831, %v2003
        %v2062 = vadd.f32 %v1832, %v2008
        %v2063 = vadd.f32 %v1833, %v2013
        %v2064 = vadd.f32 %v1834, %v2018
        %v2065 = vadd.f32 %v1835, %v2023
        %v2066 = vadd.f32 %v1836, %v2028
        %v2067 = vadd.f32 %v1837, %v2033
        %v2068 = vadd.f32 %v1838, %v2038
        %v2069 = vadd.f32 %v1839, %v2043
        %v2070 = vadd.f32 %v1840, %v2048
        %v2071 = vadd.f32 %v1841, %v2053
        %v2072 = vld [vmem:[%s1612 + $0x1] sm:$0xff]
        %v2073 = vld [vmem:[%s1612 + $0x11] sm:$0xff]
        %v2074 = vld [vmem:[%s1612 + $0x21] sm:$0xff]
        %v2075 = vld [vmem:[%s1612 + $0x31] sm:$0xff]
        %v2076 = vld [vmem:[%s1612 + $0x41] sm:$0xff]
        %v2077 = vld [vmem:[%s1612 + $0x51] sm:$0xff]
        %v2078 = vld [vmem:[%s1612 + $0x61] sm:$0xff]
        %v2079 = vld [vmem:[%s1612 + $0x71] sm:$0xff]
        %v2080 = vld [vmem:[%s1612 + $0x81] sm:$0xff]
        %v2081 = vld [vmem:[%s1612 + $0x91] sm:$0xff]
        %v2082 = vld [vmem:[%s1612 + $0xa1] sm:$0xff]
        %v2083 = vld [vmem:[%s1612 + $0xb1] sm:$0xff]
        %v2084 = vld [vmem:[%s1612 + $0xc1] sm:$0xff]
        %v2085 = vld [vmem:[%s1612 + $0xd1] sm:$0xff]
        %v2086 = vld [vmem:[%s1612 + $0xe1] sm:$0xff]
        %v2087 = vld [vmem:[%s1612 + $0xf1] sm:$0xff]
        %v2088 = vld [vmem:[%s2 + $0x18] sm:$0x7]
        %v2090 = vsel %vm296, %v2072, 0
        %v2093 = vsel %vm296, %v2073, 0
        %v2096 = vsel %vm296, %v2074, 0
        %v2099 = vsel %vm296, %v2075, 0
        %v2102 = vsel %vm296, %v2076, 0
        %v2105 = vsel %vm296, %v2077, 0
        %v2108 = vsel %vm296, %v2078, 0
        %v2111 = vsel %vm296, %v2079, 0
        %v2114 = vsel %vm296, %v2080, 0
        %v2117 = vsel %vm296, %v2081, 0
        %v2120 = vsel %vm296, %v2082, 0
        %v2123 = vsel %vm296, %v2083, 0
        %v2126 = vsel %vm296, %v2084, 0
        %v2129 = vsel %vm296, %v2085, 0
        %v2132 = vsel %vm296, %v2086, 0
        %v2135 = vsel %vm296, %v2087, 0
        %v2138 = vsel %vm345, %v2088, 0
        %2140 = vmatprep.subr.mxu0 0.0
        %2141 = vmatpush1.msra.mxu0 %v2138
        %2142 = vmatprep.subr.mxu0 0.0
        %2143 = vmatpush1.msra.mxu0 0.0
        %2144 = vmatprep.subr.mxu0 0.0
        %2145 = vmatpush1.msra.mxu0 0.0
        %2146 = vmatprep.subr.mxu0 0.0
        %2147 = vmatpush1.msra.mxu0 0.0
        %2148 = vmatprep.subr.mxu0 0.0
        %2149 = vmatpush1.msra.mxu0 0.0
        %2150 = vmatprep.subr.mxu0 0.0
        %2151 = vmatpush1.msra.mxu0 0.0
        %2152 = vmatprep.subr.mxu0 0.0
        %2153 = vmatpush1.msra.mxu0 0.0
        %2154 = vmatprep.subr.mxu0 0.0
        %2155 = vmatpush1.msra.mxu0 0.0
        %2156 = vmatprep.subr.mxu0 0.0
        %2157 = vmatpush1.msra.mxu0 0.0
        %2158 = vmatprep.subr.mxu0 0.0
        %2159 = vmatpush1.msra.mxu0 0.0
        %2160 = vmatprep.subr.mxu0 0.0
        %2161 = vmatpush1.msra.mxu0 0.0
        %2162 = vmatprep.subr.mxu0 0.0
        %2163 = vmatpush1.msra.mxu0 0.0
        %2164 = vmatprep.subr.mxu0 0.0
        %2165 = vmatpush1.msra.mxu0 0.0
        %2166 = vmatprep.subr.mxu0 0.0
        %2167 = vmatpush1.msra.mxu0 0.0
        %2168 = vmatprep.subr.mxu0 0.0
        %2169 = vmatpush1.msra.mxu0 0.0
        %2170 = vmatprep.subr.mxu0 0.0
        %2171 = vmatpush1.msra.mxu0 0.0
        %2172 = vmatprep.subr.mxu0 0.0
        %2173 = vmatpush1.msra.mxu0 0.0
        %2174 = vmatprep.subr.mxu0 0.0
        %2175 = vmatpush1.msra.mxu0 0.0
        %2176 = vmatprep.subr.mxu0 0.0
        %2177 = vmatpush1.msra.mxu0 0.0
        %2178 = vmatprep.subr.mxu0 0.0
        %2179 = vmatpush1.msra.mxu0 0.0
        %2180 = vmatprep.subr.mxu0 0.0
        %2181 = vmatpush1.msra.mxu0 0.0
        %2182 = vmatprep.subr.mxu0 0.0
        %2183 = vmatpush1.msra.mxu0 0.0
        %2184 = vmatprep.subr.mxu0 0.0
        %2185 = vmatpush1.msra.mxu0 0.0
        %2186 = vmatprep.subr.mxu0 0.0
        %2187 = vmatpush1.msra.mxu0 0.0
        %2188 = vmatprep.subr.mxu0 0.0
        %2189 = vmatpush1.msra.mxu0 0.0
        %2190 = vmatprep.subr.mxu0 0.0
        %2191 = vmatpush1.msra.mxu0 0.0
        %2192 = vmatprep.subr.mxu0 0.0
        %2193 = vmatpush1.msra.mxu0 0.0
        %2194 = vmatprep.subr.mxu0 0.0
        %2195 = vmatpush1.msra.mxu0 0.0
        %2196 = vmatprep.subr.mxu0 0.0
        %2197 = vmatpush1.msra.mxu0 0.0
        %2198 = vmatprep.subr.mxu0 0.0
        %2199 = vmatpush1.msra.mxu0 0.0
        %2200 = vmatprep.subr.mxu0 0.0
        %2201 = vmatpush1.msra.mxu0 0.0
        %2202 = vmatprep.subr.mxu0 0.0
        %2203 = vmatpush1.msra.mxu0 0.0
        %2204 = vmatprep.mubr.f32.mxu0 0.0
        %2205 = vmatmul.mubr.f32.gmra.mrb[0].mxu0 %v2090
        %v2206 = vpop.f32.mrb[0].mxu0
        %v2207 = vadd.f32 0.0, %v2206
        %v2208 = vpop.f32.mrb[0].mxu0
        %2209 = vmatprep.mubr.f32.mxu0 0.0
        %2210 = vmatmul.mubr.f32.gmra.mrb[0].mxu0 %v2093
        %v2211 = vpop.f32.mrb[0].mxu0
        %v2212 = vadd.f32 0.0, %v2211
        %v2213 = vpop.f32.mrb[0].mxu0
        %2214 = vmatprep.mubr.f32.mxu0 0.0
        %2215 = vmatmul.mubr.f32.gmra.mrb[0].mxu0 %v2096
        %v2216 = vpop.f32.mrb[0].mxu0
        %v2217 = vadd.f32 0.0, %v2216
        %v2218 = vpop.f32.mrb[0].mxu0
        %2219 = vmatprep.mubr.f32.mxu0 0.0
        %2220 = vmatmul.mubr.f32.gmra.mrb[0].mxu0 %v2099
        %v2221 = vpop.f32.mrb[0].mxu0
        %v2222 = vadd.f32 0.0, %v2221
        %v2223 = vpop.f32.mrb[0].mxu0
        %2224 = vmatprep.mubr.f32.mxu0 0.0
        %2225 = vmatmul.mubr.f32.gmra.mrb[0].mxu0 %v2102
        %v2226 = vpop.f32.mrb[0].mxu0
        %v2227 = vadd.f32 0.0, %v2226
        %v2228 = vpop.f32.mrb[0].mxu0
        %2229 = vmatprep.mubr.f32.mxu0 0.0
        %2230 = vmatmul.mubr.f32.gmra.mrb[0].mxu0 %v2105
        %v2231 = vpop.f32.mrb[0].mxu0
        %v2232 = vadd.f32 0.0, %v2231
        %v2233 = vpop.f32.mrb[0].mxu0
        %2234 = vmatprep.mubr.f32.mxu0 0.0
        %2235 = vmatmul.mubr.f32.gmra.mrb[0].mxu0 %v2108
        %v2236 = vpop.f32.mrb[0].mxu0
        %v2237 = vadd.f32 0.0, %v2236
        %v2238 = vpop.f32.mrb[0].mxu0
        %2239 = vmatprep.mubr.f32.mxu0 0.0
        %2240 = vmatmul.mubr.f32.gmra.mrb[0].mxu0 %v2111
        %v2241 = vpop.f32.mrb[0].mxu0
        %v2242 = vadd.f32 0.0, %v2241
        %v2243 = vpop.f32.mrb[0].mxu0
        %2244 = vmatprep.mubr.f32.mxu0 0.0
        %2245 = vmatmul.mubr.f32.gmra.mrb[0].mxu0 %v2114
        %v2246 = vpop.f32.mrb[0].mxu0
        %v2247 = vadd.f32 0.0, %v2246
        %v2248 = vpop.f32.mrb[0].mxu0
        %2249 = vmatprep.mubr.f32.mxu0 0.0
        %2250 = vmatmul.mubr.f32.gmra.mrb[0].mxu0 %v2117
        %v2251 = vpop.f32.mrb[0].mxu0
        %v2252 = vadd.f32 0.0, %v2251
        %v2253 = vpop.f32.mrb[0].mxu0
        %2254 = vmatprep.mubr.f32.mxu0 0.0
        %2255 = vmatmul.mubr.f32.gmra.mrb[0].mxu0 %v2120
        %v2256 = vpop.f32.mrb[0].mxu0
        %v2257 = vadd.f32 0.0, %v2256
        %v2258 = vpop.f32.mrb[0].mxu0
        %2259 = vmatprep.mubr.f32.mxu0 0.0
        %2260 = vmatmul.mubr.f32.gmra.mrb[0].mxu0 %v2123
        %v2261 = vpop.f32.mrb[0].mxu0
        %v2262 = vadd.f32 0.0, %v2261
        %v2263 = vpop.f32.mrb[0].mxu0
        %2264 = vmatprep.mubr.f32.mxu0 0.0
        %2265 = vmatmul.mubr.f32.gmra.mrb[0].mxu0 %v2126
        %v2266 = vpop.f32.mrb[0].mxu0
        %v2267 = vadd.f32 0.0, %v2266
        %v2268 = vpop.f32.mrb[0].mxu0
        %2269 = vmatprep.mubr.f32.mxu0 0.0
        %2270 = vmatmul.mubr.f32.gmra.mrb[0].mxu0 %v2129
        %v2271 = vpop.f32.mrb[0].mxu0
        %v2272 = vadd.f32 0.0, %v2271
        %v2273 = vpop.f32.mrb[0].mxu0
        %2274 = vmatprep.mubr.f32.mxu0 0.0
        %2275 = vmatmul.mubr.f32.gmra.mrb[0].mxu0 %v2132
        %v2276 = vpop.f32.mrb[0].mxu0
        %v2277 = vadd.f32 0.0, %v2276
        %v2278 = vpop.f32.mrb[0].mxu0
        %2279 = vmatprep.mubr.f32.mxu0 0.0
        %2280 = vmatmul.mubr.f32.gmra.mrb[0].mxu0 %v2135
        %v2281 = vpop.f32.mrb[0].mxu0
        %v2282 = vadd.f32 0.0, %v2281
        %v2283 = vpop.f32.mrb[0].mxu0
        %2284 = vdwg.mxu0
        %v2285 = vadd.f32 %v2056, %v2207
        %v2286 = vadd.f32 %v2057, %v2212
        %v2287 = vadd.f32 %v2058, %v2217
        %v2288 = vadd.f32 %v2059, %v2222
        %v2289 = vadd.f32 %v2060, %v2227
        %v2290 = vadd.f32 %v2061, %v2232
        %v2291 = vadd.f32 %v2062, %v2237
        %v2292 = vadd.f32 %v2063, %v2242
        %v2293 = vadd.f32 %v2064, %v2247
        %v2294 = vadd.f32 %v2065, %v2252
        %v2295 = vadd.f32 %v2066, %v2257
        %v2296 = vadd.f32 %v2067, %v2262
        %v2297 = vadd.f32 %v2068, %v2267
        %v2298 = vadd.f32 %v2069, %v2272
        %v2299 = vadd.f32 %v2070, %v2277
        %v2300 = vadd.f32 %v2071, %v2282
        %v2301 = vld [vmem:[%s3] sm:$0x1]
        %v2303 = vlaneseq
        %v2304 = vshrl.u32 %v2303, 7
        %v2305 = vsub.s32 0, %v2304
        %v2306 = vrot.slane %v2301, %v2305
        %v2308 = vmul.f32 %v2285, %v2306
        %v2309 = vmul.f32 %v2286, %v2306
        %v2310 = vmul.f32 %v2287, %v2306
        %v2311 = vmul.f32 %v2288, %v2306
        %v2312 = vmul.f32 %v2289, %v2306
        %v2313 = vmul.f32 %v2290, %v2306
        %v2314 = vmul.f32 %v2291, %v2306
        %v2315 = vmul.f32 %v2292, %v2306
        %v2316 = vmul.f32 %v2293, %v2306
        %v2317 = vmul.f32 %v2294, %v2306
        %v2318 = vmul.f32 %v2295, %v2306
        %v2319 = vmul.f32 %v2296, %v2306
        %v2320 = vmul.f32 %v2297, %v2306
        %v2321 = vmul.f32 %v2298, %v2306
        %v2322 = vmul.f32 %v2299, %v2306
        %v2323 = vmul.f32 %v2300, %v2306
        %v2324 = vld [vmem:[%s4] sm:$0x1]
        %v2326 = vlaneseq
        %v2327 = vshrl.u32 %v2326, 7
        %v2328 = vsub.s32 0, %v2327
        %v2329 = vrot.slane %v2324, %v2328
        %v2331 = vadd.f32 %v2308, %v2329
        %v2332 = vadd.f32 %v2309, %v2329
        %v2333 = vadd.f32 %v2310, %v2329
        %v2334 = vadd.f32 %v2311, %v2329
        %v2335 = vadd.f32 %v2312, %v2329
        %v2336 = vadd.f32 %v2313, %v2329
        %v2337 = vadd.f32 %v2314, %v2329
        %v2338 = vadd.f32 %v2315, %v2329
        %v2339 = vadd.f32 %v2316, %v2329
        %v2340 = vadd.f32 %v2317, %v2329
        %v2341 = vadd.f32 %v2318, %v2329
        %v2342 = vadd.f32 %v2319, %v2329
        %v2343 = vadd.f32 %v2320, %v2329
        %v2344 = vadd.f32 %v2321, %v2329
        %v2345 = vadd.f32 %v2322, %v2329
        %v2346 = vadd.f32 %v2323, %v2329
        %v2347 = vmax.f32 %v2331, 0.0
        %v2348 = vmax.f32 %v2332, 0.0
        %v2349 = vmax.f32 %v2333, 0.0
        %v2350 = vmax.f32 %v2334, 0.0
        %v2351 = vmax.f32 %v2335, 0.0
        %v2352 = vmax.f32 %v2336, 0.0
        %v2353 = vmax.f32 %v2337, 0.0
        %v2354 = vmax.f32 %v2338, 0.0
        %v2355 = vmax.f32 %v2339, 0.0
        %v2356 = vmax.f32 %v2340, 0.0
        %v2357 = vmax.f32 %v2341, 0.0
        %v2358 = vmax.f32 %v2342, 0.0
        %v2359 = vmax.f32 %v2343, 0.0
        %v2360 = vmax.f32 %v2344, 0.0
        %v2361 = vmax.f32 %v2345, 0.0
        %v2362 = vmax.f32 %v2346, 0.0
        %2363 = vmatprep.subr.mxu0 0.0
        %2364 = vmatpush1.msra.mxu0 %v347
        %2365 = vmatprep.subr.mxu0 0.0
        %2366 = vmatpush1.msra.mxu0 0.0
        %2367 = vmatprep.subr.mxu0 0.0
        %2368 = vmatpush1.msra.mxu0 0.0
        %2369 = vmatprep.subr.mxu0 0.0
        %2370 = vmatpush1.msra.mxu0 0.0
        %2371 = vmatprep.subr.mxu0 0.0
        %2372 = vmatpush1.msra.mxu0 0.0
        %2373 = vmatprep.subr.mxu0 0.0
        %2374 = vmatpush1.msra.mxu0 0.0
        %2375 = vmatprep.subr.mxu0 0.0
        %2376 = vmatpush1.msra.mxu0 0.0
        %2377 = vmatprep.subr.mxu0 0.0
        %2378 = vmatpush1.msra.mxu0 0.0
        %2379 = vmatprep.subr.mxu0 0.0
        %2380 = vmatpush1.msra.mxu0 0.0
        %2381 = vmatprep.subr.mxu0 0.0
        %2382 = vmatpush1.msra.mxu0 0.0
        %2383 = vmatprep.subr.mxu0 0.0
        %2384 = vmatpush1.msra.mxu0 0.0
        %2385 = vmatprep.subr.mxu0 0.0
        %2386 = vmatpush1.msra.mxu0 0.0
        %2387 = vmatprep.subr.mxu0 0.0
        %2388 = vmatpush1.msra.mxu0 0.0
        %2389 = vmatprep.subr.mxu0 0.0
        %2390 = vmatpush1.msra.mxu0 0.0
        %2391 = vmatprep.subr.mxu0 0.0
        %2392 = vmatpush1.msra.mxu0 0.0
        %2393 = vmatprep.subr.mxu0 0.0
        %2394 = vmatpush1.msra.mxu0 0.0
        %2395 = vmatprep.subr.mxu0 0.0
        %2396 = vmatpush1.msra.mxu0 0.0
        %2397 = vmatprep.subr.mxu0 0.0
        %2398 = vmatpush1.msra.mxu0 0.0
        %2399 = vmatprep.subr.mxu0 0.0
        %2400 = vmatpush1.msra.mxu0 0.0
        %2401 = vmatprep.subr.mxu0 0.0
        %2402 = vmatpush1.msra.mxu0 0.0
        %2403 = vmatprep.subr.mxu0 0.0
        %2404 = vmatpush1.msra.mxu0 0.0
        %2405 = vmatprep.subr.mxu0 0.0
        %2406 = vmatpush1.msra.mxu0 0.0
        %2407 = vmatprep.subr.mxu0 0.0
        %2408 = vmatpush1.msra.mxu0 0.0
        %2409 = vmatprep.subr.mxu0 0.0
        %2410 = vmatpush1.msra.mxu0 0.0
        %2411 = vmatprep.subr.mxu0 0.0
        %2412 = vmatpush1.msra.mxu0 0.0
        %2413 = vmatprep.subr.mxu0 0.0
        %2414 = vmatpush1.msra.mxu0 0.0
        %2415 = vmatprep.subr.mxu0 0.0
        %2416 = vmatpush1.msra.mxu0 0.0
        %2417 = vmatprep.subr.mxu0 0.0
        %2418 = vmatpush1.msra.mxu0 0.0
        %2419 = vmatprep.subr.mxu0 0.0
        %2420 = vmatpush1.msra.mxu0 0.0
        %2421 = vmatprep.subr.mxu0 0.0
        %2422 = vmatpush1.msra.mxu0 0.0
        %2423 = vmatprep.subr.mxu0 0.0
        %2424 = vmatpush1.msra.mxu0 0.0
        %2425 = vmatprep.subr.mxu0 0.0
        %2426 = vmatpush1.msra.mxu0 0.0
        %2427 = vmatprep.mubr.f32.mxu0 0.0
        %2428 = vmatmul.mubr.f32.gmra.mrb[0].mxu0 %v708
        %v2429 = vpop.f32.mrb[0].mxu0
        %v2430 = vadd.f32 0.0, %v2429
        %v2431 = vpop.f32.mrb[0].mxu0
        %2432 = vmatprep.mubr.f32.mxu0 0.0
        %2433 = vmatmul.mubr.f32.gmra.mrb[0].mxu0 %v711
        %v2434 = vpop.f32.mrb[0].mxu0
        %v2435 = vadd.f32 0.0, %v2434
        %v2436 = vpop.f32.mrb[0].mxu0
        %2437 = vmatprep.mubr.f32.mxu0 0.0
        %2438 = vmatmul.mubr.f32.gmra.mrb[0].mxu0 %v714
        %v2439 = vpop.f32.mrb[0].mxu0
        %v2440 = vadd.f32 0.0, %v2439
        %v2441 = vpop.f32.mrb[0].mxu0
        %2442 = vmatprep.mubr.f32.mxu0 0.0
        %2443 = vmatmul.mubr.f32.gmra.mrb[0].mxu0 %v717
        %v2444 = vpop.f32.mrb[0].mxu0
        %v2445 = vadd.f32 0.0, %v2444
        %v2446 = vpop.f32.mrb[0].mxu0
        %2447 = vmatprep.mubr.f32.mxu0 0.0
        %2448 = vmatmul.mubr.f32.gmra.mrb[0].mxu0 %v720
        %v2449 = vpop.f32.mrb[0].mxu0
        %v2450 = vadd.f32 0.0, %v2449
        %v2451 = vpop.f32.mrb[0].mxu0
        %2452 = vmatprep.mubr.f32.mxu0 0.0
        %2453 = vmatmul.mubr.f32.gmra.mrb[0].mxu0 %v723
        %v2454 = vpop.f32.mrb[0].mxu0
        %v2455 = vadd.f32 0.0, %v2454
        %v2456 = vpop.f32.mrb[0].mxu0
        %2457 = vmatprep.mubr.f32.mxu0 0.0
        %2458 = vmatmul.mubr.f32.gmra.mrb[0].mxu0 %v726
        %v2459 = vpop.f32.mrb[0].mxu0
        %v2460 = vadd.f32 0.0, %v2459
        %v2461 = vpop.f32.mrb[0].mxu0
        %2462 = vmatprep.mubr.f32.mxu0 0.0
        %2463 = vmatmul.mubr.f32.gmra.mrb[0].mxu0 %v729
        %v2464 = vpop.f32.mrb[0].mxu0
        %v2465 = vadd.f32 0.0, %v2464
        %v2466 = vpop.f32.mrb[0].mxu0
        %2467 = vmatprep.mubr.f32.mxu0 0.0
        %2468 = vmatmul.mubr.f32.gmra.mrb[0].mxu0 %v732
        %v2469 = vpop.f32.mrb[0].mxu0
        %v2470 = vadd.f32 0.0, %v2469
        %v2471 = vpop.f32.mrb[0].mxu0
        %2472 = vmatprep.mubr.f32.mxu0 0.0
        %2473 = vmatmul.mubr.f32.gmra.mrb[0].mxu0 %v735
        %v2474 = vpop.f32.mrb[0].mxu0
        %v2475 = vadd.f32 0.0, %v2474
        %v2476 = vpop.f32.mrb[0].mxu0
        %2477 = vmatprep.mubr.f32.mxu0 0.0
        %2478 = vmatmul.mubr.f32.gmra.mrb[0].mxu0 %v738
        %v2479 = vpop.f32.mrb[0].mxu0
        %v2480 = vadd.f32 0.0, %v2479
        %v2481 = vpop.f32.mrb[0].mxu0
        %2482 = vmatprep.mubr.f32.mxu0 0.0
        %2483 = vmatmul.mubr.f32.gmra.mrb[0].mxu0 %v741
        %v2484 = vpop.f32.mrb[0].mxu0
        %v2485 = vadd.f32 0.0, %v2484
        %v2486 = vpop.f32.mrb[0].mxu0
        %2487 = vmatprep.mubr.f32.mxu0 0.0
        %2488 = vmatmul.mubr.f32.gmra.mrb[0].mxu0 %v744
        %v2489 = vpop.f32.mrb[0].mxu0
        %v2490 = vadd.f32 0.0, %v2489
        %v2491 = vpop.f32.mrb[0].mxu0
        %2492 = vmatprep.mubr.f32.mxu0 0.0
        %2493 = vmatmul.mubr.f32.gmra.mrb[0].mxu0 %v747
        %v2494 = vpop.f32.mrb[0].mxu0
        %v2495 = vadd.f32 0.0, %v2494
        %v2496 = vpop.f32.mrb[0].mxu0
        %2497 = vmatprep.mubr.f32.mxu0 0.0
        %2498 = vmatmul.mubr.f32.gmra.mrb[0].mxu0 %v750
        %v2499 = vpop.f32.mrb[0].mxu0
        %v2500 = vadd.f32 0.0, %v2499
        %v2501 = vpop.f32.mrb[0].mxu0
        %2502 = vmatprep.mubr.f32.mxu0 0.0
        %2503 = vmatmul.mubr.f32.gmra.mrb[0].mxu0 %v753
        %v2504 = vpop.f32.mrb[0].mxu0
        %v2505 = vadd.f32 0.0, %v2504
        %v2506 = vpop.f32.mrb[0].mxu0
        %2507 = vdwg.mxu0
        %2508 = vmatprep.subr.mxu0 0.0
        %2509 = vmatpush1.msra.mxu0 %v543
        %2510 = vmatprep.subr.mxu0 0.0
        %2511 = vmatpush1.msra.mxu0 0.0
        %2512 = vmatprep.subr.mxu0 0.0
        %2513 = vmatpush1.msra.mxu0 0.0
        %2514 = vmatprep.subr.mxu0 0.0
        %2515 = vmatpush1.msra.mxu0 0.0
        %2516 = vmatprep.subr.mxu0 0.0
        %2517 = vmatpush1.msra.mxu0 0.0
        %2518 = vmatprep.subr.mxu0 0.0
        %2519 = vmatpush1.msra.mxu0 0.0
        %2520 = vmatprep.subr.mxu0 0.0
        %2521 = vmatpush1.msra.mxu0 0.0
        %2522 = vmatprep.subr.mxu0 0.0
        %2523 = vmatpush1.msra.mxu0 0.0
        %2524 = vmatprep.subr.mxu0 0.0
        %2525 = vmatpush1.msra.mxu0 0.0
        %2526 = vmatprep.subr.mxu0 0.0
        %2527 = vmatpush1.msra.mxu0 0.0
        %2528 = vmatprep.subr.mxu0 0.0
        %2529 = vmatpush1.msra.mxu0 0.0
        %2530 = vmatprep.subr.mxu0 0.0
        %2531 = vmatpush1.msra.mxu0 0.0
        %2532 = vmatprep.subr.mxu0 0.0
        %2533 = vmatpush1.msra.mxu0 0.0
        %2534 = vmatprep.subr.mxu0 0.0
        %2535 = vmatpush1.msra.mxu0 0.0
        %2536 = vmatprep.subr.mxu0 0.0
        %2537 = vmatpush1.msra.mxu0 0.0
        %2538 = vmatprep.subr.mxu0 0.0
        %2539 = vmatpush1.msra.mxu0 0.0
        %2540 = vmatprep.subr.mxu0 0.0
        %2541 = vmatpush1.msra.mxu0 0.0
        %2542 = vmatprep.subr.mxu0 0.0
        %2543 = vmatpush1.msra.mxu0 0.0
        %2544 = vmatprep.subr.mxu0 0.0
        %2545 = vmatpush1.msra.mxu0 0.0
        %2546 = vmatprep.subr.mxu0 0.0
        %2547 = vmatpush1.msra.mxu0 0.0
        %2548 = vmatprep.subr.mxu0 0.0
        %2549 = vmatpush1.msra.mxu0 0.0
        %2550 = vmatprep.subr.mxu0 0.0
        %2551 = vmatpush1.msra.mxu0 0.0
        %2552 = vmatprep.subr.mxu0 0.0
        %2553 = vmatpush1.msra.mxu0 0.0
        %2554 = vmatprep.subr.mxu0 0.0
        %2555 = vmatpush1.msra.mxu0 0.0
        %2556 = vmatprep.subr.mxu0 0.0
        %2557 = vmatpush1.msra.mxu0 0.0
        %2558 = vmatprep.subr.mxu0 0.0
        %2559 = vmatpush1.msra.mxu0 0.0
        %2560 = vmatprep.subr.mxu0 0.0
        %2561 = vmatpush1.msra.mxu0 0.0
        %2562 = vmatprep.subr.mxu0 0.0
        %2563 = vmatpush1.msra.mxu0 0.0
        %2564 = vmatprep.subr.mxu0 0.0
        %2565 = vmatpush1.msra.mxu0 0.0
        %2566 = vmatprep.subr.mxu0 0.0
        %2567 = vmatpush1.msra.mxu0 0.0
        %2568 = vmatprep.subr.mxu0 0.0
        %2569 = vmatpush1.msra.mxu0 0.0
        %2570 = vmatprep.subr.mxu0 0.0
        %2571 = vmatpush1.msra.mxu0 0.0
        %2572 = vmatprep.mubr.f32.mxu0 0.0
        %2573 = vmatmul.mubr.f32.gmra.mrb[0].mxu0 %v298
        %v2574 = vpop.f32.mrb[0].mxu0
        %v2575 = vadd.f32 %v2430, %v2574
        %v2576 = vpop.f32.mrb[0].mxu0
        %2577 = vmatprep.mubr.f32.mxu0 0.0
        %2578 = vmatmul.mubr.f32.gmra.mrb[0].mxu0 %v301
        %v2579 = vpop.f32.mrb[0].mxu0
        %v2580 = vadd.f32 %v2435, %v2579
        %v2581 = vpop.f32.mrb[0].mxu0
        %2582 = vmatprep.mubr.f32.mxu0 0.0
        %2583 = vmatmul.mubr.f32.gmra.mrb[0].mxu0 %v304
        %v2584 = vpop.f32.mrb[0].mxu0
        %v2585 = vadd.f32 %v2440, %v2584
        %v2586 = vpop.f32.mrb[0].mxu0
        %2587 = vmatprep.mubr.f32.mxu0 0.0
        %2588 = vmatmul.mubr.f32.gmra.mrb[0].mxu0 %v307
        %v2589 = vpop.f32.mrb[0].mxu0
        %v2590 = vadd.f32 %v2445, %v2589
        %v2591 = vpop.f32.mrb[0].mxu0
        %2592 = vmatprep.mubr.f32.mxu0 0.0
        %2593 = vmatmul.mubr.f32.gmra.mrb[0].mxu0 %v310
        %v2594 = vpop.f32.mrb[0].mxu0
        %v2595 = vadd.f32 %v2450, %v2594
        %v2596 = vpop.f32.mrb[0].mxu0
        %2597 = vmatprep.mubr.f32.mxu0 0.0
        %2598 = vmatmul.mubr.f32.gmra.mrb[0].mxu0 %v313
        %v2599 = vpop.f32.mrb[0].mxu0
        %v2600 = vadd.f32 %v2455, %v2599
        %v2601 = vpop.f32.mrb[0].mxu0
        %2602 = vmatprep.mubr.f32.mxu0 0.0
        %2603 = vmatmul.mubr.f32.gmra.mrb[0].mxu0 %v316
        %v2604 = vpop.f32.mrb[0].mxu0
        %v2605 = vadd.f32 %v2460, %v2604
        %v2606 = vpop.f32.mrb[0].mxu0
        %2607 = vmatprep.mubr.f32.mxu0 0.0
        %2608 = vmatmul.mubr.f32.gmra.mrb[0].mxu0 %v319
        %v2609 = vpop.f32.mrb[0].mxu0
        %v2610 = vadd.f32 %v2465, %v2609
        %v2611 = vpop.f32.mrb[0].mxu0
        %2612 = vmatprep.mubr.f32.mxu0 0.0
        %2613 = vmatmul.mubr.f32.gmra.mrb[0].mxu0 %v322
        %v2614 = vpop.f32.mrb[0].mxu0
        %v2615 = vadd.f32 %v2470, %v2614
        %v2616 = vpop.f32.mrb[0].mxu0
        %2617 = vmatprep.mubr.f32.mxu0 0.0
        %2618 = vmatmul.mubr.f32.gmra.mrb[0].mxu0 %v325
        %v2619 = vpop.f32.mrb[0].mxu0
        %v2620 = vadd.f32 %v2475, %v2619
        %v2621 = vpop.f32.mrb[0].mxu0
        %2622 = vmatprep.mubr.f32.mxu0 0.0
        %2623 = vmatmul.mubr.f32.gmra.mrb[0].mxu0 %v328
        %v2624 = vpop.f32.mrb[0].mxu0
        %v2625 = vadd.f32 %v2480, %v2624
        %v2626 = vpop.f32.mrb[0].mxu0
        %2627 = vmatprep.mubr.f32.mxu0 0.0
        %2628 = vmatmul.mubr.f32.gmra.mrb[0].mxu0 %v331
        %v2629 = vpop.f32.mrb[0].mxu0
        %v2630 = vadd.f32 %v2485, %v2629
        %v2631 = vpop.f32.mrb[0].mxu0
        %2632 = vmatprep.mubr.f32.mxu0 0.0
        %2633 = vmatmul.mubr.f32.gmra.mrb[0].mxu0 %v334
        %v2634 = vpop.f32.mrb[0].mxu0
        %v2635 = vadd.f32 %v2490, %v2634
        %v2636 = vpop.f32.mrb[0].mxu0
        %2637 = vmatprep.mubr.f32.mxu0 0.0
        %2638 = vmatmul.mubr.f32.gmra.mrb[0].mxu0 %v337
        %v2639 = vpop.f32.mrb[0].mxu0
        %v2640 = vadd.f32 %v2495, %v2639
        %v2641 = vpop.f32.mrb[0].mxu0
        %2642 = vmatprep.mubr.f32.mxu0 0.0
        %2643 = vmatmul.mubr.f32.gmra.mrb[0].mxu0 %v340
        %v2644 = vpop.f32.mrb[0].mxu0
        %v2645 = vadd.f32 %v2500, %v2644
        %v2646 = vpop.f32.mrb[0].mxu0
        %2647 = vmatprep.mubr.f32.mxu0 0.0
        %2648 = vmatmul.mubr.f32.gmra.mrb[0].mxu0 %v343
        %v2649 = vpop.f32.mrb[0].mxu0
        %v2650 = vadd.f32 %v2505, %v2649
        %v2651 = vpop.f32.mrb[0].mxu0
        %2652 = vdwg.mxu0
        %v2653 = vld [vmem:[%s278 + $0x1] sm:$0xff]
        %v2654 = vld [vmem:[%s278 + $0x11] sm:$0xff]
        %v2655 = vld [vmem:[%s278 + $0x21] sm:$0xff]
        %v2656 = vld [vmem:[%s278 + $0x31] sm:$0xff]
        %v2657 = vld [vmem:[%s278 + $0x41] sm:$0xff]
        %v2658 = vld [vmem:[%s278 + $0x51] sm:$0xff]
        %v2659 = vld [vmem:[%s278 + $0x61] sm:$0xff]
        %v2660 = vld [vmem:[%s278 + $0x71] sm:$0xff]
        %v2661 = vld [vmem:[%s278 + $0x81] sm:$0xff]
        %v2662 = vld [vmem:[%s278 + $0x91] sm:$0xff]
        %v2663 = vld [vmem:[%s278 + $0xa1] sm:$0xff]
        %v2664 = vld [vmem:[%s278 + $0xb1] sm:$0xff]
        %v2665 = vld [vmem:[%s278 + $0xc1] sm:$0xff]
        %v2666 = vld [vmem:[%s278 + $0xd1] sm:$0xff]
        %v2667 = vld [vmem:[%s278 + $0xe1] sm:$0xff]
        %v2668 = vld [vmem:[%s278 + $0xf1] sm:$0xff]
        %v2670 = vsel %vm296, %v2653, 0
        %v2673 = vsel %vm296, %v2654, 0
        %v2676 = vsel %vm296, %v2655, 0
        %v2679 = vsel %vm296, %v2656, 0
        %v2682 = vsel %vm296, %v2657, 0
        %v2685 = vsel %vm296, %v2658, 0
        %v2688 = vsel %vm296, %v2659, 0
        %v2691 = vsel %vm296, %v2660, 0
        %v2694 = vsel %vm296, %v2661, 0
        %v2697 = vsel %vm296, %v2662, 0
        %v2700 = vsel %vm296, %v2663, 0
        %v2703 = vsel %vm296, %v2664, 0
        %v2706 = vsel %vm296, %v2665, 0
        %v2709 = vsel %vm296, %v2666, 0
        %v2712 = vsel %vm296, %v2667, 0
        %v2715 = vsel %vm296, %v2668, 0
        %2717 = vmatprep.subr.mxu0 0.0
        %2718 = vmatpush1.msra.mxu0 %v756
        %2719 = vmatprep.subr.mxu0 0.0
        %2720 = vmatpush1.msra.mxu0 0.0
        %2721 = vmatprep.subr.mxu0 0.0
        %2722 = vmatpush1.msra.mxu0 0.0
        %2723 = vmatprep.subr.mxu0 0.0
        %2724 = vmatpush1.msra.mxu0 0.0
        %2725 = vmatprep.subr.mxu0 0.0
        %2726 = vmatpush1.msra.mxu0 0.0
        %2727 = vmatprep.subr.mxu0 0.0
        %2728 = vmatpush1.msra.mxu0 0.0
        %2729 = vmatprep.subr.mxu0 0.0
        %2730 = vmatpush1.msra.mxu0 0.0
        %2731 = vmatprep.subr.mxu0 0.0
        %2732 = vmatpush1.msra.mxu0 0.0
        %2733 = vmatprep.subr.mxu0 0.0
        %2734 = vmatpush1.msra.mxu0 0.0
        %2735 = vmatprep.subr.mxu0 0.0
        %2736 = vmatpush1.msra.mxu0 0.0
        %2737 = vmatprep.subr.mxu0 0.0
        %2738 = vmatpush1.msra.mxu0 0.0
        %2739 = vmatprep.subr.mxu0 0.0
        %2740 = vmatpush1.msra.mxu0 0.0
        %2741 = vmatprep.subr.mxu0 0.0
        %2742 = vmatpush1.msra.mxu0 0.0
        %2743 = vmatprep.subr.mxu0 0.0
        %2744 = vmatpush1.msra.mxu0 0.0
        %2745 = vmatprep.subr.mxu0 0.0
        %2746 = vmatpush1.msra.mxu0 0.0
        %2747 = vmatprep.subr.mxu0 0.0
        %2748 = vmatpush1.msra.mxu0 0.0
        %2749 = vmatprep.subr.mxu0 0.0
        %2750 = vmatpush1.msra.mxu0 0.0
        %2751 = vmatprep.subr.mxu0 0.0
        %2752 = vmatpush1.msra.mxu0 0.0
        %2753 = vmatprep.subr.mxu0 0.0
        %2754 = vmatpush1.msra.mxu0 0.0
        %2755 = vmatprep.subr.mxu0 0.0
        %2756 = vmatpush1.msra.mxu0 0.0
        %2757 = vmatprep.subr.mxu0 0.0
        %2758 = vmatpush1.msra.mxu0 0.0
        %2759 = vmatprep.subr.mxu0 0.0
        %2760 = vmatpush1.msra.mxu0 0.0
        %2761 = vmatprep.subr.mxu0 0.0
        %2762 = vmatpush1.msra.mxu0 0.0
        %2763 = vmatprep.subr.mxu0 0.0
        %2764 = vmatpush1.msra.mxu0 0.0
        %2765 = vmatprep.subr.mxu0 0.0
        %2766 = vmatpush1.msra.mxu0 0.0
        %2767 = vmatprep.subr.mxu0 0.0
        %2768 = vmatpush1.msra.mxu0 0.0
        %2769 = vmatprep.subr.mxu0 0.0
        %2770 = vmatpush1.msra.mxu0 0.0
        %2771 = vmatprep.subr.mxu0 0.0
        %2772 = vmatpush1.msra.mxu0 0.0
        %2773 = vmatprep.subr.mxu0 0.0
        %2774 = vmatpush1.msra.mxu0 0.0
        %2775 = vmatprep.subr.mxu0 0.0
        %2776 = vmatpush1.msra.mxu0 0.0
        %2777 = vmatprep.subr.mxu0 0.0
        %2778 = vmatpush1.msra.mxu0 0.0
        %2779 = vmatprep.subr.mxu0 0.0
        %2780 = vmatpush1.msra.mxu0 0.0
        %2781 = vmatprep.mubr.f32.mxu0 0.0
        %2782 = vmatmul.mubr.f32.gmra.mrb[0].mxu0 %v2670
        %v2783 = vpop.f32.mrb[0].mxu0
        %v2784 = vadd.f32 0.0, %v2783
        %v2785 = vpop.f32.mrb[0].mxu0
        %2786 = vmatprep.mubr.f32.mxu0 0.0
        %2787 = vmatmul.mubr.f32.gmra.mrb[0].mxu0 %v2673
        %v2788 = vpop.f32.mrb[0].mxu0
        %v2789 = vadd.f32 0.0, %v2788
        %v2790 = vpop.f32.mrb[0].mxu0
        %2791 = vmatprep.mubr.f32.mxu0 0.0
        %2792 = vmatmul.mubr.f32.gmra.mrb[0].mxu0 %v2676
        %v2793 = vpop.f32.mrb[0].mxu0
        %v2794 = vadd.f32 0.0, %v2793
        %v2795 = vpop.f32.mrb[0].mxu0
        %2796 = vmatprep.mubr.f32.mxu0 0.0
        %2797 = vmatmul.mubr.f32.gmra.mrb[0].mxu0 %v2679
        %v2798 = vpop.f32.mrb[0].mxu0
        %v2799 = vadd.f32 0.0, %v2798
        %v2800 = vpop.f32.mrb[0].mxu0
        %2801 = vmatprep.mubr.f32.mxu0 0.0
        %2802 = vmatmul.mubr.f32.gmra.mrb[0].mxu0 %v2682
        %v2803 = vpop.f32.mrb[0].mxu0
        %v2804 = vadd.f32 0.0, %v2803
        %v2805 = vpop.f32.mrb[0].mxu0
        %2806 = vmatprep.mubr.f32.mxu0 0.0
        %2807 = vmatmul.mubr.f32.gmra.mrb[0].mxu0 %v2685
        %v2808 = vpop.f32.mrb[0].mxu0
        %v2809 = vadd.f32 0.0, %v2808
        %v2810 = vpop.f32.mrb[0].mxu0
        %2811 = vmatprep.mubr.f32.mxu0 0.0
        %2812 = vmatmul.mubr.f32.gmra.mrb[0].mxu0 %v2688
        %v2813 = vpop.f32.mrb[0].mxu0
        %v2814 = vadd.f32 0.0, %v2813
        %v2815 = vpop.f32.mrb[0].mxu0
        %2816 = vmatprep.mubr.f32.mxu0 0.0
        %2817 = vmatmul.mubr.f32.gmra.mrb[0].mxu0 %v2691
        %v2818 = vpop.f32.mrb[0].mxu0
        %v2819 = vadd.f32 0.0, %v2818
        %v2820 = vpop.f32.mrb[0].mxu0
        %2821 = vmatprep.mubr.f32.mxu0 0.0
        %2822 = vmatmul.mubr.f32.gmra.mrb[0].mxu0 %v2694
        %v2823 = vpop.f32.mrb[0].mxu0
        %v2824 = vadd.f32 0.0, %v2823
        %v2825 = vpop.f32.mrb[0].mxu0
        %2826 = vmatprep.mubr.f32.mxu0 0.0
        %2827 = vmatmul.mubr.f32.gmra.mrb[0].mxu0 %v2697
        %v2828 = vpop.f32.mrb[0].mxu0
        %v2829 = vadd.f32 0.0, %v2828
        %v2830 = vpop.f32.mrb[0].mxu0
        %2831 = vmatprep.mubr.f32.mxu0 0.0
        %2832 = vmatmul.mubr.f32.gmra.mrb[0].mxu0 %v2700
        %v2833 = vpop.f32.mrb[0].mxu0
        %v2834 = vadd.f32 0.0, %v2833
        %v2835 = vpop.f32.mrb[0].mxu0
        %2836 = vmatprep.mubr.f32.mxu0 0.0
        %2837 = vmatmul.mubr.f32.gmra.mrb[0].mxu0 %v2703
        %v2838 = vpop.f32.mrb[0].mxu0
        %v2839 = vadd.f32 0.0, %v2838
        %v2840 = vpop.f32.mrb[0].mxu0
        %2841 = vmatprep.mubr.f32.mxu0 0.0
        %2842 = vmatmul.mubr.f32.gmra.mrb[0].mxu0 %v2706
        %v2843 = vpop.f32.mrb[0].mxu0
        %v2844 = vadd.f32 0.0, %v2843
        %v2845 = vpop.f32.mrb[0].mxu0
        %2846 = vmatprep.mubr.f32.mxu0 0.0
        %2847 = vmatmul.mubr.f32.gmra.mrb[0].mxu0 %v2709
        %v2848 = vpop.f32.mrb[0].mxu0
        %v2849 = vadd.f32 0.0, %v2848
        %v2850 = vpop.f32.mrb[0].mxu0
        %2851 = vmatprep.mubr.f32.mxu0 0.0
        %2852 = vmatmul.mubr.f32.gmra.mrb[0].mxu0 %v2712
        %v2853 = vpop.f32.mrb[0].mxu0
        %v2854 = vadd.f32 0.0, %v2853
        %v2855 = vpop.f32.mrb[0].mxu0
        %2856 = vmatprep.mubr.f32.mxu0 0.0
        %2857 = vmatmul.mubr.f32.gmra.mrb[0].mxu0 %v2715
        %v2858 = vpop.f32.mrb[0].mxu0
        %v2859 = vadd.f32 0.0, %v2858
        %v2860 = vpop.f32.mrb[0].mxu0
        %2861 = vdwg.mxu0
        %v2862 = vadd.f32 %v2575, %v2784
        %v2863 = vadd.f32 %v2580, %v2789
        %v2864 = vadd.f32 %v2585, %v2794
        %v2865 = vadd.f32 %v2590, %v2799
        %v2866 = vadd.f32 %v2595, %v2804
        %v2867 = vadd.f32 %v2600, %v2809
        %v2868 = vadd.f32 %v2605, %v2814
        %v2869 = vadd.f32 %v2610, %v2819
        %v2870 = vadd.f32 %v2615, %v2824
        %v2871 = vadd.f32 %v2620, %v2829
        %v2872 = vadd.f32 %v2625, %v2834
        %v2873 = vadd.f32 %v2630, %v2839
        %v2874 = vadd.f32 %v2635, %v2844
        %v2875 = vadd.f32 %v2640, %v2849
        %v2876 = vadd.f32 %v2645, %v2854
        %v2877 = vadd.f32 %v2650, %v2859
        %2878 = vmatprep.subr.mxu0 0.0
        %2879 = vmatpush1.msra.mxu0 %v988
        %2880 = vmatprep.subr.mxu0 0.0
        %2881 = vmatpush1.msra.mxu0 0.0
        %2882 = vmatprep.subr.mxu0 0.0
        %2883 = vmatpush1.msra.mxu0 0.0
        %2884 = vmatprep.subr.mxu0 0.0
        %2885 = vmatpush1.msra.mxu0 0.0
        %2886 = vmatprep.subr.mxu0 0.0
        %2887 = vmatpush1.msra.mxu0 0.0
        %2888 = vmatprep.subr.mxu0 0.0
        %2889 = vmatpush1.msra.mxu0 0.0
        %2890 = vmatprep.subr.mxu0 0.0
        %2891 = vmatpush1.msra.mxu0 0.0
        %2892 = vmatprep.subr.mxu0 0.0
        %2893 = vmatpush1.msra.mxu0 0.0
        %2894 = vmatprep.subr.mxu0 0.0
        %2895 = vmatpush1.msra.mxu0 0.0
        %2896 = vmatprep.subr.mxu0 0.0
        %2897 = vmatpush1.msra.mxu0 0.0
        %2898 = vmatprep.subr.mxu0 0.0
        %2899 = vmatpush1.msra.mxu0 0.0
        %2900 = vmatprep.subr.mxu0 0.0
        %2901 = vmatpush1.msra.mxu0 0.0
        %2902 = vmatprep.subr.mxu0 0.0
        %2903 = vmatpush1.msra.mxu0 0.0
        %2904 = vmatprep.subr.mxu0 0.0
        %2905 = vmatpush1.msra.mxu0 0.0
        %2906 = vmatprep.subr.mxu0 0.0
        %2907 = vmatpush1.msra.mxu0 0.0
        %2908 = vmatprep.subr.mxu0 0.0
        %2909 = vmatpush1.msra.mxu0 0.0
        %2910 = vmatprep.subr.mxu0 0.0
        %2911 = vmatpush1.msra.mxu0 0.0
        %2912 = vmatprep.subr.mxu0 0.0
        %2913 = vmatpush1.msra.mxu0 0.0
        %2914 = vmatprep.subr.mxu0 0.0
        %2915 = vmatpush1.msra.mxu0 0.0
        %2916 = vmatprep.subr.mxu0 0.0
        %2917 = vmatpush1.msra.mxu0 0.0
        %2918 = vmatprep.subr.mxu0 0.0
        %2919 = vmatpush1.msra.mxu0 0.0
        %2920 = vmatprep.subr.mxu0 0.0
        %2921 = vmatpush1.msra.mxu0 0.0
        %2922 = vmatprep.subr.mxu0 0.0
        %2923 = vmatpush1.msra.mxu0 0.0
        %2924 = vmatprep.subr.mxu0 0.0
        %2925 = vmatpush1.msra.mxu0 0.0
        %2926 = vmatprep.subr.mxu0 0.0
        %2927 = vmatpush1.msra.mxu0 0.0
        %2928 = vmatprep.subr.mxu0 0.0
        %2929 = vmatpush1.msra.mxu0 0.0
        %2930 = vmatprep.subr.mxu0 0.0
        %2931 = vmatpush1.msra.mxu0 0.0
        %2932 = vmatprep.subr.mxu0 0.0
        %2933 = vmatpush1.msra.mxu0 0.0
        %2934 = vmatprep.subr.mxu0 0.0
        %2935 = vmatpush1.msra.mxu0 0.0
        %2936 = vmatprep.subr.mxu0 0.0
        %2937 = vmatpush1.msra.mxu0 0.0
        %2938 = vmatprep.subr.mxu0 0.0
        %2939 = vmatpush1.msra.mxu0 0.0
        %2940 = vmatprep.subr.mxu0 0.0
        %2941 = vmatpush1.msra.mxu0 0.0
        %2942 = vmatprep.mubr.f32.mxu0 0.0
        %2943 = vmatmul.mubr.f32.gmra.mrb[0].mxu0 %v1170
        %v2944 = vpop.f32.mrb[0].mxu0
        %v2945 = vadd.f32 0.0, %v2944
        %v2946 = vpop.f32.mrb[0].mxu0
        %2947 = vmatprep.mubr.f32.mxu0 0.0
        %2948 = vmatmul.mubr.f32.gmra.mrb[0].mxu0 %v1173
        %v2949 = vpop.f32.mrb[0].mxu0
        %v2950 = vadd.f32 0.0, %v2949
        %v2951 = vpop.f32.mrb[0].mxu0
        %2952 = vmatprep.mubr.f32.mxu0 0.0
        %2953 = vmatmul.mubr.f32.gmra.mrb[0].mxu0 %v1176
        %v2954 = vpop.f32.mrb[0].mxu0
        %v2955 = vadd.f32 0.0, %v2954
        %v2956 = vpop.f32.mrb[0].mxu0
        %2957 = vmatprep.mubr.f32.mxu0 0.0
        %2958 = vmatmul.mubr.f32.gmra.mrb[0].mxu0 %v1179
        %v2959 = vpop.f32.mrb[0].mxu0
        %v2960 = vadd.f32 0.0, %v2959
        %v2961 = vpop.f32.mrb[0].mxu0
        %2962 = vmatprep.mubr.f32.mxu0 0.0
        %2963 = vmatmul.mubr.f32.gmra.mrb[0].mxu0 %v1182
        %v2964 = vpop.f32.mrb[0].mxu0
        %v2965 = vadd.f32 0.0, %v2964
        %v2966 = vpop.f32.mrb[0].mxu0
        %2967 = vmatprep.mubr.f32.mxu0 0.0
        %2968 = vmatmul.mubr.f32.gmra.mrb[0].mxu0 %v1185
        %v2969 = vpop.f32.mrb[0].mxu0
        %v2970 = vadd.f32 0.0, %v2969
        %v2971 = vpop.f32.mrb[0].mxu0
        %2972 = vmatprep.mubr.f32.mxu0 0.0
        %2973 = vmatmul.mubr.f32.gmra.mrb[0].mxu0 %v1188
        %v2974 = vpop.f32.mrb[0].mxu0
        %v2975 = vadd.f32 0.0, %v2974
        %v2976 = vpop.f32.mrb[0].mxu0
        %2977 = vmatprep.mubr.f32.mxu0 0.0
        %2978 = vmatmul.mubr.f32.gmra.mrb[0].mxu0 %v1191
        %v2979 = vpop.f32.mrb[0].mxu0
        %v2980 = vadd.f32 0.0, %v2979
        %v2981 = vpop.f32.mrb[0].mxu0
        %2982 = vmatprep.mubr.f32.mxu0 0.0
        %2983 = vmatmul.mubr.f32.gmra.mrb[0].mxu0 %v1194
        %v2984 = vpop.f32.mrb[0].mxu0
        %v2985 = vadd.f32 0.0, %v2984
        %v2986 = vpop.f32.mrb[0].mxu0
        %2987 = vmatprep.mubr.f32.mxu0 0.0
        %2988 = vmatmul.mubr.f32.gmra.mrb[0].mxu0 %v1197
        %v2989 = vpop.f32.mrb[0].mxu0
        %v2990 = vadd.f32 0.0, %v2989
        %v2991 = vpop.f32.mrb[0].mxu0
        %2992 = vmatprep.mubr.f32.mxu0 0.0
        %2993 = vmatmul.mubr.f32.gmra.mrb[0].mxu0 %v1200
        %v2994 = vpop.f32.mrb[0].mxu0
        %v2995 = vadd.f32 0.0, %v2994
        %v2996 = vpop.f32.mrb[0].mxu0
        %2997 = vmatprep.mubr.f32.mxu0 0.0
        %2998 = vmatmul.mubr.f32.gmra.mrb[0].mxu0 %v1203
        %v2999 = vpop.f32.mrb[0].mxu0
        %v3000 = vadd.f32 0.0, %v2999
        %v3001 = vpop.f32.mrb[0].mxu0
        %3002 = vmatprep.mubr.f32.mxu0 0.0
        %3003 = vmatmul.mubr.f32.gmra.mrb[0].mxu0 %v1206
        %v3004 = vpop.f32.mrb[0].mxu0
        %v3005 = vadd.f32 0.0, %v3004
        %v3006 = vpop.f32.mrb[0].mxu0
        %3007 = vmatprep.mubr.f32.mxu0 0.0
        %3008 = vmatmul.mubr.f32.gmra.mrb[0].mxu0 %v1209
        %v3009 = vpop.f32.mrb[0].mxu0
        %v3010 = vadd.f32 0.0, %v3009
        %v3011 = vpop.f32.mrb[0].mxu0
        %3012 = vmatprep.mubr.f32.mxu0 0.0
        %3013 = vmatmul.mubr.f32.gmra.mrb[0].mxu0 %v1212
        %v3014 = vpop.f32.mrb[0].mxu0
        %v3015 = vadd.f32 0.0, %v3014
        %v3016 = vpop.f32.mrb[0].mxu0
        %3017 = vmatprep.mubr.f32.mxu0 0.0
        %3018 = vmatmul.mubr.f32.gmra.mrb[0].mxu0 %v1215
        %v3019 = vpop.f32.mrb[0].mxu0
        %v3020 = vadd.f32 0.0, %v3019
        %v3021 = vpop.f32.mrb[0].mxu0
        %3022 = vdwg.mxu0
        %v3023 = vadd.f32 %v2862, %v2945
        %v3024 = vadd.f32 %v2863, %v2950
        %v3025 = vadd.f32 %v2864, %v2955
        %v3026 = vadd.f32 %v2865, %v2960
        %v3027 = vadd.f32 %v2866, %v2965
        %v3028 = vadd.f32 %v2867, %v2970
        %v3029 = vadd.f32 %v2868, %v2975
        %v3030 = vadd.f32 %v2869, %v2980
        %v3031 = vadd.f32 %v2870, %v2985
        %v3032 = vadd.f32 %v2871, %v2990
        %v3033 = vadd.f32 %v2872, %v2995
        %v3034 = vadd.f32 %v2873, %v3000
        %v3035 = vadd.f32 %v2874, %v3005
        %v3036 = vadd.f32 %v2875, %v3010
        %v3037 = vadd.f32 %v2876, %v3015
        %v3038 = vadd.f32 %v2877, %v3020
        %3039 = vmatprep.subr.mxu0 0.0
        %3040 = vmatpush1.msra.mxu0 %v1218
        %3041 = vmatprep.subr.mxu0 0.0
        %3042 = vmatpush1.msra.mxu0 0.0
        %3043 = vmatprep.subr.mxu0 0.0
        %3044 = vmatpush1.msra.mxu0 0.0
        %3045 = vmatprep.subr.mxu0 0.0
        %3046 = vmatpush1.msra.mxu0 0.0
        %3047 = vmatprep.subr.mxu0 0.0
        %3048 = vmatpush1.msra.mxu0 0.0
        %3049 = vmatprep.subr.mxu0 0.0
        %3050 = vmatpush1.msra.mxu0 0.0
        %3051 = vmatprep.subr.mxu0 0.0
        %3052 = vmatpush1.msra.mxu0 0.0
        %3053 = vmatprep.subr.mxu0 0.0
        %3054 = vmatpush1.msra.mxu0 0.0
        %3055 = vmatprep.subr.mxu0 0.0
        %3056 = vmatpush1.msra.mxu0 0.0
        %3057 = vmatprep.subr.mxu0 0.0
        %3058 = vmatpush1.msra.mxu0 0.0
        %3059 = vmatprep.subr.mxu0 0.0
        %3060 = vmatpush1.msra.mxu0 0.0
        %3061 = vmatprep.subr.mxu0 0.0
        %3062 = vmatpush1.msra.mxu0 0.0
        %3063 = vmatprep.subr.mxu0 0.0
        %3064 = vmatpush1.msra.mxu0 0.0
        %3065 = vmatprep.subr.mxu0 0.0
        %3066 = vmatpush1.msra.mxu0 0.0
        %3067 = vmatprep.subr.mxu0 0.0
        %3068 = vmatpush1.msra.mxu0 0.0
        %3069 = vmatprep.subr.mxu0 0.0
        %3070 = vmatpush1.msra.mxu0 0.0
        %3071 = vmatprep.subr.mxu0 0.0
        %3072 = vmatpush1.msra.mxu0 0.0
        %3073 = vmatprep.subr.mxu0 0.0
        %3074 = vmatpush1.msra.mxu0 0.0
        %3075 = vmatprep.subr.mxu0 0.0
        %3076 = vmatpush1.msra.mxu0 0.0
        %3077 = vmatprep.subr.mxu0 0.0
        %3078 = vmatpush1.msra.mxu0 0.0
        %3079 = vmatprep.subr.mxu0 0.0
        %3080 = vmatpush1.msra.mxu0 0.0
        %3081 = vmatprep.subr.mxu0 0.0
        %3082 = vmatpush1.msra.mxu0 0.0
        %3083 = vmatprep.subr.mxu0 0.0
        %3084 = vmatpush1.msra.mxu0 0.0
        %3085 = vmatprep.subr.mxu0 0.0
        %3086 = vmatpush1.msra.mxu0 0.0
        %3087 = vmatprep.subr.mxu0 0.0
        %3088 = vmatpush1.msra.mxu0 0.0
        %3089 = vmatprep.subr.mxu0 0.0
        %3090 = vmatpush1.msra.mxu0 0.0
        %3091 = vmatprep.subr.mxu0 0.0
        %3092 = vmatpush1.msra.mxu0 0.0
        %3093 = vmatprep.subr.mxu0 0.0
        %3094 = vmatpush1.msra.mxu0 0.0
        %3095 = vmatprep.subr.mxu0 0.0
        %3096 = vmatpush1.msra.mxu0 0.0
        %3097 = vmatprep.subr.mxu0 0.0
        %3098 = vmatpush1.msra.mxu0 0.0
        %3099 = vmatprep.subr.mxu0 0.0
        %3100 = vmatpush1.msra.mxu0 0.0
        %3101 = vmatprep.subr.mxu0 0.0
        %3102 = vmatpush1.msra.mxu0 0.0
        %3103 = vmatprep.mubr.f32.mxu0 0.0
        %3104 = vmatmul.mubr.f32.gmra.mrb[0].mxu0 %v1399
        %v3105 = vpop.f32.mrb[0].mxu0
        %v3106 = vadd.f32 0.0, %v3105
        %v3107 = vpop.f32.mrb[0].mxu0
        %3108 = vmatprep.mubr.f32.mxu0 0.0
        %3109 = vmatmul.mubr.f32.gmra.mrb[0].mxu0 %v1402
        %v3110 = vpop.f32.mrb[0].mxu0
        %v3111 = vadd.f32 0.0, %v3110
        %v3112 = vpop.f32.mrb[0].mxu0
        %3113 = vmatprep.mubr.f32.mxu0 0.0
        %3114 = vmatmul.mubr.f32.gmra.mrb[0].mxu0 %v1405
        %v3115 = vpop.f32.mrb[0].mxu0
        %v3116 = vadd.f32 0.0, %v3115
        %v3117 = vpop.f32.mrb[0].mxu0
        %3118 = vmatprep.mubr.f32.mxu0 0.0
        %3119 = vmatmul.mubr.f32.gmra.mrb[0].mxu0 %v1408
        %v3120 = vpop.f32.mrb[0].mxu0
        %v3121 = vadd.f32 0.0, %v3120
        %v3122 = vpop.f32.mrb[0].mxu0
        %3123 = vmatprep.mubr.f32.mxu0 0.0
        %3124 = vmatmul.mubr.f32.gmra.mrb[0].mxu0 %v1411
        %v3125 = vpop.f32.mrb[0].mxu0
        %v3126 = vadd.f32 0.0, %v3125
        %v3127 = vpop.f32.mrb[0].mxu0
        %3128 = vmatprep.mubr.f32.mxu0 0.0
        %3129 = vmatmul.mubr.f32.gmra.mrb[0].mxu0 %v1414
        %v3130 = vpop.f32.mrb[0].mxu0
        %v3131 = vadd.f32 0.0, %v3130
        %v3132 = vpop.f32.mrb[0].mxu0
        %3133 = vmatprep.mubr.f32.mxu0 0.0
        %3134 = vmatmul.mubr.f32.gmra.mrb[0].mxu0 %v1417
        %v3135 = vpop.f32.mrb[0].mxu0
        %v3136 = vadd.f32 0.0, %v3135
        %v3137 = vpop.f32.mrb[0].mxu0
        %3138 = vmatprep.mubr.f32.mxu0 0.0
        %3139 = vmatmul.mubr.f32.gmra.mrb[0].mxu0 %v1420
        %v3140 = vpop.f32.mrb[0].mxu0
        %v3141 = vadd.f32 0.0, %v3140
        %v3142 = vpop.f32.mrb[0].mxu0
        %3143 = vmatprep.mubr.f32.mxu0 0.0
        %3144 = vmatmul.mubr.f32.gmra.mrb[0].mxu0 %v1423
        %v3145 = vpop.f32.mrb[0].mxu0
        %v3146 = vadd.f32 0.0, %v3145
        %v3147 = vpop.f32.mrb[0].mxu0
        %3148 = vmatprep.mubr.f32.mxu0 0.0
        %3149 = vmatmul.mubr.f32.gmra.mrb[0].mxu0 %v1426
        %v3150 = vpop.f32.mrb[0].mxu0
        %v3151 = vadd.f32 0.0, %v3150
        %v3152 = vpop.f32.mrb[0].mxu0
        %3153 = vmatprep.mubr.f32.mxu0 0.0
        %3154 = vmatmul.mubr.f32.gmra.mrb[0].mxu0 %v1429
        %v3155 = vpop.f32.mrb[0].mxu0
        %v3156 = vadd.f32 0.0, %v3155
        %v3157 = vpop.f32.mrb[0].mxu0
        %3158 = vmatprep.mubr.f32.mxu0 0.0
        %3159 = vmatmul.mubr.f32.gmra.mrb[0].mxu0 %v1432
        %v3160 = vpop.f32.mrb[0].mxu0
        %v3161 = vadd.f32 0.0, %v3160
        %v3162 = vpop.f32.mrb[0].mxu0
        %3163 = vmatprep.mubr.f32.mxu0 0.0
        %3164 = vmatmul.mubr.f32.gmra.mrb[0].mxu0 %v1435
        %v3165 = vpop.f32.mrb[0].mxu0
        %v3166 = vadd.f32 0.0, %v3165
        %v3167 = vpop.f32.mrb[0].mxu0
        %3168 = vmatprep.mubr.f32.mxu0 0.0
        %3169 = vmatmul.mubr.f32.gmra.mrb[0].mxu0 %v1438
        %v3170 = vpop.f32.mrb[0].mxu0
        %v3171 = vadd.f32 0.0, %v3170
        %v3172 = vpop.f32.mrb[0].mxu0
        %3173 = vmatprep.mubr.f32.mxu0 0.0
        %3174 = vmatmul.mubr.f32.gmra.mrb[0].mxu0 %v1441
        %v3175 = vpop.f32.mrb[0].mxu0
        %v3176 = vadd.f32 0.0, %v3175
        %v3177 = vpop.f32.mrb[0].mxu0
        %3178 = vmatprep.mubr.f32.mxu0 0.0
        %3179 = vmatmul.mubr.f32.gmra.mrb[0].mxu0 %v1444
        %v3180 = vpop.f32.mrb[0].mxu0
        %v3181 = vadd.f32 0.0, %v3180
        %v3182 = vpop.f32.mrb[0].mxu0
        %3183 = vdwg.mxu0
        %v3184 = vadd.f32 %v3023, %v3106
        %v3185 = vadd.f32 %v3024, %v3111
        %v3186 = vadd.f32 %v3025, %v3116
        %v3187 = vadd.f32 %v3026, %v3121
        %v3188 = vadd.f32 %v3027, %v3126
        %v3189 = vadd.f32 %v3028, %v3131
        %v3190 = vadd.f32 %v3029, %v3136
        %v3191 = vadd.f32 %v3030, %v3141
        %v3192 = vadd.f32 %v3031, %v3146
        %v3193 = vadd.f32 %v3032, %v3151
        %v3194 = vadd.f32 %v3033, %v3156
        %v3195 = vadd.f32 %v3034, %v3161
        %v3196 = vadd.f32 %v3035, %v3166
        %v3197 = vadd.f32 %v3036, %v3171
        %v3198 = vadd.f32 %v3037, %v3176
        %v3199 = vadd.f32 %v3038, %v3181
        %v3200 = vld [vmem:[%s1151 + $0x1] sm:$0xff]
        %v3201 = vld [vmem:[%s1151 + $0x11] sm:$0xff]
        %v3202 = vld [vmem:[%s1151 + $0x21] sm:$0xff]
        %v3203 = vld [vmem:[%s1151 + $0x31] sm:$0xff]
        %v3204 = vld [vmem:[%s1151 + $0x41] sm:$0xff]
        %v3205 = vld [vmem:[%s1151 + $0x51] sm:$0xff]
        %v3206 = vld [vmem:[%s1151 + $0x61] sm:$0xff]
        %v3207 = vld [vmem:[%s1151 + $0x71] sm:$0xff]
        %v3208 = vld [vmem:[%s1151 + $0x81] sm:$0xff]
        %v3209 = vld [vmem:[%s1151 + $0x91] sm:$0xff]
        %v3210 = vld [vmem:[%s1151 + $0xa1] sm:$0xff]
        %v3211 = vld [vmem:[%s1151 + $0xb1] sm:$0xff]
        %v3212 = vld [vmem:[%s1151 + $0xc1] sm:$0xff]
        %v3213 = vld [vmem:[%s1151 + $0xd1] sm:$0xff]
        %v3214 = vld [vmem:[%s1151 + $0xe1] sm:$0xff]
        %v3215 = vld [vmem:[%s1151 + $0xf1] sm:$0xff]
        %v3217 = vsel %vm296, %v3200, 0
        %v3220 = vsel %vm296, %v3201, 0
        %v3223 = vsel %vm296, %v3202, 0
        %v3226 = vsel %vm296, %v3203, 0
        %v3229 = vsel %vm296, %v3204, 0
        %v3232 = vsel %vm296, %v3205, 0
        %v3235 = vsel %vm296, %v3206, 0
        %v3238 = vsel %vm296, %v3207, 0
        %v3241 = vsel %vm296, %v3208, 0
        %v3244 = vsel %vm296, %v3209, 0
        %v3247 = vsel %vm296, %v3210, 0
        %v3250 = vsel %vm296, %v3211, 0
        %v3253 = vsel %vm296, %v3212, 0
        %v3256 = vsel %vm296, %v3213, 0
        %v3259 = vsel %vm296, %v3214, 0
        %v3262 = vsel %vm296, %v3215, 0
        %3264 = vmatprep.subr.mxu0 0.0
        %3265 = vmatpush1.msra.mxu0 %v1447
        %3266 = vmatprep.subr.mxu0 0.0
        %3267 = vmatpush1.msra.mxu0 0.0
        %3268 = vmatprep.subr.mxu0 0.0
        %3269 = vmatpush1.msra.mxu0 0.0
        %3270 = vmatprep.subr.mxu0 0.0
        %3271 = vmatpush1.msra.mxu0 0.0
        %3272 = vmatprep.subr.mxu0 0.0
        %3273 = vmatpush1.msra.mxu0 0.0
        %3274 = vmatprep.subr.mxu0 0.0
        %3275 = vmatpush1.msra.mxu0 0.0
        %3276 = vmatprep.subr.mxu0 0.0
        %3277 = vmatpush1.msra.mxu0 0.0
        %3278 = vmatprep.subr.mxu0 0.0
        %3279 = vmatpush1.msra.mxu0 0.0
        %3280 = vmatprep.subr.mxu0 0.0
        %3281 = vmatpush1.msra.mxu0 0.0
        %3282 = vmatprep.subr.mxu0 0.0
        %3283 = vmatpush1.msra.mxu0 0.0
        %3284 = vmatprep.subr.mxu0 0.0
        %3285 = vmatpush1.msra.mxu0 0.0
        %3286 = vmatprep.subr.mxu0 0.0
        %3287 = vmatpush1.msra.mxu0 0.0
        %3288 = vmatprep.subr.mxu0 0.0
        %3289 = vmatpush1.msra.mxu0 0.0
        %3290 = vmatprep.subr.mxu0 0.0
        %3291 = vmatpush1.msra.mxu0 0.0
        %3292 = vmatprep.subr.mxu0 0.0
        %3293 = vmatpush1.msra.mxu0 0.0
        %3294 = vmatprep.subr.mxu0 0.0
        %3295 = vmatpush1.msra.mxu0 0.0
        %3296 = vmatprep.subr.mxu0 0.0
        %3297 = vmatpush1.msra.mxu0 0.0
        %3298 = vmatprep.subr.mxu0 0.0
        %3299 = vmatpush1.msra.mxu0 0.0
        %3300 = vmatprep.subr.mxu0 0.0
        %3301 = vmatpush1.msra.mxu0 0.0
        %3302 = vmatprep.subr.mxu0 0.0
        %3303 = vmatpush1.msra.mxu0 0.0
        %3304 = vmatprep.subr.mxu0 0.0
        %3305 = vmatpush1.msra.mxu0 0.0
        %3306 = vmatprep.subr.mxu0 0.0
        %3307 = vmatpush1.msra.mxu0 0.0
        %3308 = vmatprep.subr.mxu0 0.0
        %3309 = vmatpush1.msra.mxu0 0.0
        %3310 = vmatprep.subr.mxu0 0.0
        %3311 = vmatpush1.msra.mxu0 0.0
        %3312 = vmatprep.subr.mxu0 0.0
        %3313 = vmatpush1.msra.mxu0 0.0
        %3314 = vmatprep.subr.mxu0 0.0
        %3315 = vmatpush1.msra.mxu0 0.0
        %3316 = vmatprep.subr.mxu0 0.0
        %3317 = vmatpush1.msra.mxu0 0.0
        %3318 = vmatprep.subr.mxu0 0.0
        %3319 = vmatpush1.msra.mxu0 0.0
        %3320 = vmatprep.subr.mxu0 0.0
        %3321 = vmatpush1.msra.mxu0 0.0
        %3322 = vmatprep.subr.mxu0 0.0
        %3323 = vmatpush1.msra.mxu0 0.0
        %3324 = vmatprep.subr.mxu0 0.0
        %3325 = vmatpush1.msra.mxu0 0.0
        %3326 = vmatprep.subr.mxu0 0.0
        %3327 = vmatpush1.msra.mxu0 0.0
        %3328 = vmatprep.mubr.f32.mxu0 0.0
        %3329 = vmatmul.mubr.f32.gmra.mrb[0].mxu0 %v3217
        %v3330 = vpop.f32.mrb[0].mxu0
        %v3331 = vadd.f32 0.0, %v3330
        %v3332 = vpop.f32.mrb[0].mxu0
        %3333 = vmatprep.mubr.f32.mxu0 0.0
        %3334 = vmatmul.mubr.f32.gmra.mrb[0].mxu0 %v3220
        %v3335 = vpop.f32.mrb[0].mxu0
        %v3336 = vadd.f32 0.0, %v3335
        %v3337 = vpop.f32.mrb[0].mxu0
        %3338 = vmatprep.mubr.f32.mxu0 0.0
        %3339 = vmatmul.mubr.f32.gmra.mrb[0].mxu0 %v3223
        %v3340 = vpop.f32.mrb[0].mxu0
        %v3341 = vadd.f32 0.0, %v3340
        %v3342 = vpop.f32.mrb[0].mxu0
        %3343 = vmatprep.mubr.f32.mxu0 0.0
        %3344 = vmatmul.mubr.f32.gmra.mrb[0].mxu0 %v3226
        %v3345 = vpop.f32.mrb[0].mxu0
        %v3346 = vadd.f32 0.0, %v3345
        %v3347 = vpop.f32.mrb[0].mxu0
        %3348 = vmatprep.mubr.f32.mxu0 0.0
        %3349 = vmatmul.mubr.f32.gmra.mrb[0].mxu0 %v3229
        %v3350 = vpop.f32.mrb[0].mxu0
        %v3351 = vadd.f32 0.0, %v3350
        %v3352 = vpop.f32.mrb[0].mxu0
        %3353 = vmatprep.mubr.f32.mxu0 0.0
        %3354 = vmatmul.mubr.f32.gmra.mrb[0].mxu0 %v3232
        %v3355 = vpop.f32.mrb[0].mxu0
        %v3356 = vadd.f32 0.0, %v3355
        %v3357 = vpop.f32.mrb[0].mxu0
        %3358 = vmatprep.mubr.f32.mxu0 0.0
        %3359 = vmatmul.mubr.f32.gmra.mrb[0].mxu0 %v3235
        %v3360 = vpop.f32.mrb[0].mxu0
        %v3361 = vadd.f32 0.0, %v3360
        %v3362 = vpop.f32.mrb[0].mxu0
        %3363 = vmatprep.mubr.f32.mxu0 0.0
        %3364 = vmatmul.mubr.f32.gmra.mrb[0].mxu0 %v3238
        %v3365 = vpop.f32.mrb[0].mxu0
        %v3366 = vadd.f32 0.0, %v3365
        %v3367 = vpop.f32.mrb[0].mxu0
        %3368 = vmatprep.mubr.f32.mxu0 0.0
        %3369 = vmatmul.mubr.f32.gmra.mrb[0].mxu0 %v3241
        %v3370 = vpop.f32.mrb[0].mxu0
        %v3371 = vadd.f32 0.0, %v3370
        %v3372 = vpop.f32.mrb[0].mxu0
        %3373 = vmatprep.mubr.f32.mxu0 0.0
        %3374 = vmatmul.mubr.f32.gmra.mrb[0].mxu0 %v3244
        %v3375 = vpop.f32.mrb[0].mxu0
        %v3376 = vadd.f32 0.0, %v3375
        %v3377 = vpop.f32.mrb[0].mxu0
        %3378 = vmatprep.mubr.f32.mxu0 0.0
        %3379 = vmatmul.mubr.f32.gmra.mrb[0].mxu0 %v3247
        %v3380 = vpop.f32.mrb[0].mxu0
        %v3381 = vadd.f32 0.0, %v3380
        %v3382 = vpop.f32.mrb[0].mxu0
        %3383 = vmatprep.mubr.f32.mxu0 0.0
        %3384 = vmatmul.mubr.f32.gmra.mrb[0].mxu0 %v3250
        %v3385 = vpop.f32.mrb[0].mxu0
        %v3386 = vadd.f32 0.0, %v3385
        %v3387 = vpop.f32.mrb[0].mxu0
        %3388 = vmatprep.mubr.f32.mxu0 0.0
        %3389 = vmatmul.mubr.f32.gmra.mrb[0].mxu0 %v3253
        %v3390 = vpop.f32.mrb[0].mxu0
        %v3391 = vadd.f32 0.0, %v3390
        %v3392 = vpop.f32.mrb[0].mxu0
        %3393 = vmatprep.mubr.f32.mxu0 0.0
        %3394 = vmatmul.mubr.f32.gmra.mrb[0].mxu0 %v3256
        %v3395 = vpop.f32.mrb[0].mxu0
        %v3396 = vadd.f32 0.0, %v3395
        %v3397 = vpop.f32.mrb[0].mxu0
        %3398 = vmatprep.mubr.f32.mxu0 0.0
        %3399 = vmatmul.mubr.f32.gmra.mrb[0].mxu0 %v3259
        %v3400 = vpop.f32.mrb[0].mxu0
        %v3401 = vadd.f32 0.0, %v3400
        %v3402 = vpop.f32.mrb[0].mxu0
        %3403 = vmatprep.mubr.f32.mxu0 0.0
        %3404 = vmatmul.mubr.f32.gmra.mrb[0].mxu0 %v3262
        %v3405 = vpop.f32.mrb[0].mxu0
        %v3406 = vadd.f32 0.0, %v3405
        %v3407 = vpop.f32.mrb[0].mxu0
        %3408 = vdwg.mxu0
        %v3409 = vadd.f32 %v3184, %v3331
        %v3410 = vadd.f32 %v3185, %v3336
        %v3411 = vadd.f32 %v3186, %v3341
        %v3412 = vadd.f32 %v3187, %v3346
        %v3413 = vadd.f32 %v3188, %v3351
        %v3414 = vadd.f32 %v3189, %v3356
        %v3415 = vadd.f32 %v3190, %v3361
        %v3416 = vadd.f32 %v3191, %v3366
        %v3417 = vadd.f32 %v3192, %v3371
        %v3418 = vadd.f32 %v3193, %v3376
        %v3419 = vadd.f32 %v3194, %v3381
        %v3420 = vadd.f32 %v3195, %v3386
        %v3421 = vadd.f32 %v3196, %v3391
        %v3422 = vadd.f32 %v3197, %v3396
        %v3423 = vadd.f32 %v3198, %v3401
        %v3424 = vadd.f32 %v3199, %v3406
        %3425 = vmatprep.subr.mxu0 0.0
        %3426 = vmatpush1.msra.mxu0 %v1679
        %3427 = vmatprep.subr.mxu0 0.0
        %3428 = vmatpush1.msra.mxu0 0.0
        %3429 = vmatprep.subr.mxu0 0.0
        %3430 = vmatpush1.msra.mxu0 0.0
        %3431 = vmatprep.subr.mxu0 0.0
        %3432 = vmatpush1.msra.mxu0 0.0
        %3433 = vmatprep.subr.mxu0 0.0
        %3434 = vmatpush1.msra.mxu0 0.0
        %3435 = vmatprep.subr.mxu0 0.0
        %3436 = vmatpush1.msra.mxu0 0.0
        %3437 = vmatprep.subr.mxu0 0.0
        %3438 = vmatpush1.msra.mxu0 0.0
        %3439 = vmatprep.subr.mxu0 0.0
        %3440 = vmatpush1.msra.mxu0 0.0
        %3441 = vmatprep.subr.mxu0 0.0
        %3442 = vmatpush1.msra.mxu0 0.0
        %3443 = vmatprep.subr.mxu0 0.0
        %3444 = vmatpush1.msra.mxu0 0.0
        %3445 = vmatprep.subr.mxu0 0.0
        %3446 = vmatpush1.msra.mxu0 0.0
        %3447 = vmatprep.subr.mxu0 0.0
        %3448 = vmatpush1.msra.mxu0 0.0
        %3449 = vmatprep.subr.mxu0 0.0
        %3450 = vmatpush1.msra.mxu0 0.0
        %3451 = vmatprep.subr.mxu0 0.0
        %3452 = vmatpush1.msra.mxu0 0.0
        %3453 = vmatprep.subr.mxu0 0.0
        %3454 = vmatpush1.msra.mxu0 0.0
        %3455 = vmatprep.subr.mxu0 0.0
        %3456 = vmatpush1.msra.mxu0 0.0
        %3457 = vmatprep.subr.mxu0 0.0
        %3458 = vmatpush1.msra.mxu0 0.0
        %3459 = vmatprep.subr.mxu0 0.0
        %3460 = vmatpush1.msra.mxu0 0.0
        %3461 = vmatprep.subr.mxu0 0.0
        %3462 = vmatpush1.msra.mxu0 0.0
        %3463 = vmatprep.subr.mxu0 0.0
        %3464 = vmatpush1.msra.mxu0 0.0
        %3465 = vmatprep.subr.mxu0 0.0
        %3466 = vmatpush1.msra.mxu0 0.0
        %3467 = vmatprep.subr.mxu0 0.0
        %3468 = vmatpush1.msra.mxu0 0.0
        %3469 = vmatprep.subr.mxu0 0.0
        %3470 = vmatpush1.msra.mxu0 0.0
        %3471 = vmatprep.subr.mxu0 0.0
        %3472 = vmatpush1.msra.mxu0 0.0
        %3473 = vmatprep.subr.mxu0 0.0
        %3474 = vmatpush1.msra.mxu0 0.0
        %3475 = vmatprep.subr.mxu0 0.0
        %3476 = vmatpush1.msra.mxu0 0.0
        %3477 = vmatprep.subr.mxu0 0.0
        %3478 = vmatpush1.msra.mxu0 0.0
        %3479 = vmatprep.subr.mxu0 0.0
        %3480 = vmatpush1.msra.mxu0 0.0
        %3481 = vmatprep.subr.mxu0 0.0
        %3482 = vmatpush1.msra.mxu0 0.0
        %3483 = vmatprep.subr.mxu0 0.0
        %3484 = vmatpush1.msra.mxu0 0.0
        %3485 = vmatprep.subr.mxu0 0.0
        %3486 = vmatpush1.msra.mxu0 0.0
        %3487 = vmatprep.subr.mxu0 0.0
        %3488 = vmatpush1.msra.mxu0 0.0
        %3489 = vmatprep.mubr.f32.mxu0 0.0
        %3490 = vmatmul.mubr.f32.gmra.mrb[0].mxu0 %v1861
        %v3491 = vpop.f32.mrb[0].mxu0
        %v3492 = vadd.f32 0.0, %v3491
        %v3493 = vpop.f32.mrb[0].mxu0
        %3494 = vmatprep.mubr.f32.mxu0 0.0
        %3495 = vmatmul.mubr.f32.gmra.mrb[0].mxu0 %v1864
        %v3496 = vpop.f32.mrb[0].mxu0
        %v3497 = vadd.f32 0.0, %v3496
        %v3498 = vpop.f32.mrb[0].mxu0
        %3499 = vmatprep.mubr.f32.mxu0 0.0
        %3500 = vmatmul.mubr.f32.gmra.mrb[0].mxu0 %v1867
        %v3501 = vpop.f32.mrb[0].mxu0
        %v3502 = vadd.f32 0.0, %v3501
        %v3503 = vpop.f32.mrb[0].mxu0
        %3504 = vmatprep.mubr.f32.mxu0 0.0
        %3505 = vmatmul.mubr.f32.gmra.mrb[0].mxu0 %v1870
        %v3506 = vpop.f32.mrb[0].mxu0
        %v3507 = vadd.f32 0.0, %v3506
        %v3508 = vpop.f32.mrb[0].mxu0
        %3509 = vmatprep.mubr.f32.mxu0 0.0
        %3510 = vmatmul.mubr.f32.gmra.mrb[0].mxu0 %v1873
        %v3511 = vpop.f32.mrb[0].mxu0
        %v3512 = vadd.f32 0.0, %v3511
        %v3513 = vpop.f32.mrb[0].mxu0
        %3514 = vmatprep.mubr.f32.mxu0 0.0
        %3515 = vmatmul.mubr.f32.gmra.mrb[0].mxu0 %v1876
        %v3516 = vpop.f32.mrb[0].mxu0
        %v3517 = vadd.f32 0.0, %v3516
        %v3518 = vpop.f32.mrb[0].mxu0
        %3519 = vmatprep.mubr.f32.mxu0 0.0
        %3520 = vmatmul.mubr.f32.gmra.mrb[0].mxu0 %v1879
        %v3521 = vpop.f32.mrb[0].mxu0
        %v3522 = vadd.f32 0.0, %v3521
        %v3523 = vpop.f32.mrb[0].mxu0
        %3524 = vmatprep.mubr.f32.mxu0 0.0
        %3525 = vmatmul.mubr.f32.gmra.mrb[0].mxu0 %v1882
        %v3526 = vpop.f32.mrb[0].mxu0
        %v3527 = vadd.f32 0.0, %v3526
        %v3528 = vpop.f32.mrb[0].mxu0
        %3529 = vmatprep.mubr.f32.mxu0 0.0
        %3530 = vmatmul.mubr.f32.gmra.mrb[0].mxu0 %v1885
        %v3531 = vpop.f32.mrb[0].mxu0
        %v3532 = vadd.f32 0.0, %v3531
        %v3533 = vpop.f32.mrb[0].mxu0
        %3534 = vmatprep.mubr.f32.mxu0 0.0
        %3535 = vmatmul.mubr.f32.gmra.mrb[0].mxu0 %v1888
        %v3536 = vpop.f32.mrb[0].mxu0
        %v3537 = vadd.f32 0.0, %v3536
        %v3538 = vpop.f32.mrb[0].mxu0
        %3539 = vmatprep.mubr.f32.mxu0 0.0
        %3540 = vmatmul.mubr.f32.gmra.mrb[0].mxu0 %v1891
        %v3541 = vpop.f32.mrb[0].mxu0
        %v3542 = vadd.f32 0.0, %v3541
        %v3543 = vpop.f32.mrb[0].mxu0
        %3544 = vmatprep.mubr.f32.mxu0 0.0
        %3545 = vmatmul.mubr.f32.gmra.mrb[0].mxu0 %v1894
        %v3546 = vpop.f32.mrb[0].mxu0
        %v3547 = vadd.f32 0.0, %v3546
        %v3548 = vpop.f32.mrb[0].mxu0
        %3549 = vmatprep.mubr.f32.mxu0 0.0
        %3550 = vmatmul.mubr.f32.gmra.mrb[0].mxu0 %v1897
        %v3551 = vpop.f32.mrb[0].mxu0
        %v3552 = vadd.f32 0.0, %v3551
        %v3553 = vpop.f32.mrb[0].mxu0
        %3554 = vmatprep.mubr.f32.mxu0 0.0
        %3555 = vmatmul.mubr.f32.gmra.mrb[0].mxu0 %v1900
        %v3556 = vpop.f32.mrb[0].mxu0
        %v3557 = vadd.f32 0.0, %v3556
        %v3558 = vpop.f32.mrb[0].mxu0
        %3559 = vmatprep.mubr.f32.mxu0 0.0
        %3560 = vmatmul.mubr.f32.gmra.mrb[0].mxu0 %v1903
        %v3561 = vpop.f32.mrb[0].mxu0
        %v3562 = vadd.f32 0.0, %v3561
        %v3563 = vpop.f32.mrb[0].mxu0
        %3564 = vmatprep.mubr.f32.mxu0 0.0
        %3565 = vmatmul.mubr.f32.gmra.mrb[0].mxu0 %v1906
        %v3566 = vpop.f32.mrb[0].mxu0
        %v3567 = vadd.f32 0.0, %v3566
        %v3568 = vpop.f32.mrb[0].mxu0
        %3569 = vdwg.mxu0
        %v3570 = vadd.f32 %v3409, %v3492
        %v3571 = vadd.f32 %v3410, %v3497
        %v3572 = vadd.f32 %v3411, %v3502
        %v3573 = vadd.f32 %v3412, %v3507
        %v3574 = vadd.f32 %v3413, %v3512
        %v3575 = vadd.f32 %v3414, %v3517
        %v3576 = vadd.f32 %v3415, %v3522
        %v3577 = vadd.f32 %v3416, %v3527
        %v3578 = vadd.f32 %v3417, %v3532
        %v3579 = vadd.f32 %v3418, %v3537
        %v3580 = vadd.f32 %v3419, %v3542
        %v3581 = vadd.f32 %v3420, %v3547
        %v3582 = vadd.f32 %v3421, %v3552
        %v3583 = vadd.f32 %v3422, %v3557
        %v3584 = vadd.f32 %v3423, %v3562
        %v3585 = vadd.f32 %v3424, %v3567
        %3586 = vmatprep.subr.mxu0 0.0
        %3587 = vmatpush1.msra.mxu0 %v1909
        %3588 = vmatprep.subr.mxu0 0.0
        %3589 = vmatpush1.msra.mxu0 0.0
        %3590 = vmatprep.subr.mxu0 0.0
        %3591 = vmatpush1.msra.mxu0 0.0
        %3592 = vmatprep.subr.mxu0 0.0
        %3593 = vmatpush1.msra.mxu0 0.0
        %3594 = vmatprep.subr.mxu0 0.0
        %3595 = vmatpush1.msra.mxu0 0.0
        %3596 = vmatprep.subr.mxu0 0.0
        %3597 = vmatpush1.msra.mxu0 0.0
        %3598 = vmatprep.subr.mxu0 0.0
        %3599 = vmatpush1.msra.mxu0 0.0
        %3600 = vmatprep.subr.mxu0 0.0
        %3601 = vmatpush1.msra.mxu0 0.0
        %3602 = vmatprep.subr.mxu0 0.0
        %3603 = vmatpush1.msra.mxu0 0.0
        %3604 = vmatprep.subr.mxu0 0.0
        %3605 = vmatpush1.msra.mxu0 0.0
        %3606 = vmatprep.subr.mxu0 0.0
        %3607 = vmatpush1.msra.mxu0 0.0
        %3608 = vmatprep.subr.mxu0 0.0
        %3609 = vmatpush1.msra.mxu0 0.0
        %3610 = vmatprep.subr.mxu0 0.0
        %3611 = vmatpush1.msra.mxu0 0.0
        %3612 = vmatprep.subr.mxu0 0.0
        %3613 = vmatpush1.msra.mxu0 0.0
        %3614 = vmatprep.subr.mxu0 0.0
        %3615 = vmatpush1.msra.mxu0 0.0
        %3616 = vmatprep.subr.mxu0 0.0
        %3617 = vmatpush1.msra.mxu0 0.0
        %3618 = vmatprep.subr.mxu0 0.0
        %3619 = vmatpush1.msra.mxu0 0.0
        %3620 = vmatprep.subr.mxu0 0.0
        %3621 = vmatpush1.msra.mxu0 0.0
        %3622 = vmatprep.subr.mxu0 0.0
        %3623 = vmatpush1.msra.mxu0 0.0
        %3624 = vmatprep.subr.mxu0 0.0
        %3625 = vmatpush1.msra.mxu0 0.0
        %3626 = vmatprep.subr.mxu0 0.0
        %3627 = vmatpush1.msra.mxu0 0.0
        %3628 = vmatprep.subr.mxu0 0.0
        %3629 = vmatpush1.msra.mxu0 0.0
        %3630 = vmatprep.subr.mxu0 0.0
        %3631 = vmatpush1.msra.mxu0 0.0
        %3632 = vmatprep.subr.mxu0 0.0
        %3633 = vmatpush1.msra.mxu0 0.0
        %3634 = vmatprep.subr.mxu0 0.0
        %3635 = vmatpush1.msra.mxu0 0.0
        %3636 = vmatprep.subr.mxu0 0.0
        %3637 = vmatpush1.msra.mxu0 0.0
        %3638 = vmatprep.subr.mxu0 0.0
        %3639 = vmatpush1.msra.mxu0 0.0
        %3640 = vmatprep.subr.mxu0 0.0
        %3641 = vmatpush1.msra.mxu0 0.0
        %3642 = vmatprep.subr.mxu0 0.0
        %3643 = vmatpush1.msra.mxu0 0.0
        %3644 = vmatprep.subr.mxu0 0.0
        %3645 = vmatpush1.msra.mxu0 0.0
        %3646 = vmatprep.subr.mxu0 0.0
        %3647 = vmatpush1.msra.mxu0 0.0
        %3648 = vmatprep.subr.mxu0 0.0
        %3649 = vmatpush1.msra.mxu0 0.0
        %3650 = vmatprep.mubr.f32.mxu0 0.0
        %3651 = vmatmul.mubr.f32.gmra.mrb[0].mxu0 %v2090
        %v3652 = vpop.f32.mrb[0].mxu0
        %v3653 = vadd.f32 0.0, %v3652
        %v3654 = vpop.f32.mrb[0].mxu0
        %3655 = vmatprep.mubr.f32.mxu0 0.0
        %3656 = vmatmul.mubr.f32.gmra.mrb[0].mxu0 %v2093
        %v3657 = vpop.f32.mrb[0].mxu0
        %v3658 = vadd.f32 0.0, %v3657
        %v3659 = vpop.f32.mrb[0].mxu0
        %3660 = vmatprep.mubr.f32.mxu0 0.0
        %3661 = vmatmul.mubr.f32.gmra.mrb[0].mxu0 %v2096
        %v3662 = vpop.f32.mrb[0].mxu0
        %v3663 = vadd.f32 0.0, %v3662
        %v3664 = vpop.f32.mrb[0].mxu0
        %3665 = vmatprep.mubr.f32.mxu0 0.0
        %3666 = vmatmul.mubr.f32.gmra.mrb[0].mxu0 %v2099
        %v3667 = vpop.f32.mrb[0].mxu0
        %v3668 = vadd.f32 0.0, %v3667
        %v3669 = vpop.f32.mrb[0].mxu0
        %3670 = vmatprep.mubr.f32.mxu0 0.0
        %3671 = vmatmul.mubr.f32.gmra.mrb[0].mxu0 %v2102
        %v3672 = vpop.f32.mrb[0].mxu0
        %v3673 = vadd.f32 0.0, %v3672
        %v3674 = vpop.f32.mrb[0].mxu0
        %3675 = vmatprep.mubr.f32.mxu0 0.0
        %3676 = vmatmul.mubr.f32.gmra.mrb[0].mxu0 %v2105
        %v3677 = vpop.f32.mrb[0].mxu0
        %v3678 = vadd.f32 0.0, %v3677
        %v3679 = vpop.f32.mrb[0].mxu0
        %3680 = vmatprep.mubr.f32.mxu0 0.0
        %3681 = vmatmul.mubr.f32.gmra.mrb[0].mxu0 %v2108
        %v3682 = vpop.f32.mrb[0].mxu0
        %v3683 = vadd.f32 0.0, %v3682
        %v3684 = vpop.f32.mrb[0].mxu0
        %3685 = vmatprep.mubr.f32.mxu0 0.0
        %3686 = vmatmul.mubr.f32.gmra.mrb[0].mxu0 %v2111
        %v3687 = vpop.f32.mrb[0].mxu0
        %v3688 = vadd.f32 0.0, %v3687
        %v3689 = vpop.f32.mrb[0].mxu0
        %3690 = vmatprep.mubr.f32.mxu0 0.0
        %3691 = vmatmul.mubr.f32.gmra.mrb[0].mxu0 %v2114
        %v3692 = vpop.f32.mrb[0].mxu0
        %v3693 = vadd.f32 0.0, %v3692
        %v3694 = vpop.f32.mrb[0].mxu0
        %3695 = vmatprep.mubr.f32.mxu0 0.0
        %3696 = vmatmul.mubr.f32.gmra.mrb[0].mxu0 %v2117
        %v3697 = vpop.f32.mrb[0].mxu0
        %v3698 = vadd.f32 0.0, %v3697
        %v3699 = vpop.f32.mrb[0].mxu0
        %3700 = vmatprep.mubr.f32.mxu0 0.0
        %3701 = vmatmul.mubr.f32.gmra.mrb[0].mxu0 %v2120
        %v3702 = vpop.f32.mrb[0].mxu0
        %v3703 = vadd.f32 0.0, %v3702
        %v3704 = vpop.f32.mrb[0].mxu0
        %3705 = vmatprep.mubr.f32.mxu0 0.0
        %3706 = vmatmul.mubr.f32.gmra.mrb[0].mxu0 %v2123
        %v3707 = vpop.f32.mrb[0].mxu0
        %v3708 = vadd.f32 0.0, %v3707
        %v3709 = vpop.f32.mrb[0].mxu0
        %3710 = vmatprep.mubr.f32.mxu0 0.0
        %3711 = vmatmul.mubr.f32.gmra.mrb[0].mxu0 %v2126
        %v3712 = vpop.f32.mrb[0].mxu0
        %v3713 = vadd.f32 0.0, %v3712
        %v3714 = vpop.f32.mrb[0].mxu0
        %3715 = vmatprep.mubr.f32.mxu0 0.0
        %3716 = vmatmul.mubr.f32.gmra.mrb[0].mxu0 %v2129
        %v3717 = vpop.f32.mrb[0].mxu0
        %v3718 = vadd.f32 0.0, %v3717
        %v3719 = vpop.f32.mrb[0].mxu0
        %3720 = vmatprep.mubr.f32.mxu0 0.0
        %3721 = vmatmul.mubr.f32.gmra.mrb[0].mxu0 %v2132
        %v3722 = vpop.f32.mrb[0].mxu0
        %v3723 = vadd.f32 0.0, %v3722
        %v3724 = vpop.f32.mrb[0].mxu0
        %3725 = vmatprep.mubr.f32.mxu0 0.0
        %3726 = vmatmul.mubr.f32.gmra.mrb[0].mxu0 %v2135
        %v3727 = vpop.f32.mrb[0].mxu0
        %v3728 = vadd.f32 0.0, %v3727
        %v3729 = vpop.f32.mrb[0].mxu0
        %3730 = vdwg.mxu0
        %v3731 = vadd.f32 %v3570, %v3653
        %v3732 = vadd.f32 %v3571, %v3658
        %v3733 = vadd.f32 %v3572, %v3663
        %v3734 = vadd.f32 %v3573, %v3668
        %v3735 = vadd.f32 %v3574, %v3673
        %v3736 = vadd.f32 %v3575, %v3678
        %v3737 = vadd.f32 %v3576, %v3683
        %v3738 = vadd.f32 %v3577, %v3688
        %v3739 = vadd.f32 %v3578, %v3693
        %v3740 = vadd.f32 %v3579, %v3698
        %v3741 = vadd.f32 %v3580, %v3703
        %v3742 = vadd.f32 %v3581, %v3708
        %v3743 = vadd.f32 %v3582, %v3713
        %v3744 = vadd.f32 %v3583, %v3718
        %v3745 = vadd.f32 %v3584, %v3723
        %v3746 = vadd.f32 %v3585, %v3728
        %v3747 = vld [vmem:[%s1842 + $0x1] sm:$0xff]
        %v3748 = vld [vmem:[%s1842 + $0x11] sm:$0xff]
        %v3749 = vld [vmem:[%s1842 + $0x21] sm:$0xff]
        %v3750 = vld [vmem:[%s1842 + $0x31] sm:$0xff]
        %v3751 = vld [vmem:[%s1842 + $0x41] sm:$0xff]
        %v3752 = vld [vmem:[%s1842 + $0x51] sm:$0xff]
        %v3753 = vld [vmem:[%s1842 + $0x61] sm:$0xff]
        %v3754 = vld [vmem:[%s1842 + $0x71] sm:$0xff]
        %v3755 = vld [vmem:[%s1842 + $0x81] sm:$0xff]
        %v3756 = vld [vmem:[%s1842 + $0x91] sm:$0xff]
        %v3757 = vld [vmem:[%s1842 + $0xa1] sm:$0xff]
        %v3758 = vld [vmem:[%s1842 + $0xb1] sm:$0xff]
        %v3759 = vld [vmem:[%s1842 + $0xc1] sm:$0xff]
        %v3760 = vld [vmem:[%s1842 + $0xd1] sm:$0xff]
        %v3761 = vld [vmem:[%s1842 + $0xe1] sm:$0xff]
        %v3762 = vld [vmem:[%s1842 + $0xf1] sm:$0xff]
        %v3764 = vsel %vm296, %v3747, 0
        %v3767 = vsel %vm296, %v3748, 0
        %v3770 = vsel %vm296, %v3749, 0
        %v3773 = vsel %vm296, %v3750, 0
        %v3776 = vsel %vm296, %v3751, 0
        %v3779 = vsel %vm296, %v3752, 0
        %v3782 = vsel %vm296, %v3753, 0
        %v3785 = vsel %vm296, %v3754, 0
        %v3788 = vsel %vm296, %v3755, 0
        %v3791 = vsel %vm296, %v3756, 0
        %v3794 = vsel %vm296, %v3757, 0
        %v3797 = vsel %vm296, %v3758, 0
        %v3800 = vsel %vm296, %v3759, 0
        %v3803 = vsel %vm296, %v3760, 0
        %v3806 = vsel %vm296, %v3761, 0
        %v3809 = vsel %vm296, %v3762, 0
        %3811 = vmatprep.subr.mxu0 0.0
        %3812 = vmatpush1.msra.mxu0 %v2138
        %3813 = vmatprep.subr.mxu0 0.0
        %3814 = vmatpush1.msra.mxu0 0.0
        %3815 = vmatprep.subr.mxu0 0.0
        %3816 = vmatpush1.msra.mxu0 0.0
        %3817 = vmatprep.subr.mxu0 0.0
        %3818 = vmatpush1.msra.mxu0 0.0
        %3819 = vmatprep.subr.mxu0 0.0
        %3820 = vmatpush1.msra.mxu0 0.0
        %3821 = vmatprep.subr.mxu0 0.0
        %3822 = vmatpush1.msra.mxu0 0.0
        %3823 = vmatprep.subr.mxu0 0.0
        %3824 = vmatpush1.msra.mxu0 0.0
        %3825 = vmatprep.subr.mxu0 0.0
        %3826 = vmatpush1.msra.mxu0 0.0
        %3827 = vmatprep.subr.mxu0 0.0
        %3828 = vmatpush1.msra.mxu0 0.0
        %3829 = vmatprep.subr.mxu0 0.0
        %3830 = vmatpush1.msra.mxu0 0.0
        %3831 = vmatprep.subr.mxu0 0.0
        %3832 = vmatpush1.msra.mxu0 0.0
        %3833 = vmatprep.subr.mxu0 0.0
        %3834 = vmatpush1.msra.mxu0 0.0
        %3835 = vmatprep.subr.mxu0 0.0
        %3836 = vmatpush1.msra.mxu0 0.0
        %3837 = vmatprep.subr.mxu0 0.0
        %3838 = vmatpush1.msra.mxu0 0.0
        %3839 = vmatprep.subr.mxu0 0.0
        %3840 = vmatpush1.msra.mxu0 0.0
        %3841 = vmatprep.subr.mxu0 0.0
        %3842 = vmatpush1.msra.mxu0 0.0
        %3843 = vmatprep.subr.mxu0 0.0
        %3844 = vmatpush1.msra.mxu0 0.0
        %3845 = vmatprep.subr.mxu0 0.0
        %3846 = vmatpush1.msra.mxu0 0.0
        %3847 = vmatprep.subr.mxu0 0.0
        %3848 = vmatpush1.msra.mxu0 0.0
        %3849 = vmatprep.subr.mxu0 0.0
        %3850 = vmatpush1.msra.mxu0 0.0
        %3851 = vmatprep.subr.mxu0 0.0
        %3852 = vmatpush1.msra.mxu0 0.0
        %3853 = vmatprep.subr.mxu0 0.0
        %3854 = vmatpush1.msra.mxu0 0.0
        %3855 = vmatprep.subr.mxu0 0.0
        %3856 = vmatpush1.msra.mxu0 0.0
        %3857 = vmatprep.subr.mxu0 0.0
        %3858 = vmatpush1.msra.mxu0 0.0
        %3859 = vmatprep.subr.mxu0 0.0
        %3860 = vmatpush1.msra.mxu0 0.0
        %3861 = vmatprep.subr.mxu0 0.0
        %3862 = vmatpush1.msra.mxu0 0.0
        %3863 = vmatprep.subr.mxu0 0.0
        %3864 = vmatpush1.msra.mxu0 0.0
        %3865 = vmatprep.subr.mxu0 0.0
        %3866 = vmatpush1.msra.mxu0 0.0
        %3867 = vmatprep.subr.mxu0 0.0
        %3868 = vmatpush1.msra.mxu0 0.0
        %3869 = vmatprep.subr.mxu0 0.0
        %3870 = vmatpush1.msra.mxu0 0.0
        %3871 = vmatprep.subr.mxu0 0.0
        %3872 = vmatpush1.msra.mxu0 0.0
        %3873 = vmatprep.subr.mxu0 0.0
        %3874 = vmatpush1.msra.mxu0 0.0
        %3875 = vmatprep.mubr.f32.mxu0 0.0
        %3876 = vmatmul.mubr.f32.gmra.mrb[0].mxu0 %v3764
        %v3877 = vpop.f32.mrb[0].mxu0
        %v3878 = vadd.f32 0.0, %v3877
        %v3879 = vpop.f32.mrb[0].mxu0
        %3880 = vmatprep.mubr.f32.mxu0 0.0
        %3881 = vmatmul.mubr.f32.gmra.mrb[0].mxu0 %v3767
        %v3882 = vpop.f32.mrb[0].mxu0
        %v3883 = vadd.f32 0.0, %v3882
        %v3884 = vpop.f32.mrb[0].mxu0
        %3885 = vmatprep.mubr.f32.mxu0 0.0
        %3886 = vmatmul.mubr.f32.gmra.mrb[0].mxu0 %v3770
        %v3887 = vpop.f32.mrb[0].mxu0
        %v3888 = vadd.f32 0.0, %v3887
        %v3889 = vpop.f32.mrb[0].mxu0
        %3890 = vmatprep.mubr.f32.mxu0 0.0
        %3891 = vmatmul.mubr.f32.gmra.mrb[0].mxu0 %v3773
        %v3892 = vpop.f32.mrb[0].mxu0
        %v3893 = vadd.f32 0.0, %v3892
        %v3894 = vpop.f32.mrb[0].mxu0
        %3895 = vmatprep.mubr.f32.mxu0 0.0
        %3896 = vmatmul.mubr.f32.gmra.mrb[0].mxu0 %v3776
        %v3897 = vpop.f32.mrb[0].mxu0
        %v3898 = vadd.f32 0.0, %v3897
        %v3899 = vpop.f32.mrb[0].mxu0
        %3900 = vmatprep.mubr.f32.mxu0 0.0
        %3901 = vmatmul.mubr.f32.gmra.mrb[0].mxu0 %v3779
        %v3902 = vpop.f32.mrb[0].mxu0
        %v3903 = vadd.f32 0.0, %v3902
        %v3904 = vpop.f32.mrb[0].mxu0
        %3905 = vmatprep.mubr.f32.mxu0 0.0
        %3906 = vmatmul.mubr.f32.gmra.mrb[0].mxu0 %v3782
        %v3907 = vpop.f32.mrb[0].mxu0
        %v3908 = vadd.f32 0.0, %v3907
        %v3909 = vpop.f32.mrb[0].mxu0
        %3910 = vmatprep.mubr.f32.mxu0 0.0
        %3911 = vmatmul.mubr.f32.gmra.mrb[0].mxu0 %v3785
        %v3912 = vpop.f32.mrb[0].mxu0
        %v3913 = vadd.f32 0.0, %v3912
        %v3914 = vpop.f32.mrb[0].mxu0
        %3915 = vmatprep.mubr.f32.mxu0 0.0
        %3916 = vmatmul.mubr.f32.gmra.mrb[0].mxu0 %v3788
        %v3917 = vpop.f32.mrb[0].mxu0
        %v3918 = vadd.f32 0.0, %v3917
        %v3919 = vpop.f32.mrb[0].mxu0
        %3920 = vmatprep.mubr.f32.mxu0 0.0
        %3921 = vmatmul.mubr.f32.gmra.mrb[0].mxu0 %v3791
        %v3922 = vpop.f32.mrb[0].mxu0
        %v3923 = vadd.f32 0.0, %v3922
        %v3924 = vpop.f32.mrb[0].mxu0
        %3925 = vmatprep.mubr.f32.mxu0 0.0
        %3926 = vmatmul.mubr.f32.gmra.mrb[0].mxu0 %v3794
        %v3927 = vpop.f32.mrb[0].mxu0
        %v3928 = vadd.f32 0.0, %v3927
        %v3929 = vpop.f32.mrb[0].mxu0
        %3930 = vmatprep.mubr.f32.mxu0 0.0
        %3931 = vmatmul.mubr.f32.gmra.mrb[0].mxu0 %v3797
        %v3932 = vpop.f32.mrb[0].mxu0
        %v3933 = vadd.f32 0.0, %v3932
        %v3934 = vpop.f32.mrb[0].mxu0
        %3935 = vmatprep.mubr.f32.mxu0 0.0
        %3936 = vmatmul.mubr.f32.gmra.mrb[0].mxu0 %v3800
        %v3937 = vpop.f32.mrb[0].mxu0
        %v3938 = vadd.f32 0.0, %v3937
        %v3939 = vpop.f32.mrb[0].mxu0
        %3940 = vmatprep.mubr.f32.mxu0 0.0
        %3941 = vmatmul.mubr.f32.gmra.mrb[0].mxu0 %v3803
        %v3942 = vpop.f32.mrb[0].mxu0
        %v3943 = vadd.f32 0.0, %v3942
        %v3944 = vpop.f32.mrb[0].mxu0
        %3945 = vmatprep.mubr.f32.mxu0 0.0
        %3946 = vmatmul.mubr.f32.gmra.mrb[0].mxu0 %v3806
        %v3947 = vpop.f32.mrb[0].mxu0
        %v3948 = vadd.f32 0.0, %v3947
        %v3949 = vpop.f32.mrb[0].mxu0
        %3950 = vmatprep.mubr.f32.mxu0 0.0
        %3951 = vmatmul.mubr.f32.gmra.mrb[0].mxu0 %v3809
        %v3952 = vpop.f32.mrb[0].mxu0
        %v3953 = vadd.f32 0.0, %v3952
        %v3954 = vpop.f32.mrb[0].mxu0
        %3955 = vdwg.mxu0
        %v3956 = vadd.f32 %v3731, %v3878
        %v3957 = vadd.f32 %v3732, %v3883
        %v3958 = vadd.f32 %v3733, %v3888
        %v3959 = vadd.f32 %v3734, %v3893
        %v3960 = vadd.f32 %v3735, %v3898
        %v3961 = vadd.f32 %v3736, %v3903
        %v3962 = vadd.f32 %v3737, %v3908
        %v3963 = vadd.f32 %v3738, %v3913
        %v3964 = vadd.f32 %v3739, %v3918
        %v3965 = vadd.f32 %v3740, %v3923
        %v3966 = vadd.f32 %v3741, %v3928
        %v3967 = vadd.f32 %v3742, %v3933
        %v3968 = vadd.f32 %v3743, %v3938
        %v3969 = vadd.f32 %v3744, %v3943
        %v3970 = vadd.f32 %v3745, %v3948
        %v3971 = vadd.f32 %v3746, %v3953
        %v3972 = vmul.f32 %v3956, %v2306
        %v3973 = vmul.f32 %v3957, %v2306
        %v3974 = vmul.f32 %v3958, %v2306
        %v3975 = vmul.f32 %v3959, %v2306
        %v3976 = vmul.f32 %v3960, %v2306
        %v3977 = vmul.f32 %v3961, %v2306
        %v3978 = vmul.f32 %v3962, %v2306
        %v3979 = vmul.f32 %v3963, %v2306
        %v3980 = vmul.f32 %v3964, %v2306
        %v3981 = vmul.f32 %v3965, %v2306
        %v3982 = vmul.f32 %v3966, %v2306
        %v3983 = vmul.f32 %v3967, %v2306
        %v3984 = vmul.f32 %v3968, %v2306
        %v3985 = vmul.f32 %v3969, %v2306
        %v3986 = vmul.f32 %v3970, %v2306
        %v3987 = vmul.f32 %v3971, %v2306
        %v3988 = vadd.f32 %v3972, %v2329
        %v3989 = vadd.f32 %v3973, %v2329
        %v3990 = vadd.f32 %v3974, %v2329
        %v3991 = vadd.f32 %v3975, %v2329
        %v3992 = vadd.f32 %v3976, %v2329
        %v3993 = vadd.f32 %v3977, %v2329
        %v3994 = vadd.f32 %v3978, %v2329
        %v3995 = vadd.f32 %v3979, %v2329
        %v3996 = vadd.f32 %v3980, %v2329
        %v3997 = vadd.f32 %v3981, %v2329
        %v3998 = vadd.f32 %v3982, %v2329
        %v3999 = vadd.f32 %v3983, %v2329
        %v4000 = vadd.f32 %v3984, %v2329
        %v4001 = vadd.f32 %v3985, %v2329
        %v4002 = vadd.f32 %v3986, %v2329
        %v4003 = vadd.f32 %v3987, %v2329
        %v4004 = vmax.f32 %v3988, 0.0
        %v4005 = vmax.f32 %v3989, 0.0
        %v4006 = vmax.f32 %v3990, 0.0
        %v4007 = vmax.f32 %v3991, 0.0
        %v4008 = vmax.f32 %v3992, 0.0
        %v4009 = vmax.f32 %v3993, 0.0
        %v4010 = vmax.f32 %v3994, 0.0
        %v4011 = vmax.f32 %v3995, 0.0
        %v4012 = vmax.f32 %v3996, 0.0
        %v4013 = vmax.f32 %v3997, 0.0
        %v4014 = vmax.f32 %v3998, 0.0
        %v4015 = vmax.f32 %v3999, 0.0
        %v4016 = vmax.f32 %v4000, 0.0
        %v4017 = vmax.f32 %v4001, 0.0
        %v4018 = vmax.f32 %v4002, 0.0
        %v4019 = vmax.f32 %v4003, 0.0
        %v4020 = vmax.f32 %v2347, %v4004
        %v4021 = vmax.f32 %v2348, %v4005
        %v4022 = vmax.f32 %v2349, %v4006
        %v4023 = vmax.f32 %v2350, %v4007
        %v4024 = vmax.f32 %v2351, %v4008
        %v4025 = vmax.f32 %v2352, %v4009
        %v4026 = vmax.f32 %v2353, %v4010
        %v4027 = vmax.f32 %v2354, %v4011
        %v4028 = vmax.f32 %v2355, %v4012
        %v4029 = vmax.f32 %v2356, %v4013
        %v4030 = vmax.f32 %v2357, %v4014
        %v4031 = vmax.f32 %v2358, %v4015
        %v4032 = vmax.f32 %v2359, %v4016
        %v4033 = vmax.f32 %v2360, %v4017
        %v4034 = vmax.f32 %v2361, %v4018
        %v4035 = vmax.f32 %v2362, %v4019
        %vm4036 = vcmask 130048
        %v4037 = vsel %vm4036, %v4020, -inf
        %v4038 = vsel %vm4036, %v4021, -inf
        %v4039 = vmax.f32 %v4037, %v4038
        %v4040 = vsel %vm4036, %v4022, -inf
        %v4041 = vsel %vm4036, %v4023, -inf
        %v4042 = vmax.f32 %v4040, %v4041
        %v4043 = vsel %vm4036, %v4024, -inf
        %v4044 = vsel %vm4036, %v4025, -inf
        %v4045 = vmax.f32 %v4043, %v4044
        %v4046 = vsel %vm4036, %v4026, -inf
        %v4047 = vsel %vm4036, %v4027, -inf
        %v4048 = vmax.f32 %v4046, %v4047
        %v4049 = vsel %vm4036, %v4028, -inf
        %v4050 = vsel %vm4036, %v4029, -inf
        %v4051 = vmax.f32 %v4049, %v4050
        %v4052 = vsel %vm4036, %v4030, -inf
        %v4053 = vsel %vm4036, %v4031, -inf
        %v4054 = vmax.f32 %v4052, %v4053
        %v4055 = vsel %vm4036, %v4032, -inf
        %v4056 = vsel %vm4036, %v4033, -inf
        %v4057 = vmax.f32 %v4055, %v4056
        %v4058 = vsel %vm4036, %v4034, -inf
        %v4059 = vsel %vm4036, %v4035, -inf
        %v4060 = vmax.f32 %v4058, %v4059
        %4061 = vst.msk [vmem:[%s246] sm:$0xff] %vm4036, %v4039
        %4062 = vst.msk [vmem:[%s246 + $0x8] sm:$0xff] %vm4036, %v4042
        %4063 = vst.msk [vmem:[%s246 + $0x10] sm:$0xff] %vm4036, %v4045
        %4064 = vst.msk [vmem:[%s246 + $0x18] sm:$0xff] %vm4036, %v4048
        %4065 = vst.msk [vmem:[%s246 + $0x20] sm:$0xff] %vm4036, %v4051
        %4066 = vst.msk [vmem:[%s246 + $0x28] sm:$0xff] %vm4036, %v4054
        %4067 = vst.msk [vmem:[%s246 + $0x30] sm:$0xff] %vm4036, %v4057
        %4068 = vst.msk [vmem:[%s246 + $0x38] sm:$0xff] %vm4036, %v4060
        %s4069 = sand.u32 %s156, 1
        %s4070 = scalar_lea.sflag [#allocation3], %s4069
        %s4071 = sand.u32 %s156, 1
        %s4072 = smul.addr %s4071, 64
        %s4073 = scalar_lea.vmem [#allocation2], %s4072
        // Predicated region
        $region41: #{tpu_custom_call.1} parent=39 // pred_check
          %p4074 = pneg %p166
        $region42: #{tpu_custom_call.1} parent=39 // pred_check_branch
          %4076 = sbr.rel (%p4074) target = $region44
        $region43: #{tpu_custom_call.1} parent=39 // pred_region
          %s4077 = smul.u32 8, %s24
          %s4079 = ssub.s32 1024, 1024
          %4080 = vsyncadd %s4070, %s4079
          %s4081 = smul.addr %s23, 8
          %s4082 = sadd.s32 %s4077, %s4081
          %s4083 = smul.addr %s4082, 128
          %s4084 = scalar_lea.hbm %s5, %s4083
          %s4085 = sshll.u32 %s4073, 4
          %s4086 = int_to_ptr.vmem [resolvable:$true] %s4085
          %4091 = dma.vmem_to_hbm [thread:$0]  %s4086, 1024, %s4084, %s4070, 128, 128, 8
        $region44: #{tpu_custom_call.1} parent=39 // pred_fallthru
          _
      $region40: #{tpu_custom_call.1} parent=5 // pred_fallthru
        _
      %p4092 = scmp.le.s32.totalorder 2, %s14
      // Predicated region
      $region45: #{tpu_custom_call.1} parent=5 // pred_check
        %p4093 = pneg %p4092
      $region46: #{tpu_custom_call.1} parent=5 // pred_check_branch
        %4095 = sbr.rel (%p4093) target = $region48
      $region47: #{tpu_custom_call.1} parent=5 // pred_region
        %s4096 = ssub.s32 %s14, 2
        // Predicated region
        $region49: #{tpu_custom_call.1} parent=47 // pred_check
          %p4097 = pneg %p172
        $region50: #{tpu_custom_call.1} parent=47 // pred_check_branch
          %4099 = sbr.rel (%p4097) target = $region52
        $region51: #{tpu_custom_call.1} parent=47 // pred_region
          %s4100 = sand.u32 %s157, 1
          %s4101 = scalar_lea.sflag [#allocation3], %s4100
          %s4102 = sand.u32 %s157, 1
          %s4103 = smul.addr %s4102, 64
          %s4104 = scalar_lea.vmem [#allocation2], %s4103
          %4105 = dma.done %s4101, 1024
        $region52: #{tpu_custom_call.1} parent=47 // pred_fallthru
          _
      $region48: #{tpu_custom_call.1} parent=5 // pred_fallthru
        _
    $region6: #{tpu_custom_call.1} parent=1 // loop_footer
      %s18 = sadd.s32 1, %s14
    $region7: #{tpu_custom_call.1} parent=1 // loop_footer_branch
      %13 = sbr.rel target = $region3
    $region8: #{tpu_custom_call.1} parent=1 // loop_exit
      _
    %4106 = vsyncpa [#allocation3], 1
    %s4107 = scalar_lea.sflag [#allocation3], 1
    %4108 = vsyncpa %s4107, 1

</llo_original>
